<compile_context>
chip_gen: v6e
topology: v6e:2x2x1
jax: 0.10.0
libtpu: 0.0.40
codegen_flags: <defaults>
</compile_context>

<pallas_src>
import functools

import jax
import jax.numpy as jnp
from jax import lax
from jax.experimental import pallas as pl
from jax.experimental.pallas import tpu as pltpu

K = 7
PAD = (K - 1) // 2   # 3
_CHUNK = 8           # one sublane group of channels per pooling step


# ---------------------------------------------------------------------------
# VMEM budget / tile selection (generation aware: v7x has only 64 MiB VMEM).
# ---------------------------------------------------------------------------
def _vmem_caps():
    cap = 128 * 1024 * 1024
    try:
        info = pltpu.get_tpu_info()
        c = getattr(info, "vmem_capacity_bytes", None)
        if c:
            cap = int(c)
    except Exception:
        pass
    # Keep double-buffered blocks well inside the scoped-VMEM window:
    # ~16 MiB on v5e/v6e (128 MiB physical), ~8 MiB on v7x (64 MiB physical).
    return cap, cap // 8


def _round_down(v, m):
    return max(m, (v // m) * m)


def _pick_spatial_tile(C, S, itemsize, budget):
    # Pool kernel footprint per step ~= 2 * (C*TS*itemsize + 2*TS*4).
    per_lane = 2 * (C * itemsize + 2 * 4)
    ts = _round_down(budget // max(per_lane, 1), 128)
    if S <= 128 or ts >= S:
        return S                      # full extent (always legal)
    return ts                         # multiple of 128


def _pick_channel_tile(C, TS, itemsize, budget):
    # Multiply kernel footprint ~= 2 buffers * 2 arrays * CB * TS * itemsize.
    cb = _round_down(budget // max(4 * TS * itemsize, 1), 8)
    if C <= 8 or cb >= C:
        return C                      # full extent
    return cb                         # multiple of 8


def _pick_row_tile(H, W):
    # Conv kernel accumulates a (TCH, W) f32 tile in vregs: keep it <= ~64 KiB.
    tch = _round_down((16 * 1024) // max(W, 1), 8)
    if tch >= H:
        return H
    while tch >= 8:                   # need a multiple-of-8 divisor of H
        if H % tch == 0:
            return tch
        tch -= 8
    return H


# ---------------------------------------------------------------------------
# Pass 1: fused channel max + mean pooling over x viewed as (N, C, H*W).
# One pass over x feeds both reductions (single read of x for the pool stage).
# ---------------------------------------------------------------------------
def _pool_kernel(x_ref, pooled_ref, *, C):
    # x_ref: (C, TS) in x.dtype;  pooled_ref: (2, TS) float32.
    n_full, rem = divmod(C, _CHUNK)
    m = s = None

    if n_full:
        first = x_ref[pl.ds(0, _CHUNK)]                    # (8, TS)
        mc, sc = first, first.astype(jnp.float32)
        if n_full > 1:
            def body(i, carry):
                mm, ss = carry
                off = pl.multiple_of(i * _CHUNK, _CHUNK)
                xc = x_ref[pl.ds(off, _CHUNK)]             # (8, TS)
                return jnp.maximum(mm, xc), ss + xc.astype(jnp.float32)
            mc, sc = lax.fori_loop(1, n_full, body, (mc, sc),
                                   unroll=min(4, n_full - 1))
        m = jnp.max(mc, axis=0, keepdims=True)             # (1, TS)
        s = jnp.sum(sc, axis=0, keepdims=True)             # (1, TS) f32

    if rem:
        xr = x_ref[pl.ds(n_full * _CHUNK, rem)]            # (rem, TS)
        mr = jnp.max(xr, axis=0, keepdims=True)
        sr = jnp.sum(xr.astype(jnp.float32), axis=0, keepdims=True)
        m = mr if m is None else jnp.maximum(m, mr)
        s = sr if s is None else s + sr

    pooled_ref[0:1] = m.astype(jnp.float32)
    pooled_ref[1:2] = s * (1.0 / C)


# ---------------------------------------------------------------------------
# Pass 2: 7x7 (2 -> 1) conv + sigmoid on the zero-padded pooled map.
# kj (lane) shift hoisted out of the tap loop: 14 shifted loads, not 98.
# ---------------------------------------------------------------------------
def _conv_scale_kernel(pooled_ref, w_ref, b_ref, scale_ref, *, TCH, W):
    # pooled_ref: (2, H + 2*PAD, W + 2*PAD) f32 (already zero padded)
    # w_ref:      (2*K*K,) f32 SMEM (flattened OIHW weights)
    # b_ref:      (1,)     f32 SMEM
    # scale_ref:  (TCH, W) x.dtype output tile (rows [t*TCH, t*TCH + TCH))
    t = pl.program_id(1)
    if TCH % 8 == 0:
        base = pl.multiple_of(t * TCH, 8)
    else:                              # only happens when TCH == H (1 tile)
        base = t * TCH

    acc = jnp.full((TCH, W), b_ref[0], dtype=jnp.float32)
    for c in range(2):
        for kj in range(K):
            # One lane-shifted load per (channel, kj); ki taps below are
            # cheap sublane-offset slices of the already-loaded value.
            blk = pooled_ref[c, pl.ds(base, TCH + 2 * PAD), kj:kj + W]
            for ki in range(K):
                acc = acc + w_ref[c * K * K + ki * K + kj] * blk[ki:ki + TCH]

    scale_ref[...] = jax.nn.sigmoid(acc).astype(scale_ref.dtype)


# ---------------------------------------------------------------------------
# Pass 3: out = x * scale on the flat (N, C, H*W) layout (lane-dense I/O).
# ---------------------------------------------------------------------------
def _scale_mul_kernel(x_ref, scale_ref, o_ref):
    # x_ref/o_ref: (CB, TS);  scale_ref: (1, TS), already cast to x.dtype.
    o_ref[...] = x_ref[...] * scale_ref[...]


# ---------------------------------------------------------------------------
# Wrapper
# ---------------------------------------------------------------------------
def spatial_gate(x, w, b):
    """SpatialGate forward.  x: (N, C, H, W); w: (1, 2, 7, 7); b: (1,)."""
    N, C, H, W = x.shape
    S = H * W
    itemsize = jnp.dtype(x.dtype).itemsize
    cap, budget = _vmem_caps()
    vmem_limit = int(cap // 2)

    TS = _pick_spatial_tile(C, S, itemsize, budget)
    CB = _pick_channel_tile(C, TS, itemsize, budget)
    TCH = _pick_row_tile(H, W)
    n_s = pl.cdiv(S, TS)
    n_c = pl.cdiv(C, CB)
    n_t = H // TCH

    w_flat = w.astype(jnp.float32).reshape(-1)      # (2*K*K,)
    b_flat = b.astype(jnp.float32).reshape(-1)      # (1,)
    x_flat = x.reshape(N, C, S)                     # free layout-merge reshape

    # ---- pass 1: fused channel max / mean pooling -------------------------
    pooled = pl.pallas_call(
        functools.partial(_pool_kernel, C=C),
        out_shape=jax.ShapeDtypeStruct((N, 2, S), jnp.float32),
        grid=(N, n_s),
        in_specs=[pl.BlockSpec((None, C, TS), lambda n, si: (n, 0, si))],
        out_specs=pl.BlockSpec((None, 2, TS), lambda n, si: (n, 0, si)),
        compiler_params=pltpu.CompilerParams(
            dimension_semantics=("parallel", "parallel"),
            vmem_limit_bytes=vmem_limit),
    )(x_flat)

    # Zero-pad the tiny pooled map once in XLA (no per-step zeroing or masked
    # interior stores inside the kernels).
    pooled_pad = jnp.pad(
        pooled.reshape(N, 2, H, W),
        ((0, 0), (0, 0), (PAD, PAD), (PAD, PAD)))

    # ---- pass 2: 7x7 conv + sigmoid -> per-pixel scale ---------------------
    scale = pl.pallas_call(
        functools.partial(_conv_scale_kernel, TCH=TCH, W=W),
        out_shape=jax.ShapeDtypeStruct((N, H, W), x.dtype),
        grid=(N, n_t),
        in_specs=[
            pl.BlockSpec((None, 2, H + 2 * PAD, W + 2 * PAD),
                         lambda n, t: (n, 0, 0, 0)),
            pl.BlockSpec(memory_space=pltpu.MemorySpace.SMEM),
            pl.BlockSpec(memory_space=pltpu.MemorySpace.SMEM),
        ],
        out_specs=pl.BlockSpec((None, TCH, W), lambda n, t: (n, t, 0)),
        compiler_params=pltpu.CompilerParams(
            dimension_semantics=("parallel", "parallel"),
            vmem_limit_bytes=vmem_limit),
    )(pooled_pad, w_flat, b_flat)

    # ---- pass 3: out = x * scale (lane-dense flat layout) ------------------
    out_flat = pl.pallas_call(
        _scale_mul_kernel,
        out_shape=jax.ShapeDtypeStruct((N, C, S), x.dtype),
        grid=(N, n_c, n_s),
        in_specs=[
            pl.BlockSpec((None, CB, TS), lambda n, ci, si: (n, ci, si)),
            pl.BlockSpec((None, 1, TS), lambda n, ci, si: (n, 0, si)),
        ],
        out_specs=pl.BlockSpec((None, CB, TS), lambda n, ci, si: (n, ci, si)),
        compiler_params=pltpu.CompilerParams(
            dimension_semantics=("parallel", "parallel", "parallel"),
            vmem_limit_bytes=vmem_limit),
    )(x_flat, scale.reshape(N, 1, S))

    return out_flat.reshape(N, C, H, W)


def spatial_gate_ref(x, w, b):
    """Pure-JAX reference matching the PyTorch forward."""
    cmax = jnp.max(x, axis=1, keepdims=True)
    cmean = jnp.mean(x, axis=1, keepdims=True)
    comp = jnp.concatenate([cmax, cmean], axis=1)           # (N, 2, H, W)
    out = jax.lax.conv_general_dilated(
        comp, w, window_strides=(1, 1),
        padding=((PAD, PAD), (PAD, PAD)),
        dimension_numbers=("NCHW", "OIHW", "NCHW"))
    out = out + b.reshape(1, -1, 1, 1)
    return x * jax.nn.sigmoid(out)


if __name__ == "__main__":
    key = jax.random.PRNGKey(0)
    kx, kw, kb = jax.random.split(key, 3)

    N, C, H, W = 2, 4, 16, 16
    x = jax.random.normal(kx, (N, C, H, W), dtype=jnp.float32)
    # Deterministic synthetic Conv2d(2, 1, 7) parameters.
    w = jax.random.normal(kw, (1, 2, K, K), dtype=jnp.float32) * 0.1
    b = jax.random.normal(kb, (1,), dtype=jnp.float32) * 0.1

    out = jax.block_until_ready(jax.jit(spatial_gate)(x, w, b))
    ref = jax.block_until_ready(spatial_gate_ref(x, w, b))

    assert out.shape == x.shape and out.dtype == x.dtype
    err = float(jnp.max(jnp.abs(out - ref)))
    assert jnp.allclose(out, ref, atol=1e-4, rtol=1e-4), err
    print("KERNEL_OK")
</pallas_src>

<mosaic_0001>
module attributes {stable_mosaic.version = 11 : i64} {
  func.func @_pool_kernel(%arg0: i32, %arg1: i32, %arg2: memref<1x4x256xf32, #tpu.memory_space<vmem>>, %arg3: memref<1x2x256xf32, #tpu.memory_space<vmem>>) attributes {dimension_semantics = [#tpu.dimension_semantics<parallel>, #tpu.dimension_semantics<parallel>], iteration_bounds = array<i64: 2, 1>, scalar_prefetch = 0 : i64, scratch_operands = 0 : i64, tpu.core_type = #tpu.core_type<tc>, window_params = [{transform_indices = @transform_0, window_bounds = array<i64: 1, 4, 256>}, {transform_indices = @transform_1, window_bounds = array<i64: 1, 2, 256>}]} {
    %c0 = arith.constant 0 : index
    %c0_0 = arith.constant 0 : index
    %c0_1 = arith.constant 0 : index
    %0 = vector.load %arg2[%c0, %c0_0, %c0_1] : memref<1x4x256xf32, #tpu.memory_space<vmem>>, vector<1x4x256xf32>
    %1 = vector.shape_cast %0 : vector<1x4x256xf32> to vector<4x256xf32>
    %cst = arith.constant dense<0xFF800000> : vector<256xf32>
    %2 = vector.multi_reduction <maximumf>, %1, %cst [0] : vector<4x256xf32> to vector<256xf32>
    %3 = vector.shape_cast %2 : vector<256xf32> to vector<1x256xf32>
    %cst_2 = arith.constant dense<0.000000e+00> : vector<256xf32>
    %4 = vector.multi_reduction <add>, %1, %cst_2 [0] : vector<4x256xf32> to vector<256xf32>
    %5 = vector.shape_cast %4 : vector<256xf32> to vector<1x256xf32>
    %c0_3 = arith.constant 0 : index
    %c0_4 = arith.constant 0 : index
    %c0_5 = arith.constant 0 : index
    %6 = vector.load %arg3[%c0_3, %c0_4, %c0_5] : memref<1x2x256xf32, #tpu.memory_space<vmem>>, vector<1x1x256xf32>
    %7 = vector.shape_cast %6 : vector<1x1x256xf32> to vector<1x256xf32>
    %8 = vector.shape_cast %3 : vector<1x256xf32> to vector<1x1x256xf32>
    tpu.vector_store %arg3[%c0_3, %c0_4, %c0_5], %8 {strides = array<i32>} : memref<1x2x256xf32, #tpu.memory_space<vmem>>, vector<1x1x256xf32>,
    %cst_6 = arith.constant 2.500000e-01 : f32
    %9 = vector.broadcast %cst_6 : f32 to vector<1x256xf32>
    %10 = arith.mulf %5, %9 : vector<1x256xf32>
    %c0_7 = arith.constant 0 : index
    %c1 = arith.constant 1 : index
    %c0_8 = arith.constant 0 : index
    %11 = vector.load %arg3[%c0_7, %c1, %c0_8] : memref<1x2x256xf32, #tpu.memory_space<vmem>>, vector<1x1x256xf32>
    %12 = vector.shape_cast %11 : vector<1x1x256xf32> to vector<1x256xf32>
    %13 = vector.shape_cast %10 : vector<1x256xf32> to vector<1x1x256xf32>
    tpu.vector_store %arg3[%c0_7, %c1, %c0_8], %13 {strides = array<i32>} : memref<1x2x256xf32, #tpu.memory_space<vmem>>, vector<1x1x256xf32>,
    return
  }
  func.func @transform_0(%arg0: i32, %arg1: i32) -> (i32, i32, i32) {
    %c0_i32 = arith.constant 0 : i32
    %c0_i32_0 = arith.constant 0 : i32
    return %arg0, %c0_i32, %arg1 : i32, i32, i32
  }
  func.func @transform_1(%arg0: i32, %arg1: i32) -> (i32, i32, i32) {
    %c0_i32 = arith.constant 0 : i32
    %c0_i32_0 = arith.constant 0 : i32
    return %arg0, %c0_i32, %arg1 : i32, i32, i32
  }
}

module attributes {stable_mosaic.version = 11 : i64} {
  func.func @_scale_mul_kernel(%arg0: i32, %arg1: i32, %arg2: i32, %arg3: memref<1x4x256xf32, #tpu.memory_space<vmem>>, %arg4: memref<1x1x256xf32, #tpu.memory_space<vmem>>, %arg5: memref<1x4x256xf32, #tpu.memory_space<vmem>>) attributes {dimension_semantics = [#tpu.dimension_semantics<parallel>, #tpu.dimension_semantics<parallel>, #tpu.dimension_semantics<parallel>], iteration_bounds = array<i64: 2, 1, 1>, scalar_prefetch = 0 : i64, scratch_operands = 0 : i64, tpu.core_type = #tpu.core_type<tc>, window_params = [{transform_indices = @transform_0, window_bounds = array<i64: 1, 4, 256>}, {transform_indices = @transform_1, window_bounds = array<i64: 1, 1, 256>}, {transform_indices = @transform_2, window_bounds = array<i64: 1, 4, 256>}]} {
    %c0 = arith.constant 0 : index
    %c0_0 = arith.constant 0 : index
    %c0_1 = arith.constant 0 : index
    %0 = vector.load %arg3[%c0, %c0_0, %c0_1] : memref<1x4x256xf32, #tpu.memory_space<vmem>>, vector<1x4x256xf32>
    %1 = vector.shape_cast %0 : vector<1x4x256xf32> to vector<4x256xf32>
    %c0_2 = arith.constant 0 : index
    %c0_3 = arith.constant 0 : index
    %c0_4 = arith.constant 0 : index
    %2 = vector.load %arg4[%c0_2, %c0_3, %c0_4] : memref<1x1x256xf32, #tpu.memory_space<vmem>>, vector<1x1x256xf32>
    %3 = vector.shape_cast %2 : vector<1x1x256xf32> to vector<1x256xf32>
    %4 = vector.broadcast %3 : vector<1x256xf32> to vector<4x256xf32>
    %5 = arith.mulf %1, %4 : vector<4x256xf32>
    %c0_5 = arith.constant 0 : index
    %c0_6 = arith.constant 0 : index
    %c0_7 = arith.constant 0 : index
    %6 = vector.load %arg5[%c0_5, %c0_6, %c0_7] : memref<1x4x256xf32, #tpu.memory_space<vmem>>, vector<1x4x256xf32>
    %7 = vector.shape_cast %6 : vector<1x4x256xf32> to vector<4x256xf32>
    %8 = vector.shape_cast %5 : vector<4x256xf32> to vector<1x4x256xf32>
    tpu.vector_store %arg5[%c0_5, %c0_6, %c0_7], %8 {strides = array<i32>} : memref<1x4x256xf32, #tpu.memory_space<vmem>>, vector<1x4x256xf32>,
    return
  }
  func.func @transform_0(%arg0: i32, %arg1: i32, %arg2: i32) -> (i32, i32, i32) {
    %c0_i32 = arith.constant 0 : i32
    return %arg0, %arg1, %arg2 : i32, i32, i32
  }
  func.func @transform_1(%arg0: i32, %arg1: i32, %arg2: i32) -> (i32, i32, i32) {
    %c0_i32 = arith.constant 0 : i32
    %c0_i32_0 = arith.constant 0 : i32
    return %arg0, %c0_i32, %arg2 : i32, i32, i32
  }
  func.func @transform_2(%arg0: i32, %arg1: i32, %arg2: i32) -> (i32, i32, i32) {
    %c0_i32 = arith.constant 0 : i32
    return %arg0, %arg1, %arg2 : i32, i32, i32
  }
}

module attributes {stable_mosaic.version = 11 : i64} {
  func.func @_conv_scale_kernel(%arg0: i32, %arg1: i32, %arg2: memref<1x2x22x22xf32, #tpu.memory_space<vmem>>, %arg3: memref<98xf32, #tpu.memory_space<smem>>, %arg4: memref<1xf32, #tpu.memory_space<smem>>, %arg5: memref<1x16x16xf32, #tpu.memory_space<vmem>>) attributes {dimension_semantics = [#tpu.dimension_semantics<parallel>, #tpu.dimension_semantics<parallel>], iteration_bounds = array<i64: 2, 1>, scalar_prefetch = 0 : i64, scratch_operands = 0 : i64, tpu.core_type = #tpu.core_type<tc>, window_params = [{transform_indices = @transform_0, window_bounds = array<i64: 1, 2, 22, 22>}, {transform_indices = @transform_1, window_bounds = array<i64: 98>}, {transform_indices = @transform_2, window_bounds = array<i64: 1>}, {transform_indices = @transform_3, window_bounds = array<i64: 1, 16, 16>}]} {
    %c16_i32 = arith.constant 16 : i32
    %0 = arith.muli %arg1, %c16_i32 : i32
    %1 = tpu.assume_multiple %0, 8 : i32
    %c0 = arith.constant 0 : index
    %2 = memref.load %arg4[%c0] : memref<1xf32, #tpu.memory_space<smem>>
    %3 = vector.broadcast %2 : f32 to vector<16x16xf32>
    %c0_0 = arith.constant 0 : index
    %c0_1 = arith.constant 0 : index
    %4 = arith.index_cast %1 : i32 to index
    %c0_2 = arith.constant 0 : index
    %5 = vector.load %arg2[%c0_0, %c0_1, %4, %c0_2] : memref<1x2x22x22xf32, #tpu.memory_space<vmem>>, vector<1x1x22x16xf32>
    %6 = vector.shape_cast %5 : vector<1x1x22x16xf32> to vector<22x16xf32>
    %c0_3 = arith.constant 0 : index
    %7 = memref.load %arg3[%c0_3] : memref<98xf32, #tpu.memory_space<smem>>
    %8 = vector.extract_strided_slice %6 {offsets = [0, 0], sizes = [16, 16], strides = [1, 1]} : vector<22x16xf32> to vector<16x16xf32>
    %9 = vector.broadcast %7 : f32 to vector<16x16xf32>
    %10 = arith.mulf %9, %8 : vector<16x16xf32>
    %11 = arith.addf %3, %10 : vector<16x16xf32>
    %c7 = arith.constant 7 : index
    %12 = memref.load %arg3[%c7] : memref<98xf32, #tpu.memory_space<smem>>
    %13 = vector.extract_strided_slice %6 {offsets = [1, 0], sizes = [16, 16], strides = [1, 1]} : vector<22x16xf32> to vector<16x16xf32>
    %14 = vector.broadcast %12 : f32 to vector<16x16xf32>
    %15 = arith.mulf %14, %13 : vector<16x16xf32>
    %16 = arith.addf %11, %15 : vector<16x16xf32>
    %c14 = arith.constant 14 : index
    %17 = memref.load %arg3[%c14] : memref<98xf32, #tpu.memory_space<smem>>
    %18 = vector.extract_strided_slice %6 {offsets = [2, 0], sizes = [16, 16], strides = [1, 1]} : vector<22x16xf32> to vector<16x16xf32>
    %19 = vector.broadcast %17 : f32 to vector<16x16xf32>
    %20 = arith.mulf %19, %18 : vector<16x16xf32>
    %21 = arith.addf %16, %20 : vector<16x16xf32>
    %c21 = arith.constant 21 : index
    %22 = memref.load %arg3[%c21] : memref<98xf32, #tpu.memory_space<smem>>
    %23 = vector.extract_strided_slice %6 {offsets = [3, 0], sizes = [16, 16], strides = [1, 1]} : vector<22x16xf32> to vector<16x16xf32>
    %24 = vector.broadcast %22 : f32 to vector<16x16xf32>
    %25 = arith.mulf %24, %23 : vector<16x16xf32>
    %26 = arith.addf %21, %25 : vector<16x16xf32>
    %c28 = arith.constant 28 : index
    %27 = memref.load %arg3[%c28] : memref<98xf32, #tpu.memory_space<smem>>
    %28 = vector.extract_strided_slice %6 {offsets = [4, 0], sizes = [16, 16], strides = [1, 1]} : vector<22x16xf32> to vector<16x16xf32>
    %29 = vector.broadcast %27 : f32 to vector<16x16xf32>
    %30 = arith.mulf %29, %28 : vector<16x16xf32>
    %31 = arith.addf %26, %30 : vector<16x16xf32>
    %c35 = arith.constant 35 : index
    %32 = memref.load %arg3[%c35] : memref<98xf32, #tpu.memory_space<smem>>
    %33 = vector.extract_strided_slice %6 {offsets = [5, 0], sizes = [16, 16], strides = [1, 1]} : vector<22x16xf32> to vector<16x16xf32>
    %34 = vector.broadcast %32 : f32 to vector<16x16xf32>
    %35 = arith.mulf %34, %33 : vector<16x16xf32>
    %36 = arith.addf %31, %35 : vector<16x16xf32>
    %c42 = arith.constant 42 : index
    %37 = memref.load %arg3[%c42] : memref<98xf32, #tpu.memory_space<smem>>
    %38 = vector.extract_strided_slice %6 {offsets = [6, 0], sizes = [16, 16], strides = [1, 1]} : vector<22x16xf32> to vector<16x16xf32>
    %39 = vector.broadcast %37 : f32 to vector<16x16xf32>
    %40 = arith.mulf %39, %38 : vector<16x16xf32>
    %41 = arith.addf %36, %40 : vector<16x16xf32>
    %c0_4 = arith.constant 0 : index
    %c0_5 = arith.constant 0 : index
    %42 = arith.index_cast %1 : i32 to index
    %c1 = arith.constant 1 : index
    %43 = vector.load %arg2[%c0_4, %c0_5, %42, %c1] : memref<1x2x22x22xf32, #tpu.memory_space<vmem>>, vector<1x1x22x16xf32>
    %44 = vector.shape_cast %43 : vector<1x1x22x16xf32> to vector<22x16xf32>
    %c1_6 = arith.constant 1 : index
    %45 = memref.load %arg3[%c1_6] : memref<98xf32, #tpu.memory_space<smem>>
    %46 = vector.extract_strided_slice %44 {offsets = [0, 0], sizes = [16, 16], strides = [1, 1]} : vector<22x16xf32> to vector<16x16xf32>
    %47 = vector.broadcast %45 : f32 to vector<16x16xf32>
    %48 = arith.mulf %47, %46 : vector<16x16xf32>
    %49 = arith.addf %41, %48 : vector<16x16xf32>
    %c8 = arith.constant 8 : index
    %50 = memref.load %arg3[%c8] : memref<98xf32, #tpu.memory_space<smem>>
    %51 = vector.extract_strided_slice %44 {offsets = [1, 0], sizes = [16, 16], strides = [1, 1]} : vector<22x16xf32> to vector<16x16xf32>
    %52 = vector.broadcast %50 : f32 to vector<16x16xf32>
    %53 = arith.mulf %52, %51 : vector<16x16xf32>
    %54 = arith.addf %49, %53 : vector<16x16xf32>
    %c15 = arith.constant 15 : index
    %55 = memref.load %arg3[%c15] : memref<98xf32, #tpu.memory_space<smem>>
    %56 = vector.extract_strided_slice %44 {offsets = [2, 0], sizes = [16, 16], strides = [1, 1]} : vector<22x16xf32> to vector<16x16xf32>
    %57 = vector.broadcast %55 : f32 to vector<16x16xf32>
    %58 = arith.mulf %57, %56 : vector<16x16xf32>
    %59 = arith.addf %54, %58 : vector<16x16xf32>
    %c22 = arith.constant 22 : index
    %60 = memref.load %arg3[%c22] : memref<98xf32, #tpu.memory_space<smem>>
    %61 = vector.extract_strided_slice %44 {offsets = [3, 0], sizes = [16, 16], strides = [1, 1]} : vector<22x16xf32> to vector<16x16xf32>
    %62 = vector.broadcast %60 : f32 to vector<16x16xf32>
    %63 = arith.mulf %62, %61 : vector<16x16xf32>
    %64 = arith.addf %59, %63 : vector<16x16xf32>
    %c29 = arith.constant 29 : index
    %65 = memref.load %arg3[%c29] : memref<98xf32, #tpu.memory_space<smem>>
    %66 = vector.extract_strided_slice %44 {offsets = [4, 0], sizes = [16, 16], strides = [1, 1]} : vector<22x16xf32> to vector<16x16xf32>
    %67 = vector.broadcast %65 : f32 to vector<16x16xf32>
    %68 = arith.mulf %67, %66 : vector<16x16xf32>
    %69 = arith.addf %64, %68 : vector<16x16xf32>
    %c36 = arith.constant 36 : index
    %70 = memref.load %arg3[%c36] : memref<98xf32, #tpu.memory_space<smem>>
    %71 = vector.extract_strided_slice %44 {offsets = [5, 0], sizes = [16, 16], strides = [1, 1]} : vector<22x16xf32> to vector<16x16xf32>
    %72 = vector.broadcast %70 : f32 to vector<16x16xf32>
    %73 = arith.mulf %72, %71 : vector<16x16xf32>
    %74 = arith.addf %69, %73 : vector<16x16xf32>
    %c43 = arith.constant 43 : index
    %75 = memref.load %arg3[%c43] : memref<98xf32, #tpu.memory_space<smem>>
    %76 = vector.extract_strided_slice %44 {offsets = [6, 0], sizes = [16, 16], strides = [1, 1]} : vector<22x16xf32> to vector<16x16xf32>
    %77 = vector.broadcast %75 : f32 to vector<16x16xf32>
    %78 = arith.mulf %77, %76 : vector<16x16xf32>
    %79 = arith.addf %74, %78 : vector<16x16xf32>
    %c0_7 = arith.constant 0 : index
    %c0_8 = arith.constant 0 : index
    %80 = arith.index_cast %1 : i32 to index
    %c2 = arith.constant 2 : index
    %81 = vector.load %arg2[%c0_7, %c0_8, %80, %c2] : memref<1x2x22x22xf32, #tpu.memory_space<vmem>>, vector<1x1x22x16xf32>
    %82 = vector.shape_cast %81 : vector<1x1x22x16xf32> to vector<22x16xf32>
    %c2_9 = arith.constant 2 : index
    %83 = memref.load %arg3[%c2_9] : memref<98xf32, #tpu.memory_space<smem>>
    %84 = vector.extract_strided_slice %82 {offsets = [0, 0], sizes = [16, 16], strides = [1, 1]} : vector<22x16xf32> to vector<16x16xf32>
    %85 = vector.broadcast %83 : f32 to vector<16x16xf32>
    %86 = arith.mulf %85, %84 : vector<16x16xf32>
    %87 = arith.addf %79, %86 : vector<16x16xf32>
    %c9 = arith.constant 9 : index
    %88 = memref.load %arg3[%c9] : memref<98xf32, #tpu.memory_space<smem>>
    %89 = vector.extract_strided_slice %82 {offsets = [1, 0], sizes = [16, 16], strides = [1, 1]} : vector<22x16xf32> to vector<16x16xf32>
    %90 = vector.broadcast %88 : f32 to vector<16x16xf32>
    %91 = arith.mulf %90, %89 : vector<16x16xf32>
    %92 = arith.addf %87, %91 : vector<16x16xf32>
    %c16 = arith.constant 16 : index
    %93 = memref.load %arg3[%c16] : memref<98xf32, #tpu.memory_space<smem>>
    %94 = vector.extract_strided_slice %82 {offsets = [2, 0], sizes = [16, 16], strides = [1, 1]} : vector<22x16xf32> to vector<16x16xf32>
    %95 = vector.broadcast %93 : f32 to vector<16x16xf32>
    %96 = arith.mulf %95, %94 : vector<16x16xf32>
    %97 = arith.addf %92, %96 : vector<16x16xf32>
    %c23 = arith.constant 23 : index
    %98 = memref.load %arg3[%c23] : memref<98xf32, #tpu.memory_space<smem>>
    %99 = vector.extract_strided_slice %82 {offsets = [3, 0], sizes = [16, 16], strides = [1, 1]} : vector<22x16xf32> to vector<16x16xf32>
    %100 = vector.broadcast %98 : f32 to vector<16x16xf32>
    %101 = arith.mulf %100, %99 : vector<16x16xf32>
    %102 = arith.addf %97, %101 : vector<16x16xf32>
    %c30 = arith.constant 30 : index
    %103 = memref.load %arg3[%c30] : memref<98xf32, #tpu.memory_space<smem>>
    %104 = vector.extract_strided_slice %82 {offsets = [4, 0], sizes = [16, 16], strides = [1, 1]} : vector<22x16xf32> to vector<16x16xf32>
    %105 = vector.broadcast %103 : f32 to vector<16x16xf32>
    %106 = arith.mulf %105, %104 : vector<16x16xf32>
    %107 = arith.addf %102, %106 : vector<16x16xf32>
    %c37 = arith.constant 37 : index
    %108 = memref.load %arg3[%c37] : memref<98xf32, #tpu.memory_space<smem>>
    %109 = vector.extract_strided_slice %82 {offsets = [5, 0], sizes = [16, 16], strides = [1, 1]} : vector<22x16xf32> to vector<16x16xf32>
    %110 = vector.broadcast %108 : f32 to vector<16x16xf32>
    %111 = arith.mulf %110, %109 : vector<16x16xf32>
    %112 = arith.addf %107, %111 : vector<16x16xf32>
    %c44 = arith.constant 44 : index
    %113 = memref.load %arg3[%c44] : memref<98xf32, #tpu.memory_space<smem>>
    %114 = vector.extract_strided_slice %82 {offsets = [6, 0], sizes = [16, 16], strides = [1, 1]} : vector<22x16xf32> to vector<16x16xf32>
    %115 = vector.broadcast %113 : f32 to vector<16x16xf32>
    %116 = arith.mulf %115, %114 : vector<16x16xf32>
    %117 = arith.addf %112, %116 : vector<16x16xf32>
    %c0_10 = arith.constant 0 : index
    %c0_11 = arith.constant 0 : index
    %118 = arith.index_cast %1 : i32 to index
    %c3 = arith.constant 3 : index
    %119 = vector.load %arg2[%c0_10, %c0_11, %118, %c3] : memref<1x2x22x22xf32, #tpu.memory_space<vmem>>, vector<1x1x22x16xf32>
    %120 = vector.shape_cast %119 : vector<1x1x22x16xf32> to vector<22x16xf32>
    %c3_12 = arith.constant 3 : index
    %121 = memref.load %arg3[%c3_12] : memref<98xf32, #tpu.memory_space<smem>>
    %122 = vector.extract_strided_slice %120 {offsets = [0, 0], sizes = [16, 16], strides = [1, 1]} : vector<22x16xf32> to vector<16x16xf32>
    %123 = vector.broadcast %121 : f32 to vector<16x16xf32>
    %124 = arith.mulf %123, %122 : vector<16x16xf32>
    %125 = arith.addf %117, %124 : vector<16x16xf32>
    %c10 = arith.constant 10 : index
    %126 = memref.load %arg3[%c10] : memref<98xf32, #tpu.memory_space<smem>>
    %127 = vector.extract_strided_slice %120 {offsets = [1, 0], sizes = [16, 16], strides = [1, 1]} : vector<22x16xf32> to vector<16x16xf32>
    %128 = vector.broadcast %126 : f32 to vector<16x16xf32>
    %129 = arith.mulf %128, %127 : vector<16x16xf32>
    %130 = arith.addf %125, %129 : vector<16x16xf32>
    %c17 = arith.constant 17 : index
    %131 = memref.load %arg3[%c17] : memref<98xf32, #tpu.memory_space<smem>>
    %132 = vector.extract_strided_slice %120 {offsets = [2, 0], sizes = [16, 16], strides = [1, 1]} : vector<22x16xf32> to vector<16x16xf32>
    %133 = vector.broadcast %131 : f32 to vector<16x16xf32>
    %134 = arith.mulf %133, %132 : vector<16x16xf32>
    %135 = arith.addf %130, %134 : vector<16x16xf32>
    %c24 = arith.constant 24 : index
    %136 = memref.load %arg3[%c24] : memref<98xf32, #tpu.memory_space<smem>>
    %137 = vector.extract_strided_slice %120 {offsets = [3, 0], sizes = [16, 16], strides = [1, 1]} : vector<22x16xf32> to vector<16x16xf32>
    %138 = vector.broadcast %136 : f32 to vector<16x16xf32>
    %139 = arith.mulf %138, %137 : vector<16x16xf32>
    %140 = arith.addf %135, %139 : vector<16x16xf32>
    %c31 = arith.constant 31 : index
    %141 = memref.load %arg3[%c31] : memref<98xf32, #tpu.memory_space<smem>>
    %142 = vector.extract_strided_slice %120 {offsets = [4, 0], sizes = [16, 16], strides = [1, 1]} : vector<22x16xf32> to vector<16x16xf32>
    %143 = vector.broadcast %141 : f32 to vector<16x16xf32>
    %144 = arith.mulf %143, %142 : vector<16x16xf32>
    %145 = arith.addf %140, %144 : vector<16x16xf32>
    %c38 = arith.constant 38 : index
    %146 = memref.load %arg3[%c38] : memref<98xf32, #tpu.memory_space<smem>>
    %147 = vector.extract_strided_slice %120 {offsets = [5, 0], sizes = [16, 16], strides = [1, 1]} : vector<22x16xf32> to vector<16x16xf32>
    %148 = vector.broadcast %146 : f32 to vector<16x16xf32>
    %149 = arith.mulf %148, %147 : vector<16x16xf32>
    %150 = arith.addf %145, %149 : vector<16x16xf32>
    %c45 = arith.constant 45 : index
    %151 = memref.load %arg3[%c45] : memref<98xf32, #tpu.memory_space<smem>>
    %152 = vector.extract_strided_slice %120 {offsets = [6, 0], sizes = [16, 16], strides = [1, 1]} : vector<22x16xf32> to vector<16x16xf32>
    %153 = vector.broadcast %151 : f32 to vector<16x16xf32>
    %154 = arith.mulf %153, %152 : vector<16x16xf32>
    %155 = arith.addf %150, %154 : vector<16x16xf32>
    %c0_13 = arith.constant 0 : index
    %c0_14 = arith.constant 0 : index
    %156 = arith.index_cast %1 : i32 to index
    %c4 = arith.constant 4 : index
    %157 = vector.load %arg2[%c0_13, %c0_14, %156, %c4] : memref<1x2x22x22xf32, #tpu.memory_space<vmem>>, vector<1x1x22x16xf32>
    %158 = vector.shape_cast %157 : vector<1x1x22x16xf32> to vector<22x16xf32>
    %c4_15 = arith.constant 4 : index
    %159 = memref.load %arg3[%c4_15] : memref<98xf32, #tpu.memory_space<smem>>
    %160 = vector.extract_strided_slice %158 {offsets = [0, 0], sizes = [16, 16], strides = [1, 1]} : vector<22x16xf32> to vector<16x16xf32>
    %161 = vector.broadcast %159 : f32 to vector<16x16xf32>
    %162 = arith.mulf %161, %160 : vector<16x16xf32>
    %163 = arith.addf %155, %162 : vector<16x16xf32>
    %c11 = arith.constant 11 : index
    %164 = memref.load %arg3[%c11] : memref<98xf32, #tpu.memory_space<smem>>
    %165 = vector.extract_strided_slice %158 {offsets = [1, 0], sizes = [16, 16], strides = [1, 1]} : vector<22x16xf32> to vector<16x16xf32>
    %166 = vector.broadcast %164 : f32 to vector<16x16xf32>
    %167 = arith.mulf %166, %165 : vector<16x16xf32>
    %168 = arith.addf %163, %167 : vector<16x16xf32>
    %c18 = arith.constant 18 : index
    %169 = memref.load %arg3[%c18] : memref<98xf32, #tpu.memory_space<smem>>
    %170 = vector.extract_strided_slice %158 {offsets = [2, 0], sizes = [16, 16], strides = [1, 1]} : vector<22x16xf32> to vector<16x16xf32>
    %171 = vector.broadcast %169 : f32 to vector<16x16xf32>
    %172 = arith.mulf %171, %170 : vector<16x16xf32>
    %173 = arith.addf %168, %172 : vector<16x16xf32>
    %c25 = arith.constant 25 : index
    %174 = memref.load %arg3[%c25] : memref<98xf32, #tpu.memory_space<smem>>
    %175 = vector.extract_strided_slice %158 {offsets = [3, 0], sizes = [16, 16], strides = [1, 1]} : vector<22x16xf32> to vector<16x16xf32>
    %176 = vector.broadcast %174 : f32 to vector<16x16xf32>
    %177 = arith.mulf %176, %175 : vector<16x16xf32>
    %178 = arith.addf %173, %177 : vector<16x16xf32>
    %c32 = arith.constant 32 : index
    %179 = memref.load %arg3[%c32] : memref<98xf32, #tpu.memory_space<smem>>
    %180 = vector.extract_strided_slice %158 {offsets = [4, 0], sizes = [16, 16], strides = [1, 1]} : vector<22x16xf32> to vector<16x16xf32>
    %181 = vector.broadcast %179 : f32 to vector<16x16xf32>
    %182 = arith.mulf %181, %180 : vector<16x16xf32>
    %183 = arith.addf %178, %182 : vector<16x16xf32>
    %c39 = arith.constant 39 : index
    %184 = memref.load %arg3[%c39] : memref<98xf32, #tpu.memory_space<smem>>
    %185 = vector.extract_strided_slice %158 {offsets = [5, 0], sizes = [16, 16], strides = [1, 1]} : vector<22x16xf32> to vector<16x16xf32>
    %186 = vector.broadcast %184 : f32 to vector<16x16xf32>
    %187 = arith.mulf %186, %185 : vector<16x16xf32>
    %188 = arith.addf %183, %187 : vector<16x16xf32>
    %c46 = arith.constant 46 : index
    %189 = memref.load %arg3[%c46] : memref<98xf32, #tpu.memory_space<smem>>
    %190 = vector.extract_strided_slice %158 {offsets = [6, 0], sizes = [16, 16], strides = [1, 1]} : vector<22x16xf32> to vector<16x16xf32>
    %191 = vector.broadcast %189 : f32 to vector<16x16xf32>
    %192 = arith.mulf %191, %190 : vector<16x16xf32>
    %193 = arith.addf %188, %192 : vector<16x16xf32>
    %c0_16 = arith.constant 0 : index
    %c0_17 = arith.constant 0 : index
    %194 = arith.index_cast %1 : i32 to index
    %c5 = arith.constant 5 : index
    %195 = vector.load %arg2[%c0_16, %c0_17, %194, %c5] : memref<1x2x22x22xf32, #tpu.memory_space<vmem>>, vector<1x1x22x16xf32>
    %196 = vector.shape_cast %195 : vector<1x1x22x16xf32> to vector<22x16xf32>
    %c5_18 = arith.constant 5 : index
    %197 = memref.load %arg3[%c5_18] : memref<98xf32, #tpu.memory_space<smem>>
    %198 = vector.extract_strided_slice %196 {offsets = [0, 0], sizes = [16, 16], strides = [1, 1]} : vector<22x16xf32> to vector<16x16xf32>
    %199 = vector.broadcast %197 : f32 to vector<16x16xf32>
    %200 = arith.mulf %199, %198 : vector<16x16xf32>
    %201 = arith.addf %193, %200 : vector<16x16xf32>
    %c12 = arith.constant 12 : index
    %202 = memref.load %arg3[%c12] : memref<98xf32, #tpu.memory_space<smem>>
    %203 = vector.extract_strided_slice %196 {offsets = [1, 0], sizes = [16, 16], strides = [1, 1]} : vector<22x16xf32> to vector<16x16xf32>
    %204 = vector.broadcast %202 : f32 to vector<16x16xf32>
    %205 = arith.mulf %204, %203 : vector<16x16xf32>
    %206 = arith.addf %201, %205 : vector<16x16xf32>
    %c19 = arith.constant 19 : index
    %207 = memref.load %arg3[%c19] : memref<98xf32, #tpu.memory_space<smem>>
    %208 = vector.extract_strided_slice %196 {offsets = [2, 0], sizes = [16, 16], strides = [1, 1]} : vector<22x16xf32> to vector<16x16xf32>
    %209 = vector.broadcast %207 : f32 to vector<16x16xf32>
    %210 = arith.mulf %209, %208 : vector<16x16xf32>
    %211 = arith.addf %206, %210 : vector<16x16xf32>
    %c26 = arith.constant 26 : index
    %212 = memref.load %arg3[%c26] : memref<98xf32, #tpu.memory_space<smem>>
    %213 = vector.extract_strided_slice %196 {offsets = [3, 0], sizes = [16, 16], strides = [1, 1]} : vector<22x16xf32> to vector<16x16xf32>
    %214 = vector.broadcast %212 : f32 to vector<16x16xf32>
    %215 = arith.mulf %214, %213 : vector<16x16xf32>
    %216 = arith.addf %211, %215 : vector<16x16xf32>
    %c33 = arith.constant 33 : index
    %217 = memref.load %arg3[%c33] : memref<98xf32, #tpu.memory_space<smem>>
    %218 = vector.extract_strided_slice %196 {offsets = [4, 0], sizes = [16, 16], strides = [1, 1]} : vector<22x16xf32> to vector<16x16xf32>
    %219 = vector.broadcast %217 : f32 to vector<16x16xf32>
    %220 = arith.mulf %219, %218 : vector<16x16xf32>
    %221 = arith.addf %216, %220 : vector<16x16xf32>
    %c40 = arith.constant 40 : index
    %222 = memref.load %arg3[%c40] : memref<98xf32, #tpu.memory_space<smem>>
    %223 = vector.extract_strided_slice %196 {offsets = [5, 0], sizes = [16, 16], strides = [1, 1]} : vector<22x16xf32> to vector<16x16xf32>
    %224 = vector.broadcast %222 : f32 to vector<16x16xf32>
    %225 = arith.mulf %224, %223 : vector<16x16xf32>
    %226 = arith.addf %221, %225 : vector<16x16xf32>
    %c47 = arith.constant 47 : index
    %227 = memref.load %arg3[%c47] : memref<98xf32, #tpu.memory_space<smem>>
    %228 = vector.extract_strided_slice %196 {offsets = [6, 0], sizes = [16, 16], strides = [1, 1]} : vector<22x16xf32> to vector<16x16xf32>
    %229 = vector.broadcast %227 : f32 to vector<16x16xf32>
    %230 = arith.mulf %229, %228 : vector<16x16xf32>
    %231 = arith.addf %226, %230 : vector<16x16xf32>
    %c0_19 = arith.constant 0 : index
    %c0_20 = arith.constant 0 : index
    %232 = arith.index_cast %1 : i32 to index
    %c6 = arith.constant 6 : index
    %233 = vector.load %arg2[%c0_19, %c0_20, %232, %c6] : memref<1x2x22x22xf32, #tpu.memory_space<vmem>>, vector<1x1x22x16xf32>
    %234 = vector.shape_cast %233 : vector<1x1x22x16xf32> to vector<22x16xf32>
    %c6_21 = arith.constant 6 : index
    %235 = memref.load %arg3[%c6_21] : memref<98xf32, #tpu.memory_space<smem>>
    %236 = vector.extract_strided_slice %234 {offsets = [0, 0], sizes = [16, 16], strides = [1, 1]} : vector<22x16xf32> to vector<16x16xf32>
    %237 = vector.broadcast %235 : f32 to vector<16x16xf32>
    %238 = arith.mulf %237, %236 : vector<16x16xf32>
    %239 = arith.addf %231, %238 : vector<16x16xf32>
    %c13 = arith.constant 13 : index
    %240 = memref.load %arg3[%c13] : memref<98xf32, #tpu.memory_space<smem>>
    %241 = vector.extract_strided_slice %234 {offsets = [1, 0], sizes = [16, 16], strides = [1, 1]} : vector<22x16xf32> to vector<16x16xf32>
    %242 = vector.broadcast %240 : f32 to vector<16x16xf32>
    %243 = arith.mulf %242, %241 : vector<16x16xf32>
    %244 = arith.addf %239, %243 : vector<16x16xf32>
    %c20 = arith.constant 20 : index
    %245 = memref.load %arg3[%c20] : memref<98xf32, #tpu.memory_space<smem>>
    %246 = vector.extract_strided_slice %234 {offsets = [2, 0], sizes = [16, 16], strides = [1, 1]} : vector<22x16xf32> to vector<16x16xf32>
    %247 = vector.broadcast %245 : f32 to vector<16x16xf32>
    %248 = arith.mulf %247, %246 : vector<16x16xf32>
    %249 = arith.addf %244, %248 : vector<16x16xf32>
    %c27 = arith.constant 27 : index
    %250 = memref.load %arg3[%c27] : memref<98xf32, #tpu.memory_space<smem>>
    %251 = vector.extract_strided_slice %234 {offsets = [3, 0], sizes = [16, 16], strides = [1, 1]} : vector<22x16xf32> to vector<16x16xf32>
    %252 = vector.broadcast %250 : f32 to vector<16x16xf32>
    %253 = arith.mulf %252, %251 : vector<16x16xf32>
    %254 = arith.addf %249, %253 : vector<16x16xf32>
    %c34 = arith.constant 34 : index
    %255 = memref.load %arg3[%c34] : memref<98xf32, #tpu.memory_space<smem>>
    %256 = vector.extract_strided_slice %234 {offsets = [4, 0], sizes = [16, 16], strides = [1, 1]} : vector<22x16xf32> to vector<16x16xf32>
    %257 = vector.broadcast %255 : f32 to vector<16x16xf32>
    %258 = arith.mulf %257, %256 : vector<16x16xf32>
    %259 = arith.addf %254, %258 : vector<16x16xf32>
    %c41 = arith.constant 41 : index
    %260 = memref.load %arg3[%c41] : memref<98xf32, #tpu.memory_space<smem>>
    %261 = vector.extract_strided_slice %234 {offsets = [5, 0], sizes = [16, 16], strides = [1, 1]} : vector<22x16xf32> to vector<16x16xf32>
    %262 = vector.broadcast %260 : f32 to vector<16x16xf32>
    %263 = arith.mulf %262, %261 : vector<16x16xf32>
    %264 = arith.addf %259, %263 : vector<16x16xf32>
    %c48 = arith.constant 48 : index
    %265 = memref.load %arg3[%c48] : memref<98xf32, #tpu.memory_space<smem>>
    %266 = vector.extract_strided_slice %234 {offsets = [6, 0], sizes = [16, 16], strides = [1, 1]} : vector<22x16xf32> to vector<16x16xf32>
    %267 = vector.broadcast %265 : f32 to vector<16x16xf32>
    %268 = arith.mulf %267, %266 : vector<16x16xf32>
    %269 = arith.addf %264, %268 : vector<16x16xf32>
    %c0_22 = arith.constant 0 : index
    %c1_23 = arith.constant 1 : index
    %270 = arith.index_cast %1 : i32 to index
    %c0_24 = arith.constant 0 : index
    %271 = vector.load %arg2[%c0_22, %c1_23, %270, %c0_24] : memref<1x2x22x22xf32, #tpu.memory_space<vmem>>, vector<1x1x22x16xf32>
    %272 = vector.shape_cast %271 : vector<1x1x22x16xf32> to vector<22x16xf32>
    %c49 = arith.constant 49 : index
    %273 = memref.load %arg3[%c49] : memref<98xf32, #tpu.memory_space<smem>>
    %274 = vector.extract_strided_slice %272 {offsets = [0, 0], sizes = [16, 16], strides = [1, 1]} : vector<22x16xf32> to vector<16x16xf32>
    %275 = vector.broadcast %273 : f32 to vector<16x16xf32>
    %276 = arith.mulf %275, %274 : vector<16x16xf32>
    %277 = arith.addf %269, %276 : vector<16x16xf32>
    %c56 = arith.constant 56 : index
    %278 = memref.load %arg3[%c56] : memref<98xf32, #tpu.memory_space<smem>>
    %279 = vector.extract_strided_slice %272 {offsets = [1, 0], sizes = [16, 16], strides = [1, 1]} : vector<22x16xf32> to vector<16x16xf32>
    %280 = vector.broadcast %278 : f32 to vector<16x16xf32>
    %281 = arith.mulf %280, %279 : vector<16x16xf32>
    %282 = arith.addf %277, %281 : vector<16x16xf32>
    %c63 = arith.constant 63 : index
    %283 = memref.load %arg3[%c63] : memref<98xf32, #tpu.memory_space<smem>>
    %284 = vector.extract_strided_slice %272 {offsets = [2, 0], sizes = [16, 16], strides = [1, 1]} : vector<22x16xf32> to vector<16x16xf32>
    %285 = vector.broadcast %283 : f32 to vector<16x16xf32>
    %286 = arith.mulf %285, %284 : vector<16x16xf32>
    %287 = arith.addf %282, %286 : vector<16x16xf32>
    %c70 = arith.constant 70 : index
    %288 = memref.load %arg3[%c70] : memref<98xf32, #tpu.memory_space<smem>>
    %289 = vector.extract_strided_slice %272 {offsets = [3, 0], sizes = [16, 16], strides = [1, 1]} : vector<22x16xf32> to vector<16x16xf32>
    %290 = vector.broadcast %288 : f32 to vector<16x16xf32>
    %291 = arith.mulf %290, %289 : vector<16x16xf32>
    %292 = arith.addf %287, %291 : vector<16x16xf32>
    %c77 = arith.constant 77 : index
    %293 = memref.load %arg3[%c77] : memref<98xf32, #tpu.memory_space<smem>>
    %294 = vector.extract_strided_slice %272 {offsets = [4, 0], sizes = [16, 16], strides = [1, 1]} : vector<22x16xf32> to vector<16x16xf32>
    %295 = vector.broadcast %293 : f32 to vector<16x16xf32>
    %296 = arith.mulf %295, %294 : vector<16x16xf32>
    %297 = arith.addf %292, %296 : vector<16x16xf32>
    %c84 = arith.constant 84 : index
    %298 = memref.load %arg3[%c84] : memref<98xf32, #tpu.memory_space<smem>>
    %299 = vector.extract_strided_slice %272 {offsets = [5, 0], sizes = [16, 16], strides = [1, 1]} : vector<22x16xf32> to vector<16x16xf32>
    %300 = vector.broadcast %298 : f32 to vector<16x16xf32>
    %301 = arith.mulf %300, %299 : vector<16x16xf32>
    %302 = arith.addf %297, %301 : vector<16x16xf32>
    %c91 = arith.constant 91 : index
    %303 = memref.load %arg3[%c91] : memref<98xf32, #tpu.memory_space<smem>>
    %304 = vector.extract_strided_slice %272 {offsets = [6, 0], sizes = [16, 16], strides = [1, 1]} : vector<22x16xf32> to vector<16x16xf32>
    %305 = vector.broadcast %303 : f32 to vector<16x16xf32>
    %306 = arith.mulf %305, %304 : vector<16x16xf32>
    %307 = arith.addf %302, %306 : vector<16x16xf32>
    %c0_25 = arith.constant 0 : index
    %c1_26 = arith.constant 1 : index
    %308 = arith.index_cast %1 : i32 to index
    %c1_27 = arith.constant 1 : index
    %309 = vector.load %arg2[%c0_25, %c1_26, %308, %c1_27] : memref<1x2x22x22xf32, #tpu.memory_space<vmem>>, vector<1x1x22x16xf32>
    %310 = vector.shape_cast %309 : vector<1x1x22x16xf32> to vector<22x16xf32>
    %c50 = arith.constant 50 : index
    %311 = memref.load %arg3[%c50] : memref<98xf32, #tpu.memory_space<smem>>
    %312 = vector.extract_strided_slice %310 {offsets = [0, 0], sizes = [16, 16], strides = [1, 1]} : vector<22x16xf32> to vector<16x16xf32>
    %313 = vector.broadcast %311 : f32 to vector<16x16xf32>
    %314 = arith.mulf %313, %312 : vector<16x16xf32>
    %315 = arith.addf %307, %314 : vector<16x16xf32>
    %c57 = arith.constant 57 : index
    %316 = memref.load %arg3[%c57] : memref<98xf32, #tpu.memory_space<smem>>
    %317 = vector.extract_strided_slice %310 {offsets = [1, 0], sizes = [16, 16], strides = [1, 1]} : vector<22x16xf32> to vector<16x16xf32>
    %318 = vector.broadcast %316 : f32 to vector<16x16xf32>
    %319 = arith.mulf %318, %317 : vector<16x16xf32>
    %320 = arith.addf %315, %319 : vector<16x16xf32>
    %c64 = arith.constant 64 : index
    %321 = memref.load %arg3[%c64] : memref<98xf32, #tpu.memory_space<smem>>
    %322 = vector.extract_strided_slice %310 {offsets = [2, 0], sizes = [16, 16], strides = [1, 1]} : vector<22x16xf32> to vector<16x16xf32>
    %323 = vector.broadcast %321 : f32 to vector<16x16xf32>
    %324 = arith.mulf %323, %322 : vector<16x16xf32>
    %325 = arith.addf %320, %324 : vector<16x16xf32>
    %c71 = arith.constant 71 : index
    %326 = memref.load %arg3[%c71] : memref<98xf32, #tpu.memory_space<smem>>
    %327 = vector.extract_strided_slice %310 {offsets = [3, 0], sizes = [16, 16], strides = [1, 1]} : vector<22x16xf32> to vector<16x16xf32>
    %328 = vector.broadcast %326 : f32 to vector<16x16xf32>
    %329 = arith.mulf %328, %327 : vector<16x16xf32>
    %330 = arith.addf %325, %329 : vector<16x16xf32>
    %c78 = arith.constant 78 : index
    %331 = memref.load %arg3[%c78] : memref<98xf32, #tpu.memory_space<smem>>
    %332 = vector.extract_strided_slice %310 {offsets = [4, 0], sizes = [16, 16], strides = [1, 1]} : vector<22x16xf32> to vector<16x16xf32>
    %333 = vector.broadcast %331 : f32 to vector<16x16xf32>
    %334 = arith.mulf %333, %332 : vector<16x16xf32>
    %335 = arith.addf %330, %334 : vector<16x16xf32>
    %c85 = arith.constant 85 : index
    %336 = memref.load %arg3[%c85] : memref<98xf32, #tpu.memory_space<smem>>
    %337 = vector.extract_strided_slice %310 {offsets = [5, 0], sizes = [16, 16], strides = [1, 1]} : vector<22x16xf32> to vector<16x16xf32>
    %338 = vector.broadcast %336 : f32 to vector<16x16xf32>
    %339 = arith.mulf %338, %337 : vector<16x16xf32>
    %340 = arith.addf %335, %339 : vector<16x16xf32>
    %c92 = arith.constant 92 : index
    %341 = memref.load %arg3[%c92] : memref<98xf32, #tpu.memory_space<smem>>
    %342 = vector.extract_strided_slice %310 {offsets = [6, 0], sizes = [16, 16], strides = [1, 1]} : vector<22x16xf32> to vector<16x16xf32>
    %343 = vector.broadcast %341 : f32 to vector<16x16xf32>
    %344 = arith.mulf %343, %342 : vector<16x16xf32>
    %345 = arith.addf %340, %344 : vector<16x16xf32>
    %c0_28 = arith.constant 0 : index
    %c1_29 = arith.constant 1 : index
    %346 = arith.index_cast %1 : i32 to index
    %c2_30 = arith.constant 2 : index
    %347 = vector.load %arg2[%c0_28, %c1_29, %346, %c2_30] : memref<1x2x22x22xf32, #tpu.memory_space<vmem>>, vector<1x1x22x16xf32>
    %348 = vector.shape_cast %347 : vector<1x1x22x16xf32> to vector<22x16xf32>
    %c51 = arith.constant 51 : index
    %349 = memref.load %arg3[%c51] : memref<98xf32, #tpu.memory_space<smem>>
    %350 = vector.extract_strided_slice %348 {offsets = [0, 0], sizes = [16, 16], strides = [1, 1]} : vector<22x16xf32> to vector<16x16xf32>
    %351 = vector.broadcast %349 : f32 to vector<16x16xf32>
    %352 = arith.mulf %351, %350 : vector<16x16xf32>
    %353 = arith.addf %345, %352 : vector<16x16xf32>
    %c58 = arith.constant 58 : index
    %354 = memref.load %arg3[%c58] : memref<98xf32, #tpu.memory_space<smem>>
    %355 = vector.extract_strided_slice %348 {offsets = [1, 0], sizes = [16, 16], strides = [1, 1]} : vector<22x16xf32> to vector<16x16xf32>
    %356 = vector.broadcast %354 : f32 to vector<16x16xf32>
    %357 = arith.mulf %356, %355 : vector<16x16xf32>
    %358 = arith.addf %353, %357 : vector<16x16xf32>
    %c65 = arith.constant 65 : index
    %359 = memref.load %arg3[%c65] : memref<98xf32, #tpu.memory_space<smem>>
    %360 = vector.extract_strided_slice %348 {offsets = [2, 0], sizes = [16, 16], strides = [1, 1]} : vector<22x16xf32> to vector<16x16xf32>
    %361 = vector.broadcast %359 : f32 to vector<16x16xf32>
    %362 = arith.mulf %361, %360 : vector<16x16xf32>
    %363 = arith.addf %358, %362 : vector<16x16xf32>
    %c72 = arith.constant 72 : index
    %364 = memref.load %arg3[%c72] : memref<98xf32, #tpu.memory_space<smem>>
    %365 = vector.extract_strided_slice %348 {offsets = [3, 0], sizes = [16, 16], strides = [1, 1]} : vector<22x16xf32> to vector<16x16xf32>
    %366 = vector.broadcast %364 : f32 to vector<16x16xf32>
    %367 = arith.mulf %366, %365 : vector<16x16xf32>
    %368 = arith.addf %363, %367 : vector<16x16xf32>
    %c79 = arith.constant 79 : index
    %369 = memref.load %arg3[%c79] : memref<98xf32, #tpu.memory_space<smem>>
    %370 = vector.extract_strided_slice %348 {offsets = [4, 0], sizes = [16, 16], strides = [1, 1]} : vector<22x16xf32> to vector<16x16xf32>
    %371 = vector.broadcast %369 : f32 to vector<16x16xf32>
    %372 = arith.mulf %371, %370 : vector<16x16xf32>
    %373 = arith.addf %368, %372 : vector<16x16xf32>
    %c86 = arith.constant 86 : index
    %374 = memref.load %arg3[%c86] : memref<98xf32, #tpu.memory_space<smem>>
    %375 = vector.extract_strided_slice %348 {offsets = [5, 0], sizes = [16, 16], strides = [1, 1]} : vector<22x16xf32> to vector<16x16xf32>
    %376 = vector.broadcast %374 : f32 to vector<16x16xf32>
    %377 = arith.mulf %376, %375 : vector<16x16xf32>
    %378 = arith.addf %373, %377 : vector<16x16xf32>
    %c93 = arith.constant 93 : index
    %379 = memref.load %arg3[%c93] : memref<98xf32, #tpu.memory_space<smem>>
    %380 = vector.extract_strided_slice %348 {offsets = [6, 0], sizes = [16, 16], strides = [1, 1]} : vector<22x16xf32> to vector<16x16xf32>
    %381 = vector.broadcast %379 : f32 to vector<16x16xf32>
    %382 = arith.mulf %381, %380 : vector<16x16xf32>
    %383 = arith.addf %378, %382 : vector<16x16xf32>
    %c0_31 = arith.constant 0 : index
    %c1_32 = arith.constant 1 : index
    %384 = arith.index_cast %1 : i32 to index
    %c3_33 = arith.constant 3 : index
    %385 = vector.load %arg2[%c0_31, %c1_32, %384, %c3_33] : memref<1x2x22x22xf32, #tpu.memory_space<vmem>>, vector<1x1x22x16xf32>
    %386 = vector.shape_cast %385 : vector<1x1x22x16xf32> to vector<22x16xf32>
    %c52 = arith.constant 52 : index
    %387 = memref.load %arg3[%c52] : memref<98xf32, #tpu.memory_space<smem>>
    %388 = vector.extract_strided_slice %386 {offsets = [0, 0], sizes = [16, 16], strides = [1, 1]} : vector<22x16xf32> to vector<16x16xf32>
    %389 = vector.broadcast %387 : f32 to vector<16x16xf32>
    %390 = arith.mulf %389, %388 : vector<16x16xf32>
    %391 = arith.addf %383, %390 : vector<16x16xf32>
    %c59 = arith.constant 59 : index
    %392 = memref.load %arg3[%c59] : memref<98xf32, #tpu.memory_space<smem>>
    %393 = vector.extract_strided_slice %386 {offsets = [1, 0], sizes = [16, 16], strides = [1, 1]} : vector<22x16xf32> to vector<16x16xf32>
    %394 = vector.broadcast %392 : f32 to vector<16x16xf32>
    %395 = arith.mulf %394, %393 : vector<16x16xf32>
    %396 = arith.addf %391, %395 : vector<16x16xf32>
    %c66 = arith.constant 66 : index
    %397 = memref.load %arg3[%c66] : memref<98xf32, #tpu.memory_space<smem>>
    %398 = vector.extract_strided_slice %386 {offsets = [2, 0], sizes = [16, 16], strides = [1, 1]} : vector<22x16xf32> to vector<16x16xf32>
    %399 = vector.broadcast %397 : f32 to vector<16x16xf32>
    %400 = arith.mulf %399, %398 : vector<16x16xf32>
    %401 = arith.addf %396, %400 : vector<16x16xf32>
    %c73 = arith.constant 73 : index
    %402 = memref.load %arg3[%c73] : memref<98xf32, #tpu.memory_space<smem>>
    %403 = vector.extract_strided_slice %386 {offsets = [3, 0], sizes = [16, 16], strides = [1, 1]} : vector<22x16xf32> to vector<16x16xf32>
    %404 = vector.broadcast %402 : f32 to vector<16x16xf32>
    %405 = arith.mulf %404, %403 : vector<16x16xf32>
    %406 = arith.addf %401, %405 : vector<16x16xf32>
    %c80 = arith.constant 80 : index
    %407 = memref.load %arg3[%c80] : memref<98xf32, #tpu.memory_space<smem>>
    %408 = vector.extract_strided_slice %386 {offsets = [4, 0], sizes = [16, 16], strides = [1, 1]} : vector<22x16xf32> to vector<16x16xf32>
    %409 = vector.broadcast %407 : f32 to vector<16x16xf32>
    %410 = arith.mulf %409, %408 : vector<16x16xf32>
    %411 = arith.addf %406, %410 : vector<16x16xf32>
    %c87 = arith.constant 87 : index
    %412 = memref.load %arg3[%c87] : memref<98xf32, #tpu.memory_space<smem>>
    %413 = vector.extract_strided_slice %386 {offsets = [5, 0], sizes = [16, 16], strides = [1, 1]} : vector<22x16xf32> to vector<16x16xf32>
    %414 = vector.broadcast %412 : f32 to vector<16x16xf32>
    %415 = arith.mulf %414, %413 : vector<16x16xf32>
    %416 = arith.addf %411, %415 : vector<16x16xf32>
    %c94 = arith.constant 94 : index
    %417 = memref.load %arg3[%c94] : memref<98xf32, #tpu.memory_space<smem>>
    %418 = vector.extract_strided_slice %386 {offsets = [6, 0], sizes = [16, 16], strides = [1, 1]} : vector<22x16xf32> to vector<16x16xf32>
    %419 = vector.broadcast %417 : f32 to vector<16x16xf32>
    %420 = arith.mulf %419, %418 : vector<16x16xf32>
    %421 = arith.addf %416, %420 : vector<16x16xf32>
    %c0_34 = arith.constant 0 : index
    %c1_35 = arith.constant 1 : index
    %422 = arith.index_cast %1 : i32 to index
    %c4_36 = arith.constant 4 : index
    %423 = vector.load %arg2[%c0_34, %c1_35, %422, %c4_36] : memref<1x2x22x22xf32, #tpu.memory_space<vmem>>, vector<1x1x22x16xf32>
    %424 = vector.shape_cast %423 : vector<1x1x22x16xf32> to vector<22x16xf32>
    %c53 = arith.constant 53 : index
    %425 = memref.load %arg3[%c53] : memref<98xf32, #tpu.memory_space<smem>>
    %426 = vector.extract_strided_slice %424 {offsets = [0, 0], sizes = [16, 16], strides = [1, 1]} : vector<22x16xf32> to vector<16x16xf32>
    %427 = vector.broadcast %425 : f32 to vector<16x16xf32>
    %428 = arith.mulf %427, %426 : vector<16x16xf32>
    %429 = arith.addf %421, %428 : vector<16x16xf32>
    %c60 = arith.constant 60 : index
    %430 = memref.load %arg3[%c60] : memref<98xf32, #tpu.memory_space<smem>>
    %431 = vector.extract_strided_slice %424 {offsets = [1, 0], sizes = [16, 16], strides = [1, 1]} : vector<22x16xf32> to vector<16x16xf32>
    %432 = vector.broadcast %430 : f32 to vector<16x16xf32>
    %433 = arith.mulf %432, %431 : vector<16x16xf32>
    %434 = arith.addf %429, %433 : vector<16x16xf32>
    %c67 = arith.constant 67 : index
    %435 = memref.load %arg3[%c67] : memref<98xf32, #tpu.memory_space<smem>>
    %436 = vector.extract_strided_slice %424 {offsets = [2, 0], sizes = [16, 16], strides = [1, 1]} : vector<22x16xf32> to vector<16x16xf32>
    %437 = vector.broadcast %435 : f32 to vector<16x16xf32>
    %438 = arith.mulf %437, %436 : vector<16x16xf32>
    %439 = arith.addf %434, %438 : vector<16x16xf32>
    %c74 = arith.constant 74 : index
    %440 = memref.load %arg3[%c74] : memref<98xf32, #tpu.memory_space<smem>>
    %441 = vector.extract_strided_slice %424 {offsets = [3, 0], sizes = [16, 16], strides = [1, 1]} : vector<22x16xf32> to vector<16x16xf32>
    %442 = vector.broadcast %440 : f32 to vector<16x16xf32>
    %443 = arith.mulf %442, %441 : vector<16x16xf32>
    %444 = arith.addf %439, %443 : vector<16x16xf32>
    %c81 = arith.constant 81 : index
    %445 = memref.load %arg3[%c81] : memref<98xf32, #tpu.memory_space<smem>>
    %446 = vector.extract_strided_slice %424 {offsets = [4, 0], sizes = [16, 16], strides = [1, 1]} : vector<22x16xf32> to vector<16x16xf32>
    %447 = vector.broadcast %445 : f32 to vector<16x16xf32>
    %448 = arith.mulf %447, %446 : vector<16x16xf32>
    %449 = arith.addf %444, %448 : vector<16x16xf32>
    %c88 = arith.constant 88 : index
    %450 = memref.load %arg3[%c88] : memref<98xf32, #tpu.memory_space<smem>>
    %451 = vector.extract_strided_slice %424 {offsets = [5, 0], sizes = [16, 16], strides = [1, 1]} : vector<22x16xf32> to vector<16x16xf32>
    %452 = vector.broadcast %450 : f32 to vector<16x16xf32>
    %453 = arith.mulf %452, %451 : vector<16x16xf32>
    %454 = arith.addf %449, %453 : vector<16x16xf32>
    %c95 = arith.constant 95 : index
    %455 = memref.load %arg3[%c95] : memref<98xf32, #tpu.memory_space<smem>>
    %456 = vector.extract_strided_slice %424 {offsets = [6, 0], sizes = [16, 16], strides = [1, 1]} : vector<22x16xf32> to vector<16x16xf32>
    %457 = vector.broadcast %455 : f32 to vector<16x16xf32>
    %458 = arith.mulf %457, %456 : vector<16x16xf32>
    %459 = arith.addf %454, %458 : vector<16x16xf32>
    %c0_37 = arith.constant 0 : index
    %c1_38 = arith.constant 1 : index
    %460 = arith.index_cast %1 : i32 to index
    %c5_39 = arith.constant 5 : index
    %461 = vector.load %arg2[%c0_37, %c1_38, %460, %c5_39] : memref<1x2x22x22xf32, #tpu.memory_space<vmem>>, vector<1x1x22x16xf32>
    %462 = vector.shape_cast %461 : vector<1x1x22x16xf32> to vector<22x16xf32>
    %c54 = arith.constant 54 : index
    %463 = memref.load %arg3[%c54] : memref<98xf32, #tpu.memory_space<smem>>
    %464 = vector.extract_strided_slice %462 {offsets = [0, 0], sizes = [16, 16], strides = [1, 1]} : vector<22x16xf32> to vector<16x16xf32>
    %465 = vector.broadcast %463 : f32 to vector<16x16xf32>
    %466 = arith.mulf %465, %464 : vector<16x16xf32>
    %467 = arith.addf %459, %466 : vector<16x16xf32>
    %c61 = arith.constant 61 : index
    %468 = memref.load %arg3[%c61] : memref<98xf32, #tpu.memory_space<smem>>
    %469 = vector.extract_strided_slice %462 {offsets = [1, 0], sizes = [16, 16], strides = [1, 1]} : vector<22x16xf32> to vector<16x16xf32>
    %470 = vector.broadcast %468 : f32 to vector<16x16xf32>
    %471 = arith.mulf %470, %469 : vector<16x16xf32>
    %472 = arith.addf %467, %471 : vector<16x16xf32>
    %c68 = arith.constant 68 : index
    %473 = memref.load %arg3[%c68] : memref<98xf32, #tpu.memory_space<smem>>
    %474 = vector.extract_strided_slice %462 {offsets = [2, 0], sizes = [16, 16], strides = [1, 1]} : vector<22x16xf32> to vector<16x16xf32>
    %475 = vector.broadcast %473 : f32 to vector<16x16xf32>
    %476 = arith.mulf %475, %474 : vector<16x16xf32>
    %477 = arith.addf %472, %476 : vector<16x16xf32>
    %c75 = arith.constant 75 : index
    %478 = memref.load %arg3[%c75] : memref<98xf32, #tpu.memory_space<smem>>
    %479 = vector.extract_strided_slice %462 {offsets = [3, 0], sizes = [16, 16], strides = [1, 1]} : vector<22x16xf32> to vector<16x16xf32>
    %480 = vector.broadcast %478 : f32 to vector<16x16xf32>
    %481 = arith.mulf %480, %479 : vector<16x16xf32>
    %482 = arith.addf %477, %481 : vector<16x16xf32>
    %c82 = arith.constant 82 : index
    %483 = memref.load %arg3[%c82] : memref<98xf32, #tpu.memory_space<smem>>
    %484 = vector.extract_strided_slice %462 {offsets = [4, 0], sizes = [16, 16], strides = [1, 1]} : vector<22x16xf32> to vector<16x16xf32>
    %485 = vector.broadcast %483 : f32 to vector<16x16xf32>
    %486 = arith.mulf %485, %484 : vector<16x16xf32>
    %487 = arith.addf %482, %486 : vector<16x16xf32>
    %c89 = arith.constant 89 : index
    %488 = memref.load %arg3[%c89] : memref<98xf32, #tpu.memory_space<smem>>
    %489 = vector.extract_strided_slice %462 {offsets = [5, 0], sizes = [16, 16], strides = [1, 1]} : vector<22x16xf32> to vector<16x16xf32>
    %490 = vector.broadcast %488 : f32 to vector<16x16xf32>
    %491 = arith.mulf %490, %489 : vector<16x16xf32>
    %492 = arith.addf %487, %491 : vector<16x16xf32>
    %c96 = arith.constant 96 : index
    %493 = memref.load %arg3[%c96] : memref<98xf32, #tpu.memory_space<smem>>
    %494 = vector.extract_strided_slice %462 {offsets = [6, 0], sizes = [16, 16], strides = [1, 1]} : vector<22x16xf32> to vector<16x16xf32>
    %495 = vector.broadcast %493 : f32 to vector<16x16xf32>
    %496 = arith.mulf %495, %494 : vector<16x16xf32>
    %497 = arith.addf %492, %496 : vector<16x16xf32>
    %c0_40 = arith.constant 0 : index
    %c1_41 = arith.constant 1 : index
    %498 = arith.index_cast %1 : i32 to index
    %c6_42 = arith.constant 6 : index
    %499 = vector.load %arg2[%c0_40, %c1_41, %498, %c6_42] : memref<1x2x22x22xf32, #tpu.memory_space<vmem>>, vector<1x1x22x16xf32>
    %500 = vector.shape_cast %499 : vector<1x1x22x16xf32> to vector<22x16xf32>
    %c55 = arith.constant 55 : index
    %501 = memref.load %arg3[%c55] : memref<98xf32, #tpu.memory_space<smem>>
    %502 = vector.extract_strided_slice %500 {offsets = [0, 0], sizes = [16, 16], strides = [1, 1]} : vector<22x16xf32> to vector<16x16xf32>
    %503 = vector.broadcast %501 : f32 to vector<16x16xf32>
    %504 = arith.mulf %503, %502 : vector<16x16xf32>
    %505 = arith.addf %497, %504 : vector<16x16xf32>
    %c62 = arith.constant 62 : index
    %506 = memref.load %arg3[%c62] : memref<98xf32, #tpu.memory_space<smem>>
    %507 = vector.extract_strided_slice %500 {offsets = [1, 0], sizes = [16, 16], strides = [1, 1]} : vector<22x16xf32> to vector<16x16xf32>
    %508 = vector.broadcast %506 : f32 to vector<16x16xf32>
    %509 = arith.mulf %508, %507 : vector<16x16xf32>
    %510 = arith.addf %505, %509 : vector<16x16xf32>
    %c69 = arith.constant 69 : index
    %511 = memref.load %arg3[%c69] : memref<98xf32, #tpu.memory_space<smem>>
    %512 = vector.extract_strided_slice %500 {offsets = [2, 0], sizes = [16, 16], strides = [1, 1]} : vector<22x16xf32> to vector<16x16xf32>
    %513 = vector.broadcast %511 : f32 to vector<16x16xf32>
    %514 = arith.mulf %513, %512 : vector<16x16xf32>
    %515 = arith.addf %510, %514 : vector<16x16xf32>
    %c76 = arith.constant 76 : index
    %516 = memref.load %arg3[%c76] : memref<98xf32, #tpu.memory_space<smem>>
    %517 = vector.extract_strided_slice %500 {offsets = [3, 0], sizes = [16, 16], strides = [1, 1]} : vector<22x16xf32> to vector<16x16xf32>
    %518 = vector.broadcast %516 : f32 to vector<16x16xf32>
    %519 = arith.mulf %518, %517 : vector<16x16xf32>
    %520 = arith.addf %515, %519 : vector<16x16xf32>
    %c83 = arith.constant 83 : index
    %521 = memref.load %arg3[%c83] : memref<98xf32, #tpu.memory_space<smem>>
    %522 = vector.extract_strided_slice %500 {offsets = [4, 0], sizes = [16, 16], strides = [1, 1]} : vector<22x16xf32> to vector<16x16xf32>
    %523 = vector.broadcast %521 : f32 to vector<16x16xf32>
    %524 = arith.mulf %523, %522 : vector<16x16xf32>
    %525 = arith.addf %520, %524 : vector<16x16xf32>
    %c90 = arith.constant 90 : index
    %526 = memref.load %arg3[%c90] : memref<98xf32, #tpu.memory_space<smem>>
    %527 = vector.extract_strided_slice %500 {offsets = [5, 0], sizes = [16, 16], strides = [1, 1]} : vector<22x16xf32> to vector<16x16xf32>
    %528 = vector.broadcast %526 : f32 to vector<16x16xf32>
    %529 = arith.mulf %528, %527 : vector<16x16xf32>
    %530 = arith.addf %525, %529 : vector<16x16xf32>
    %c97 = arith.constant 97 : index
    %531 = memref.load %arg3[%c97] : memref<98xf32, #tpu.memory_space<smem>>
    %532 = vector.extract_strided_slice %500 {offsets = [6, 0], sizes = [16, 16], strides = [1, 1]} : vector<22x16xf32> to vector<16x16xf32>
    %533 = vector.broadcast %531 : f32 to vector<16x16xf32>
    %534 = arith.mulf %533, %532 : vector<16x16xf32>
    %535 = arith.addf %530, %534 : vector<16x16xf32>
    %536 = arith.negf %535 : vector<16x16xf32>
    %537 = math.exp %536 : vector<16x16xf32>
    %cst = arith.constant 1.000000e+00 : f32
    %538 = vector.broadcast %cst : f32 to vector<16x16xf32>
    %539 = arith.addf %538, %537 : vector<16x16xf32>
    %540 = arith.divf %538, %539 : vector<16x16xf32>
    %c0_43 = arith.constant 0 : index
    %c0_44 = arith.constant 0 : index
    %c0_45 = arith.constant 0 : index
    %541 = vector.load %arg5[%c0_43, %c0_44, %c0_45] : memref<1x16x16xf32, #tpu.memory_space<vmem>>, vector<1x16x16xf32>
    %542 = vector.shape_cast %541 : vector<1x16x16xf32> to vector<16x16xf32>
    %543 = vector.shape_cast %540 : vector<16x16xf32> to vector<1x16x16xf32>
    tpu.vector_store %arg5[%c0_43, %c0_44, %c0_45], %543 {strides = array<i32>} : memref<1x16x16xf32, #tpu.memory_space<vmem>>, vector<1x16x16xf32>,
    return
  }
  func.func @transform_0(%arg0: i32, %arg1: i32) -> (i32, i32, i32, i32) {
    %c0_i32 = arith.constant 0 : i32
    %c0_i32_0 = arith.constant 0 : i32
    %c0_i32_1 = arith.constant 0 : i32
    %c0_i32_2 = arith.constant 0 : i32
    return %arg0, %c0_i32, %c0_i32_0, %c0_i32_1 : i32, i32, i32, i32
  }
  func.func @transform_1(%arg0: i32, %arg1: i32) -> i32 {
    %c0_i32 = arith.constant 0 : i32
    %c0_i32_0 = arith.constant 0 : i32
    return %c0_i32 : i32
  }
  func.func @transform_2(%arg0: i32, %arg1: i32) -> i32 {
    %c0_i32 = arith.constant 0 : i32
    %c0_i32_0 = arith.constant 0 : i32
    return %c0_i32 : i32
  }
  func.func @transform_3(%arg0: i32, %arg1: i32) -> (i32, i32, i32) {
    %c0_i32 = arith.constant 0 : i32
    %c0_i32_0 = arith.constant 0 : i32
    return %arg0, %arg1, %c0_i32 : i32, i32, i32
  }
}

</mosaic_0001>

<llo_original>
// kernel: spatial_gate.3
$region0: #{spatial_gate.3}
  #allocation0 [shape = 'u32[]', space=smem, size = 0x4, offset = 0x4, fixed_abs, tag = 'smem constant byte address 0x4 - core index']
  #allocation1 [shape = 'u32[144,128]{1,0:T(1,128)}', space=vmem, size = 0x12000, scoped, tag = 'internal scratch']
  %s0 = inlined_call_operand.vmem [shape: f32[2,4,256], index: 0, kind: input, shape index: {}]
  %s1 = inlined_call_operand.vmem [shape: f32[2,2,256], index: 1, kind: output, shape index: {}]
  %s2 = sld [smem:[#allocation0]]
  $region37: #{spatial_gate.3} parent=0
    _
  %s4 = ssub.s32 1, %s2
  %s5 = scalar_select 0, %s4, %s2
  loop: start=0, step=1, limit=4
  $region2: #{spatial_gate.3} parent=0 // loop_pre_header
    _
  $region3: #{spatial_gate.3} parent=0 // loop_header
    %s7 = sphi 0, %s11
    %p8 = scmp.ge.s32.totalorder %s7, 4
    %s14 = sphi 0, %s26
    %s15 = sphi 0, %s22
    %s16 = sphi 0, %s14
    %s17 = sphi 0, %s15
    %s18 = sphi 0, %s16
    %s19 = sphi 0, %s17
    %s31 = sphi 0, %s33
    %s34 = sphi 0, %s31
    %s35 = sphi 0, %s34
    %s51 = sphi 0, %s35
    %s59 = sphi 0, %s61
    %s62 = sphi 0, %s59
    %s63 = sphi 0, %s62
    %s79 = sphi 0, %s63
  $region4: #{spatial_gate.3} parent=0 // loop_header_branch
    %10 = sbr.rel (%p8) target = $region8
  $region5: #{spatial_gate.3} parent=0 // loop_body
    %s12 = ssub.s32 %s7, 1
    %s13 = ssub.s32 %s7, 2
    %s20 = sadd.s32 1, %s15
    %p21 = scmp.ge.s32.totalorder %s20, 1
    %s22 = scalar_select %p21, 0, %s20
    %s23 = sadd.s32 1, %s14
    %s24 = scalar_select %p21, %s23, %s14
    %p25 = scmp.ge.s32.totalorder %s24, 2
    %s26 = scalar_select %p25, 0, %s24
    %s27 = ssub.s32 %s14, %s26
    %s28 = ssub.s32 %s15, %s22
    %s29 = sor.u32 %s27, %s28
    %p30 = scmp.eq.s32.totalorder %s29, 0
    %s32 = sadd.s32 %s31, 1
    %s33 = scalar_select %p30, %s31, %s32
    %p36 = pneg %p30
    %p37 = scmp.eq.s32.totalorder %s7, 1
    %p38 = por %p36, %p37
    %p39 = scmp.ne.s32.totalorder %s31, %s34
    %p40 = scmp.eq.s32.totalorder %s7, 0
    %p41 = por %p39, %p40
    %p42 = scmp.ne.s32.totalorder %s31, %s34
    %p43 = scmp.eq.s32.totalorder %s12, 1
    %p44 = por %p42, %p43
    %p45 = scmp.ne.s32.totalorder %s34, %s35
    %p46 = scmp.eq.s32.totalorder %s12, 0
    %p47 = por %p45, %p46
    %p48 = scmp.ne.s32.totalorder %s34, %s35
    %p49 = scmp.eq.s32.totalorder %s13, 1
    %p50 = por %p48, %p49
    %p52 = scmp.ne.s32.totalorder %s35, %s51
    %p53 = scmp.eq.s32.totalorder %s13, 0
    %p54 = por %p52, %p53
    %s55 = ssub.s32 %s14, %s26
    %s56 = ssub.s32 %s15, %s22
    %s57 = sor.u32 %s55, %s56
    %p58 = scmp.eq.s32.totalorder %s57, 0
    %s60 = sadd.s32 %s59, 1
    %s61 = scalar_select %p58, %s59, %s60
    %p64 = pneg %p58
    %p65 = scmp.eq.s32.totalorder %s7, 1
    %p66 = por %p64, %p65
    %p67 = scmp.ne.s32.totalorder %s59, %s62
    %p68 = scmp.eq.s32.totalorder %s7, 0
    %p69 = por %p67, %p68
    %p70 = scmp.ne.s32.totalorder %s59, %s62
    %p71 = scmp.eq.s32.totalorder %s12, 1
    %p72 = por %p70, %p71
    %p73 = scmp.ne.s32.totalorder %s62, %s63
    %p74 = scmp.eq.s32.totalorder %s12, 0
    %p75 = por %p73, %p74
    %p76 = scmp.ne.s32.totalorder %s62, %s63
    %p77 = scmp.eq.s32.totalorder %s13, 1
    %p78 = por %p76, %p77
    %p80 = scmp.ne.s32.totalorder %s63, %s79
    %p81 = scmp.eq.s32.totalorder %s13, 0
    %p82 = por %p80, %p81
    %p83 = scmp.le.s32.totalorder 1, %s7
    %p84 = scmp.lt.s32.totalorder %s7, 3
    %p85 = pnand %p83, %p84
    %p86 = pneg %p85
    // Predicated region
    $region9: #{spatial_gate.3} parent=5 // pred_check
      _
    $region10: #{spatial_gate.3} parent=5 // pred_check_branch
      %88 = sbr.rel (%p85) target = $region12
    $region11: #{spatial_gate.3} parent=5 // pred_region
      %s89 = ssub.s32 %s7, 1
    $region12: #{spatial_gate.3} parent=5 // pred_fallthru
      _
    %p90 = scmp.lt.s32.totalorder %s7, 2
    // Predicated region
    $region13: #{spatial_gate.3} parent=5 // pred_check
      %p91 = pneg %p90
    $region14: #{spatial_gate.3} parent=5 // pred_check_branch
      %93 = sbr.rel (%p91) target = $region16
    $region15: #{spatial_gate.3} parent=5 // pred_region
      // Predicated region
      $region17: #{spatial_gate.3} parent=15 // pred_check
        %p94 = pneg %p41
      $region18: #{spatial_gate.3} parent=15 // pred_check_branch
        %96 = sbr.rel (%p94) target = $region20
      $region19: #{spatial_gate.3} parent=15 // pred_region
        %s97 = smul.u32 2, %s15
        %p98 = scmp.lt.s32.totalorder %s14, 1
        %s99 = scalar_select %p98, %s14, 1
        %p100 = scmp.lt.s32.totalorder %s97, 1
        %s101 = scalar_select %p100, %s97, 1
        %s102 = smul.addr %s99, 2
        %s103 = sadd.s32 %s101, %s102
        %s104 = smul.addr %s103, 4
        %s105 = scalar_lea.vmem %s0, %s104
        %s106 = smul.u32 2, %s15
      $region20: #{spatial_gate.3} parent=15 // pred_fallthru
        _
    $region16: #{spatial_gate.3} parent=5 // pred_fallthru
      _
    %p107 = scmp.le.s32.totalorder 1, %s7
    %p108 = scmp.lt.s32.totalorder %s7, 3
    %p109 = pnand %p107, %p108
    %p110 = pneg %p109
    // Predicated region
    $region21: #{spatial_gate.3} parent=5 // pred_check
      _
    $region22: #{spatial_gate.3} parent=5 // pred_check_branch
      %112 = sbr.rel (%p109) target = $region24
    $region23: #{spatial_gate.3} parent=5 // pred_region
      %s113 = ssub.s32 %s7, 1
      %s114 = smul.u32 2, %s17
      %p115 = scmp.lt.s32.totalorder %s16, 1
      %s116 = scalar_select %p115, %s16, 1
      %p117 = scmp.lt.s32.totalorder %s114, 1
      %s118 = scalar_select %p117, %s114, 1
      %s119 = smul.addr %s116, 2
      %s120 = sadd.s32 %s118, %s119
      %s121 = smul.addr %s120, 4
      %s122 = scalar_lea.vmem %s0, %s121
      %p123 = pneg %p47
      %p124 = pneg %p44
      %p125 = pneg %p75
      %p126 = pneg %p72
      %s127 = smul.u32 2, %s17
      %p128 = scmp.lt.s32.totalorder %s16, 1
      %s129 = scalar_select %p128, %s16, 1
      %p130 = scmp.lt.s32.totalorder %s127, 1
      %s131 = scalar_select %p130, %s127, 1
      %s132 = smul.addr %s129, 2
      %s133 = sadd.s32 %s131, %s132
      %s134 = smul.addr %s133, 2
      %s135 = scalar_lea.vmem %s1, %s134
      %s136 = smul.u32 2, %s17
      %p137 = scmp.lt.s32.totalorder %s16, 1
      %s138 = scalar_select %p137, %s16, 1
      %p139 = scmp.lt.s32.totalorder %s136, 1
      %s140 = scalar_select %p139, %s136, 1
      %s141 = smul.addr %s138, 2
      %s142 = sadd.s32 %s140, %s141
      %s143 = smul.addr %s142, 4
      %s144 = scalar_lea.vmem %s0, %s143
      %s145 = smul.u32 2, %s17
      %s146 = smul.u32 2, %s17
      %p147 = scmp.lt.s32.totalorder %s16, 1
      %s148 = scalar_select %p147, %s16, 1
      %p149 = scmp.lt.s32.totalorder %s146, 1
      %s150 = scalar_select %p149, %s146, 1
      %s151 = smul.addr %s148, 2
      %s152 = sadd.s32 %s150, %s151
      %s153 = smul.addr %s152, 2
      %s154 = scalar_lea.vmem %s1, %s153
      %s155 = smul.u32 2, %s17
      %v156 = vld [vmem:[%s144] sm:$0xff]
      %v158 = vcombine.high %v156, %v156
      %vm160 = vcmask 1043456
      %v161 = vsel %vm160, %v156, -inf
      %v162 = vrot.slane %v161, 4
      %v163 = vmax.f32 %v161, %v162
      %v164 = vrot.slane %v163, 2
      %v165 = vmax.f32 %v163, %v164
      %v166 = vrot.slane %v165, 1
      %v167 = vmax.f32 %v165, %v166
      %v168 = vsel %vm160, %v158, -inf
      %v169 = vrot.slane %v168, 4
      %v170 = vmax.f32 %v168, %v169
      %v171 = vrot.slane %v170, 2
      %v172 = vmax.f32 %v170, %v171
      %v173 = vrot.slane %v172, 1
      %v174 = vmax.f32 %v172, %v173
      %v175 = vsel %vm160, %v156, 0.0
      %v176 = vrot.slane %v175, 4
      %v177 = vadd.f32 %v175, %v176
      %v178 = vrot.slane %v177, 2
      %v179 = vadd.f32 %v177, %v178
      %v180 = vrot.slane %v179, 1
      %v181 = vadd.f32 %v179, %v180
      %v182 = vsel %vm160, %v158, 0.0
      %v183 = vrot.slane %v182, 4
      %v184 = vadd.f32 %v182, %v183
      %v185 = vrot.slane %v184, 2
      %v186 = vadd.f32 %v184, %v185
      %v187 = vrot.slane %v186, 1
      %v188 = vadd.f32 %v186, %v187
      %v191 = vcombine.low %v167, %v174
      %v193 = vunpack.c.l.s4 1966171168
      %v194 = vunpack.c.0.s8 %v193
      %v195 = vlaneseq
      %v196 = vshrl.u32 %v195, 7
      %v197 = vsub.s32 %v194, %v196
      %v198 = vrot.slane %v191, %v197
      %v200 = vunpack.c.l.s4 1966171168
      %v201 = vunpack.c.0.s8 %v200
      %v202 = vlaneseq
      %v203 = vshrl.u32 %v202, 7
      %v204 = vsub.s32 %v201, %v203
      %v205 = vrot.slane %v198, %v204
      %v207 = vlaneseq
      %vm208 = vcmp.ge.s32.totalorder %v207, 0
      %vm209 = vcmp.lt.s32.totalorder %v207, 256
      %vm210 = vmand %vm208, %vm209
      %211 = vst.msk [vmem:[%s154] ss:$2 sm:$0x3] %vm210, %v205
      %v212 = vmul.f32 %v181, 0.25
      %v213 = vmul.f32 %v188, 0.25
      %v216 = vcombine.low %v212, %v213
      %v218 = vunpack.c.l.s4 1966171168
      %v219 = vunpack.c.0.s8 %v218
      %v220 = vlaneseq
      %v221 = vshrl.u32 %v220, 7
      %v222 = vsub.s32 %v219, %v221
      %v223 = vrot.slane %v216, %v222
      %v225 = vunpack.c.l.s4 1966171168
      %v226 = vunpack.c.0.s8 %v225
      %v227 = vlaneseq
      %v228 = vshrl.u32 %v227, 7
      %v229 = vsub.s32 %v226, %v228
      %v230 = vrot.slane %v223, %v229
      %s232 = scalar_lea.vmem %s154, 1
      %233 = vst.msk [vmem:[%s232] ss:$2 sm:$0x3] %vm210, %v230
      %s234 = smul.u32 2, %s17
      %p235 = scmp.lt.s32.totalorder %s16, 1
      %s236 = scalar_select %p235, %s16, 1
      %p237 = scmp.lt.s32.totalorder %s234, 1
      %s238 = scalar_select %p237, %s234, 1
      %s239 = smul.addr %s236, 2
      %s240 = sadd.s32 %s238, %s239
      %s241 = smul.addr %s240, 2
      %s242 = scalar_lea.vmem %s1, %s241
      // Predicated region
      $region25: #{spatial_gate.3} parent=23 // pred_check
        %p243 = pneg %p72
      $region26: #{spatial_gate.3} parent=23 // pred_check_branch
        %245 = sbr.rel (%p243) target = $region28
      $region27: #{spatial_gate.3} parent=23 // pred_region
        %s246 = smul.u32 2, %s17
      $region28: #{spatial_gate.3} parent=23 // pred_fallthru
        _
    $region24: #{spatial_gate.3} parent=5 // pred_fallthru
      _
    %p247 = scmp.le.s32.totalorder 2, %s7
    // Predicated region
    $region29: #{spatial_gate.3} parent=5 // pred_check
      %p248 = pneg %p247
    $region30: #{spatial_gate.3} parent=5 // pred_check_branch
      %250 = sbr.rel (%p248) target = $region32
    $region31: #{spatial_gate.3} parent=5 // pred_region
      %s251 = ssub.s32 %s7, 2
      // Predicated region
      $region33: #{spatial_gate.3} parent=31 // pred_check
        %p252 = pneg %p78
      $region34: #{spatial_gate.3} parent=31 // pred_check_branch
        %254 = sbr.rel (%p252) target = $region36
      $region35: #{spatial_gate.3} parent=31 // pred_region
        %s255 = smul.u32 2, %s19
        %p256 = scmp.lt.s32.totalorder %s18, 1
        %s257 = scalar_select %p256, %s18, 1
        %p258 = scmp.lt.s32.totalorder %s255, 1
        %s259 = scalar_select %p258, %s255, 1
        %s260 = smul.addr %s257, 2
        %s261 = sadd.s32 %s259, %s260
        %s262 = smul.addr %s261, 2
        %s263 = scalar_lea.vmem %s1, %s262
      $region36: #{spatial_gate.3} parent=31 // pred_fallthru
        _
    $region32: #{spatial_gate.3} parent=5 // pred_fallthru
      _
  $region6: #{spatial_gate.3} parent=0 // loop_footer
    %s11 = sadd.s32 1, %s7
  $region7: #{spatial_gate.3} parent=0 // loop_footer_branch
    %6 = sbr.rel target = $region3
  $region8: #{spatial_gate.3} parent=0 // loop_exit
    _

// kernel: spatial_gate.5
$region0: #{spatial_gate.5}
  #allocation0 [shape = 'u32[]', space=smem, size = 0x4, offset = 0x4, fixed_abs, tag = 'smem constant byte address 0x4 - core index']
  #allocation1 [shape = 'u32[144,128]{1,0:T(1,128)}', space=vmem, size = 0x12000, scoped, tag = 'internal scratch']
  %s0 = inlined_call_operand.vmem [shape: f32[2,4,256], index: 0, kind: input, shape index: {}]
  %s1 = inlined_call_operand.vmem [shape: f32[2,1,256], index: 1, kind: input, shape index: {}]
  %s2 = inlined_call_operand.vmem [shape: f32[2,4,256], index: 2, kind: output, shape index: {}]
  %s3 = sld [smem:[#allocation0]]
  $region41: #{spatial_gate.5} parent=0
    _
  %s5 = ssub.s32 1, %s3
  %s6 = scalar_select 0, %s5, %s3
  loop: start=0, step=1, limit=4
  $region2: #{spatial_gate.5} parent=0 // loop_pre_header
    _
  $region3: #{spatial_gate.5} parent=0 // loop_header
    %s8 = sphi 0, %s12
    %p9 = scmp.ge.s32.totalorder %s8, 4
    %s15 = sphi 0, %s34
    %s16 = sphi 0, %s30
    %s17 = sphi 0, %s26
    %s18 = sphi 0, %s15
    %s19 = sphi 0, %s16
    %s20 = sphi 0, %s17
    %s21 = sphi 0, %s18
    %s22 = sphi 0, %s19
    %s23 = sphi 0, %s20
    %s41 = sphi 0, %s43
    %s44 = sphi 0, %s41
    %s45 = sphi 0, %s44
    %s61 = sphi 0, %s45
    %s69 = sphi 0, %s71
    %s72 = sphi 0, %s69
    %s73 = sphi 0, %s72
    %s89 = sphi 0, %s73
    %s99 = sphi 0, %s101
    %s102 = sphi 0, %s99
    %s103 = sphi 0, %s102
    %s119 = sphi 0, %s103
  $region4: #{spatial_gate.5} parent=0 // loop_header_branch
    %11 = sbr.rel (%p9) target = $region8
  $region5: #{spatial_gate.5} parent=0 // loop_body
    %s13 = ssub.s32 %s8, 1
    %s14 = ssub.s32 %s8, 2
    %s24 = sadd.s32 1, %s17
    %p25 = scmp.ge.s32.totalorder %s24, 1
    %s26 = scalar_select %p25, 0, %s24
    %s27 = sadd.s32 1, %s16
    %s28 = scalar_select %p25, %s27, %s16
    %p29 = scmp.ge.s32.totalorder %s28, 1
    %s30 = scalar_select %p29, 0, %s28
    %s31 = sadd.s32 1, %s15
    %s32 = scalar_select %p29, %s31, %s15
    %p33 = scmp.ge.s32.totalorder %s32, 2
    %s34 = scalar_select %p33, 0, %s32
    %s35 = ssub.s32 %s15, %s34
    %s36 = ssub.s32 %s16, %s30
    %s37 = sor.u32 %s35, %s36
    %s38 = ssub.s32 %s17, %s26
    %s39 = sor.u32 %s37, %s38
    %p40 = scmp.eq.s32.totalorder %s39, 0
    %s42 = sadd.s32 %s41, 1
    %s43 = scalar_select %p40, %s41, %s42
    %p46 = pneg %p40
    %p47 = scmp.eq.s32.totalorder %s8, 1
    %p48 = por %p46, %p47
    %p49 = scmp.ne.s32.totalorder %s41, %s44
    %p50 = scmp.eq.s32.totalorder %s8, 0
    %p51 = por %p49, %p50
    %p52 = scmp.ne.s32.totalorder %s41, %s44
    %p53 = scmp.eq.s32.totalorder %s13, 1
    %p54 = por %p52, %p53
    %p55 = scmp.ne.s32.totalorder %s44, %s45
    %p56 = scmp.eq.s32.totalorder %s13, 0
    %p57 = por %p55, %p56
    %p58 = scmp.ne.s32.totalorder %s44, %s45
    %p59 = scmp.eq.s32.totalorder %s14, 1
    %p60 = por %p58, %p59
    %p62 = scmp.ne.s32.totalorder %s45, %s61
    %p63 = scmp.eq.s32.totalorder %s14, 0
    %p64 = por %p62, %p63
    %s65 = ssub.s32 %s15, %s34
    %s66 = ssub.s32 %s17, %s26
    %s67 = sor.u32 %s65, %s66
    %p68 = scmp.eq.s32.totalorder %s67, 0
    %s70 = sadd.s32 %s69, 1
    %s71 = scalar_select %p68, %s69, %s70
    %p74 = pneg %p68
    %p75 = scmp.eq.s32.totalorder %s8, 1
    %p76 = por %p74, %p75
    %p77 = scmp.ne.s32.totalorder %s69, %s72
    %p78 = scmp.eq.s32.totalorder %s8, 0
    %p79 = por %p77, %p78
    %p80 = scmp.ne.s32.totalorder %s69, %s72
    %p81 = scmp.eq.s32.totalorder %s13, 1
    %p82 = por %p80, %p81
    %p83 = scmp.ne.s32.totalorder %s72, %s73
    %p84 = scmp.eq.s32.totalorder %s13, 0
    %p85 = por %p83, %p84
    %p86 = scmp.ne.s32.totalorder %s72, %s73
    %p87 = scmp.eq.s32.totalorder %s14, 1
    %p88 = por %p86, %p87
    %p90 = scmp.ne.s32.totalorder %s73, %s89
    %p91 = scmp.eq.s32.totalorder %s14, 0
    %p92 = por %p90, %p91
    %s93 = ssub.s32 %s15, %s34
    %s94 = ssub.s32 %s16, %s30
    %s95 = sor.u32 %s93, %s94
    %s96 = ssub.s32 %s17, %s26
    %s97 = sor.u32 %s95, %s96
    %p98 = scmp.eq.s32.totalorder %s97, 0
    %s100 = sadd.s32 %s99, 1
    %s101 = scalar_select %p98, %s99, %s100
    %p104 = pneg %p98
    %p105 = scmp.eq.s32.totalorder %s8, 1
    %p106 = por %p104, %p105
    %p107 = scmp.ne.s32.totalorder %s99, %s102
    %p108 = scmp.eq.s32.totalorder %s8, 0
    %p109 = por %p107, %p108
    %p110 = scmp.ne.s32.totalorder %s99, %s102
    %p111 = scmp.eq.s32.totalorder %s13, 1
    %p112 = por %p110, %p111
    %p113 = scmp.ne.s32.totalorder %s102, %s103
    %p114 = scmp.eq.s32.totalorder %s13, 0
    %p115 = por %p113, %p114
    %p116 = scmp.ne.s32.totalorder %s102, %s103
    %p117 = scmp.eq.s32.totalorder %s14, 1
    %p118 = por %p116, %p117
    %p120 = scmp.ne.s32.totalorder %s103, %s119
    %p121 = scmp.eq.s32.totalorder %s14, 0
    %p122 = por %p120, %p121
    %p123 = scmp.le.s32.totalorder 1, %s8
    %p124 = scmp.lt.s32.totalorder %s8, 3
    %p125 = pnand %p123, %p124
    %p126 = pneg %p125
    // Predicated region
    $region9: #{spatial_gate.5} parent=5 // pred_check
      _
    $region10: #{spatial_gate.5} parent=5 // pred_check_branch
      %128 = sbr.rel (%p125) target = $region12
    $region11: #{spatial_gate.5} parent=5 // pred_region
      %s129 = ssub.s32 %s8, 1
    $region12: #{spatial_gate.5} parent=5 // pred_fallthru
      _
    %p130 = scmp.lt.s32.totalorder %s8, 2
    // Predicated region
    $region13: #{spatial_gate.5} parent=5 // pred_check
      %p131 = pneg %p130
    $region14: #{spatial_gate.5} parent=5 // pred_check_branch
      %133 = sbr.rel (%p131) target = $region16
    $region15: #{spatial_gate.5} parent=5 // pred_region
      // Predicated region
      $region17: #{spatial_gate.5} parent=15 // pred_check
        %p134 = pneg %p51
      $region18: #{spatial_gate.5} parent=15 // pred_check_branch
        %136 = sbr.rel (%p134) target = $region20
      $region19: #{spatial_gate.5} parent=15 // pred_region
        %s137 = smul.u32 2, %s17
        %p138 = scmp.lt.s32.totalorder %s15, 1
        %s139 = scalar_select %p138, %s15, 1
        %p140 = scmp.lt.s32.totalorder %s16, 0
        %s141 = scalar_select %p140, %s16, 0
        %p142 = scmp.lt.s32.totalorder %s137, 1
        %s143 = scalar_select %p142, %s137, 1
        %s144 = smul.addr %s141, 2
        %s145 = sadd.s32 %s143, %s144
        %s146 = smul.addr %s139, 2
        %s147 = sadd.s32 %s145, %s146
        %s148 = smul.addr %s147, 4
        %s149 = scalar_lea.vmem %s0, %s148
        %s150 = smul.u32 2, %s17
      $region20: #{spatial_gate.5} parent=15 // pred_fallthru
        _
      // Predicated region
      $region21: #{spatial_gate.5} parent=15 // pred_check
        %p151 = pneg %p79
      $region22: #{spatial_gate.5} parent=15 // pred_check_branch
        %153 = sbr.rel (%p151) target = $region24
      $region23: #{spatial_gate.5} parent=15 // pred_region
        %s154 = smul.u32 2, %s17
        %p155 = scmp.lt.s32.totalorder %s15, 1
        %s156 = scalar_select %p155, %s15, 1
        %p157 = scmp.lt.s32.totalorder %s154, 1
        %s158 = scalar_select %p157, %s154, 1
        %s159 = smul.addr %s156, 2
        %s160 = sadd.s32 %s158, %s159
        %s161 = scalar_lea.vmem %s1, %s160
        %s162 = smul.u32 2, %s17
      $region24: #{spatial_gate.5} parent=15 // pred_fallthru
        _
    $region16: #{spatial_gate.5} parent=5 // pred_fallthru
      _
    %p163 = scmp.le.s32.totalorder 1, %s8
    %p164 = scmp.lt.s32.totalorder %s8, 3
    %p165 = pnand %p163, %p164
    %p166 = pneg %p165
    // Predicated region
    $region25: #{spatial_gate.5} parent=5 // pred_check
      _
    $region26: #{spatial_gate.5} parent=5 // pred_check_branch
      %168 = sbr.rel (%p165) target = $region28
    $region27: #{spatial_gate.5} parent=5 // pred_region
      %s169 = ssub.s32 %s8, 1
      %s170 = smul.u32 2, %s20
      %p171 = scmp.lt.s32.totalorder %s18, 1
      %s172 = scalar_select %p171, %s18, 1
      %p173 = scmp.lt.s32.totalorder %s19, 0
      %s174 = scalar_select %p173, %s19, 0
      %p175 = scmp.lt.s32.totalorder %s170, 1
      %s176 = scalar_select %p175, %s170, 1
      %s177 = smul.addr %s174, 2
      %s178 = sadd.s32 %s176, %s177
      %s179 = smul.addr %s172, 2
      %s180 = sadd.s32 %s178, %s179
      %s181 = smul.addr %s180, 4
      %s182 = scalar_lea.vmem %s0, %s181
      %p183 = pneg %p57
      %p184 = pneg %p54
      %s185 = smul.u32 2, %s20
      %p186 = scmp.lt.s32.totalorder %s18, 1
      %s187 = scalar_select %p186, %s18, 1
      %p188 = scmp.lt.s32.totalorder %s185, 1
      %s189 = scalar_select %p188, %s185, 1
      %s190 = smul.addr %s187, 2
      %s191 = sadd.s32 %s189, %s190
      %s192 = scalar_lea.vmem %s1, %s191
      %p193 = pneg %p85
      %p194 = pneg %p82
      %p195 = pneg %p115
      %p196 = pneg %p112
      %s197 = smul.u32 2, %s20
      %p198 = scmp.lt.s32.totalorder %s18, 1
      %s199 = scalar_select %p198, %s18, 1
      %p200 = scmp.lt.s32.totalorder %s19, 0
      %s201 = scalar_select %p200, %s19, 0
      %p202 = scmp.lt.s32.totalorder %s197, 1
      %s203 = scalar_select %p202, %s197, 1
      %s204 = smul.addr %s201, 2
      %s205 = sadd.s32 %s203, %s204
      %s206 = smul.addr %s199, 2
      %s207 = sadd.s32 %s205, %s206
      %s208 = smul.addr %s207, 4
      %s209 = scalar_lea.vmem %s2, %s208
      %s210 = smul.u32 2, %s20
      %p211 = scmp.lt.s32.totalorder %s18, 1
      %s212 = scalar_select %p211, %s18, 1
      %p213 = scmp.lt.s32.totalorder %s19, 0
      %s214 = scalar_select %p213, %s19, 0
      %p215 = scmp.lt.s32.totalorder %s210, 1
      %s216 = scalar_select %p215, %s210, 1
      %s217 = smul.addr %s214, 2
      %s218 = sadd.s32 %s216, %s217
      %s219 = smul.addr %s212, 2
      %s220 = sadd.s32 %s218, %s219
      %s221 = smul.addr %s220, 4
      %s222 = scalar_lea.vmem %s0, %s221
      %s223 = smul.u32 2, %s20
      %s224 = smul.u32 2, %s20
      %p225 = scmp.lt.s32.totalorder %s18, 1
      %s226 = scalar_select %p225, %s18, 1
      %p227 = scmp.lt.s32.totalorder %s224, 1
      %s228 = scalar_select %p227, %s224, 1
      %s229 = smul.addr %s226, 2
      %s230 = sadd.s32 %s228, %s229
      %s231 = scalar_lea.vmem %s1, %s230
      %s232 = smul.u32 2, %s20
      %s233 = smul.u32 2, %s20
      %p234 = scmp.lt.s32.totalorder %s18, 1
      %s235 = scalar_select %p234, %s18, 1
      %p236 = scmp.lt.s32.totalorder %s19, 0
      %s237 = scalar_select %p236, %s19, 0
      %p238 = scmp.lt.s32.totalorder %s233, 1
      %s239 = scalar_select %p238, %s233, 1
      %s240 = smul.addr %s237, 2
      %s241 = sadd.s32 %s239, %s240
      %s242 = smul.addr %s235, 2
      %s243 = sadd.s32 %s241, %s242
      %s244 = smul.addr %s243, 4
      %s245 = scalar_lea.vmem %s2, %s244
      %s246 = smul.u32 2, %s20
      %v247 = vld [vmem:[%s222] sm:$0xff]
      %v248 = vld [vmem:[%s231] sm:$0x3]
      %v250 = vlaneseq
      %v251 = vshrl.u32 %v250, 7
      %v252 = vsub.s32 0, %v251
      %v253 = vrot.slane %v248, %v252
      %v254 = vlaneseq
      %v255 = vshrl.u32 %v254, 7
      %v256 = vsub.s32 1, %v255
      %v257 = vrot.slane %v248, %v256
      %v258 = vcombine.low %v253, %v257
      %v260 = vmul.f32 %v247, %v258
      %261 = vst [vmem:[%s245] sm:$0xff] %v260
      %s262 = smul.u32 2, %s20
      %p263 = scmp.lt.s32.totalorder %s18, 1
      %s264 = scalar_select %p263, %s18, 1
      %p265 = scmp.lt.s32.totalorder %s19, 0
      %s266 = scalar_select %p265, %s19, 0
      %p267 = scmp.lt.s32.totalorder %s262, 1
      %s268 = scalar_select %p267, %s262, 1
      %s269 = smul.addr %s266, 2
      %s270 = sadd.s32 %s268, %s269
      %s271 = smul.addr %s264, 2
      %s272 = sadd.s32 %s270, %s271
      %s273 = smul.addr %s272, 4
      %s274 = scalar_lea.vmem %s2, %s273
      // Predicated region
      $region29: #{spatial_gate.5} parent=27 // pred_check
        %p275 = pneg %p112
      $region30: #{spatial_gate.5} parent=27 // pred_check_branch
        %277 = sbr.rel (%p275) target = $region32
      $region31: #{spatial_gate.5} parent=27 // pred_region
        %s278 = smul.u32 2, %s20
      $region32: #{spatial_gate.5} parent=27 // pred_fallthru
        _
    $region28: #{spatial_gate.5} parent=5 // pred_fallthru
      _
    %p279 = scmp.le.s32.totalorder 2, %s8
    // Predicated region
    $region33: #{spatial_gate.5} parent=5 // pred_check
      %p280 = pneg %p279
    $region34: #{spatial_gate.5} parent=5 // pred_check_branch
      %282 = sbr.rel (%p280) target = $region36
    $region35: #{spatial_gate.5} parent=5 // pred_region
      %s283 = ssub.s32 %s8, 2
      // Predicated region
      $region37: #{spatial_gate.5} parent=35 // pred_check
        %p284 = pneg %p118
      $region38: #{spatial_gate.5} parent=35 // pred_check_branch
        %286 = sbr.rel (%p284) target = $region40
      $region39: #{spatial_gate.5} parent=35 // pred_region
        %s287 = smul.u32 2, %s23
        %p288 = scmp.lt.s32.totalorder %s21, 1
        %s289 = scalar_select %p288, %s21, 1
        %p290 = scmp.lt.s32.totalorder %s22, 0
        %s291 = scalar_select %p290, %s22, 0
        %p292 = scmp.lt.s32.totalorder %s287, 1
        %s293 = scalar_select %p292, %s287, 1
        %s294 = smul.addr %s291, 2
        %s295 = sadd.s32 %s293, %s294
        %s296 = smul.addr %s289, 2
        %s297 = sadd.s32 %s295, %s296
        %s298 = smul.addr %s297, 4
        %s299 = scalar_lea.vmem %s2, %s298
      $region40: #{spatial_gate.5} parent=35 // pred_fallthru
        _
    $region36: #{spatial_gate.5} parent=5 // pred_fallthru
      _
  $region6: #{spatial_gate.5} parent=0 // loop_footer
    %s12 = sadd.s32 1, %s8
  $region7: #{spatial_gate.5} parent=0 // loop_footer_branch
    %7 = sbr.rel target = $region3
  $region8: #{spatial_gate.5} parent=0 // loop_exit
    _

// kernel: spatial_gate.4
$region0: #{spatial_gate.4}
  #allocation0 [shape = 'u32[]', space=smem, size = 0x4, offset = 0x4, fixed_abs, tag = 'smem constant byte address 0x4 - core index']
  #allocation1 [shape = 'u32[144,128]{1,0:T(1,128)}', space=vmem, size = 0x12000, scoped, tag = 'internal scratch']
  #allocation2 [shape = 'f32[1]{0:T(128)S(6)}', space=smem, size = 0x200, scoped, tag = 'scoped memory for spatial_gate.4']
  %s0 = inlined_call_operand.vmem [shape: f32[2,2,22,22], index: 0, kind: input, shape index: {}]
  %s1 = inlined_call_operand.vmem [shape: f32[98], index: 1, kind: input, shape index: {}]
  %s2 = inlined_call_operand.<no memory space> [shape: f32[1], index: 2, kind: input, shape index: {}]
  %s3 = inlined_call_operand.vmem [shape: f32[2,16,16], index: 3, kind: output, shape index: {}]
  %s4 = sld [smem:[#allocation0]]
  $region49: #{spatial_gate.4} parent=0
    _
  %s6 = ssub.s32 1, %s4
  %s7 = scalar_select 0, %s6, %s4
  %8 = sst [smem:[#allocation2]] %s2
  $region1: #{spatial_gate.4} parent=0
    #allocation3 [shape = 'u8[512]{0}', space=smem, size = 0x200, scoped, tag = 'input window, operand 1, single buffered']
    #allocation4 [shape = 's32[2]{0}', space=sflag, size = 0x8, scoped, tag = 'scoped memory for spatial_gate.4']
    %9 = vsyncpa [#allocation4], 0
    loop: start=0, step=1, limit=4
    $region2: #{spatial_gate.4} parent=1 // loop_pre_header
      _
    $region3: #{spatial_gate.4} parent=1 // loop_header
      %s11 = sphi 0, %s15
      %p12 = scmp.ge.s32.totalorder %s11, 4
      %s18 = sphi 0, %s30
      %s19 = sphi 0, %s26
      %s20 = sphi 0, %s18
      %s21 = sphi 0, %s19
      %s22 = sphi 0, %s20
      %s23 = sphi 0, %s21
      %s33 = sphi 0, %s35
      %s36 = sphi 0, %s33
      %s37 = sphi 0, %s36
      %s53 = sphi 0, %s37
      %s57 = sphi 0, %s57
      %s59 = sphi 0, %s57
      %s60 = sphi 0, %s59
      %s74 = sphi 0, %s60
      %s78 = sphi 0, %s78
      %s80 = sphi 0, %s78
      %s81 = sphi 0, %s80
      %s95 = sphi 0, %s81
      %s103 = sphi 0, %s105
      %s106 = sphi 0, %s103
      %s107 = sphi 0, %s106
      %s123 = sphi 0, %s107
    $region4: #{spatial_gate.4} parent=1 // loop_header_branch
      %14 = sbr.rel (%p12) target = $region8
    $region5: #{spatial_gate.4} parent=1 // loop_body
      %s16 = ssub.s32 %s11, 1
      %s17 = ssub.s32 %s11, 2
      %s24 = sadd.s32 1, %s19
      %p25 = scmp.ge.s32.totalorder %s24, 1
      %s26 = scalar_select %p25, 0, %s24
      %s27 = sadd.s32 1, %s18
      %s28 = scalar_select %p25, %s27, %s18
      %p29 = scmp.ge.s32.totalorder %s28, 2
      %s30 = scalar_select %p29, 0, %s28
      %s31 = ssub.s32 %s18, %s30
      %p32 = scmp.eq.s32.totalorder %s31, 0
      %s34 = sadd.s32 %s33, 1
      %s35 = scalar_select %p32, %s33, %s34
      %p38 = pneg %p32
      %p39 = scmp.eq.s32.totalorder %s11, 1
      %p40 = por %p38, %p39
      %p41 = scmp.ne.s32.totalorder %s33, %s36
      %p42 = scmp.eq.s32.totalorder %s11, 0
      %p43 = por %p41, %p42
      %p44 = scmp.ne.s32.totalorder %s33, %s36
      %p45 = scmp.eq.s32.totalorder %s16, 1
      %p46 = por %p44, %p45
      %p47 = scmp.ne.s32.totalorder %s36, %s37
      %p48 = scmp.eq.s32.totalorder %s16, 0
      %p49 = por %p47, %p48
      %p50 = scmp.ne.s32.totalorder %s36, %s37
      %p51 = scmp.eq.s32.totalorder %s17, 1
      %p52 = por %p50, %p51
      %p54 = scmp.ne.s32.totalorder %s37, %s53
      %p55 = scmp.eq.s32.totalorder %s17, 0
      %p56 = por %p54, %p55
      %s58 = sadd.s32 %s57, 1
      %p61 = scmp.eq.s32.totalorder %s11, 1
      %p62 = scmp.ne.s32.totalorder %s57, %s59
      %p63 = scmp.eq.s32.totalorder %s11, 0
      %p64 = por %p62, %p63
      %p65 = scmp.ne.s32.totalorder %s57, %s59
      %p66 = scmp.eq.s32.totalorder %s16, 1
      %p67 = por %p65, %p66
      %p68 = scmp.ne.s32.totalorder %s59, %s60
      %p69 = scmp.eq.s32.totalorder %s16, 0
      %p70 = por %p68, %p69
      %p71 = scmp.ne.s32.totalorder %s59, %s60
      %p72 = scmp.eq.s32.totalorder %s17, 1
      %p73 = por %p71, %p72
      %p75 = scmp.ne.s32.totalorder %s60, %s74
      %p76 = scmp.eq.s32.totalorder %s17, 0
      %p77 = por %p75, %p76
      %s79 = sadd.s32 %s78, 1
      %p82 = scmp.eq.s32.totalorder %s11, 1
      %p83 = scmp.ne.s32.totalorder %s78, %s80
      %p84 = scmp.eq.s32.totalorder %s11, 0
      %p85 = por %p83, %p84
      %p86 = scmp.ne.s32.totalorder %s78, %s80
      %p87 = scmp.eq.s32.totalorder %s16, 1
      %p88 = por %p86, %p87
      %p89 = scmp.ne.s32.totalorder %s80, %s81
      %p90 = scmp.eq.s32.totalorder %s16, 0
      %p91 = por %p89, %p90
      %p92 = scmp.ne.s32.totalorder %s80, %s81
      %p93 = scmp.eq.s32.totalorder %s17, 1
      %p94 = por %p92, %p93
      %p96 = scmp.ne.s32.totalorder %s81, %s95
      %p97 = scmp.eq.s32.totalorder %s17, 0
      %p98 = por %p96, %p97
      %s99 = ssub.s32 %s18, %s30
      %s100 = ssub.s32 %s19, %s26
      %s101 = sor.u32 %s99, %s100
      %p102 = scmp.eq.s32.totalorder %s101, 0
      %s104 = sadd.s32 %s103, 1
      %s105 = scalar_select %p102, %s103, %s104
      %p108 = pneg %p102
      %p109 = scmp.eq.s32.totalorder %s11, 1
      %p110 = por %p108, %p109
      %p111 = scmp.ne.s32.totalorder %s103, %s106
      %p112 = scmp.eq.s32.totalorder %s11, 0
      %p113 = por %p111, %p112
      %p114 = scmp.ne.s32.totalorder %s103, %s106
      %p115 = scmp.eq.s32.totalorder %s16, 1
      %p116 = por %p114, %p115
      %p117 = scmp.ne.s32.totalorder %s106, %s107
      %p118 = scmp.eq.s32.totalorder %s16, 0
      %p119 = por %p117, %p118
      %p120 = scmp.ne.s32.totalorder %s106, %s107
      %p121 = scmp.eq.s32.totalorder %s17, 1
      %p122 = por %p120, %p121
      %p124 = scmp.ne.s32.totalorder %s107, %s123
      %p125 = scmp.eq.s32.totalorder %s17, 0
      %p126 = por %p124, %p125
      %p127 = scmp.le.s32.totalorder 1, %s11
      %p128 = scmp.lt.s32.totalorder %s11, 3
      %p129 = pnand %p127, %p128
      %p130 = pneg %p129
      // Predicated region
      $region9: #{spatial_gate.4} parent=5 // pred_check
        _
      $region10: #{spatial_gate.4} parent=5 // pred_check_branch
        %132 = sbr.rel (%p129) target = $region12
      $region11: #{spatial_gate.4} parent=5 // pred_region
        %s133 = ssub.s32 %s11, 1
        // Predicated region
        $region13: #{spatial_gate.4} parent=11 // pred_check
          %p134 = pneg %p70
        $region14: #{spatial_gate.4} parent=11 // pred_check_branch
          %136 = sbr.rel (%p134) target = $region16
        $region15: #{spatial_gate.4} parent=11 // pred_region
          %s138 = ssub.s32 16, 16
          %139 = vsyncadd [#allocation4], %s138
          %s141 = sshll.u32 %s1, 4
          %s142 = int_to_ptr.vmem [resolvable:$true] %s141
          %144 = dma.vmem_to_smem %s142, 16, [#allocation3], [#allocation4]
        $region16: #{spatial_gate.4} parent=11 // pred_fallthru
          _
        // Predicated region
        $region17: #{spatial_gate.4} parent=11 // pred_check
          %p145 = pneg %p91
        $region18: #{spatial_gate.4} parent=11 // pred_check_branch
          %147 = sbr.rel (%p145) target = $region20
        $region19: #{spatial_gate.4} parent=11 // pred_region
          _
        $region20: #{spatial_gate.4} parent=11 // pred_fallthru
          _
      $region12: #{spatial_gate.4} parent=5 // pred_fallthru
        _
      %p148 = scmp.lt.s32.totalorder %s11, 2
      // Predicated region
      $region21: #{spatial_gate.4} parent=5 // pred_check
        %p149 = pneg %p148
      $region22: #{spatial_gate.4} parent=5 // pred_check_branch
        %151 = sbr.rel (%p149) target = $region24
      $region23: #{spatial_gate.4} parent=5 // pred_region
        // Predicated region
        $region25: #{spatial_gate.4} parent=23 // pred_check
          %p152 = pneg %p43
        $region26: #{spatial_gate.4} parent=23 // pred_check_branch
          %154 = sbr.rel (%p152) target = $region28
        $region27: #{spatial_gate.4} parent=23 // pred_region
          %p155 = scmp.lt.s32.totalorder %s18, 1
          %s156 = scalar_select %p155, %s18, 1
          %s157 = smul.addr %s156, 6
          %s158 = smul.addr %s157, 8
          %s159 = scalar_lea.vmem %s0, %s158
        $region28: #{spatial_gate.4} parent=23 // pred_fallthru
          _
      $region24: #{spatial_gate.4} parent=5 // pred_fallthru
        _
      %p160 = scmp.le.s32.totalorder 1, %s11
      %p161 = scmp.lt.s32.totalorder %s11, 3
      %p162 = pnand %p160, %p161
      %p163 = pneg %p162
      // Predicated region
      $region29: #{spatial_gate.4} parent=5 // pred_check
        _
      $region30: #{spatial_gate.4} parent=5 // pred_check_branch
        %165 = sbr.rel (%p162) target = $region32
      $region31: #{spatial_gate.4} parent=5 // pred_region
        %s166 = ssub.s32 %s11, 1
        // Predicated region
        $region33: #{spatial_gate.4} parent=31 // pred_check
          %p167 = pneg %p70
        $region34: #{spatial_gate.4} parent=31 // pred_check_branch
          %169 = sbr.rel (%p167) target = $region36
        $region35: #{spatial_gate.4} parent=31 // pred_region
          %170 = dma.done [#allocation4], 16
        $region36: #{spatial_gate.4} parent=31 // pred_fallthru
          _
        %171 = sfence
        %p172 = scmp.lt.s32.totalorder %s20, 1
        %s173 = scalar_select %p172, %s20, 1
        %s174 = smul.addr %s173, 6
        %s175 = smul.addr %s174, 8
        %s176 = scalar_lea.vmem %s0, %s175
        %p177 = pneg %p49
        %p178 = pneg %p46
        %p179 = pneg %p70
        %p180 = pneg %p67
        %p181 = pneg %p91
        %p182 = pneg %p88
        %p183 = pneg %p119
        %p184 = pneg %p116
        %s185 = smul.u32 2, %s21
        %p186 = scmp.lt.s32.totalorder %s20, 1
        %s187 = scalar_select %p186, %s20, 1
        %p188 = scmp.lt.s32.totalorder %s185, 1
        %s189 = scalar_select %p188, %s185, 1
        %s190 = smul.addr %s187, 2
        %s191 = sadd.s32 %s189, %s190
        %s192 = smul.addr %s191, 8
        %s193 = scalar_lea.vmem %s3, %s192
        %p194 = scmp.lt.s32.totalorder %s20, 1
        %s195 = scalar_select %p194, %s20, 1
        %s196 = smul.addr %s195, 6
        %s197 = smul.addr %s196, 8
        %s198 = scalar_lea.vmem %s0, %s197
        %s199 = smul.u32 2, %s21
        %p200 = scmp.lt.s32.totalorder %s20, 1
        %s201 = scalar_select %p200, %s20, 1
        %p202 = scmp.lt.s32.totalorder %s199, 1
        %s203 = scalar_select %p202, %s199, 1
        %s204 = smul.addr %s201, 2
        %s205 = sadd.s32 %s203, %s204
        %s206 = smul.addr %s205, 8
        %s207 = scalar_lea.vmem %s3, %s206
        %s208 = smul.u32 2, %s21
        %s209 = smul.u32 %s21, 16
        %s210 = sld [smem:[#allocation2]]
        %v211 = vstv %s210
        %s212 = scalar_lea.vmem %s198, %s209
        %v213 = vld [vmem:[%s212] sm:$0xff]
        %v214 = vld [vmem:[%s212 + $0x8] sm:$0xff]
        %v215 = vld [vmem:[%s212 + $0x10] sm:$0x3f]
        %s216 = sld [smem:[#allocation3]]
        %v217 = vstv %s216
        %v218 = vmul.f32 %v217, %v213
        %v219 = vmul.f32 %v217, %v214
        %v220 = vadd.f32 %v211, %v218
        %v221 = vadd.f32 %v211, %v219
        %s222 = sld [smem:[#allocation3 + $0x7]]
        %v223 = vstv %s222
        %v224 = vmul.f32 %v223, %v213
        %v225 = vmul.f32 %v223, %v214
        %v226 = vmul.f32 %v223, %v215
        %vm230 = vcmask 1046528
        %v231 = vrot.slane %v224, 1
        %v232 = vrot.slane %v225, 1
        %v233 = vsel %vm230, %v231, %v232
        %v234 = vrot.slane %v226, 1
        %v235 = vsel %vm230, %v232, %v234
        %v238 = vadd.f32 %v220, %v233
        %v239 = vadd.f32 %v221, %v235
        %s240 = sld [smem:[#allocation3 + $0xe]]
        %v241 = vstv %s240
        %v242 = vmul.f32 %v241, %v213
        %v243 = vmul.f32 %v241, %v214
        %v244 = vmul.f32 %v241, %v215
        %vm248 = vcmask 1045504
        %v249 = vrot.slane %v242, 2
        %v250 = vrot.slane %v243, 2
        %v251 = vsel %vm248, %v249, %v250
        %v252 = vrot.slane %v244, 2
        %v253 = vsel %vm248, %v250, %v252
        %v256 = vadd.f32 %v238, %v251
        %v257 = vadd.f32 %v239, %v253
        %s258 = sld [smem:[#allocation3 + $0x15]]
        %v259 = vstv %s258
        %v260 = vmul.f32 %v259, %v213
        %v261 = vmul.f32 %v259, %v214
        %v262 = vmul.f32 %v259, %v215
        %vm266 = vcmask 1044480
        %v267 = vrot.slane %v260, 3
        %v268 = vrot.slane %v261, 3
        %v269 = vsel %vm266, %v267, %v268
        %v270 = vrot.slane %v262, 3
        %v271 = vsel %vm266, %v268, %v270
        %v274 = vadd.f32 %v256, %v269
        %v275 = vadd.f32 %v257, %v271
        %s276 = sld [smem:[#allocation3 + $0x1c]]
        %v277 = vstv %s276
        %v278 = vmul.f32 %v277, %v213
        %v279 = vmul.f32 %v277, %v214
        %v280 = vmul.f32 %v277, %v215
        %vm284 = vcmask 1043456
        %v285 = vrot.slane %v278, 4
        %v286 = vrot.slane %v279, 4
        %v287 = vsel %vm284, %v285, %v286
        %v288 = vrot.slane %v280, 4
        %v289 = vsel %vm284, %v286, %v288
        %v292 = vadd.f32 %v274, %v287
        %v293 = vadd.f32 %v275, %v289
        %s294 = sld [smem:[#allocation3 + $0x23]]
        %v295 = vstv %s294
        %v296 = vmul.f32 %v295, %v213
        %v297 = vmul.f32 %v295, %v214
        %v298 = vmul.f32 %v295, %v215
        %vm302 = vcmask 1042432
        %v303 = vrot.slane %v296, 5
        %v304 = vrot.slane %v297, 5
        %v305 = vsel %vm302, %v303, %v304
        %v306 = vrot.slane %v298, 5
        %v307 = vsel %vm302, %v304, %v306
        %v310 = vadd.f32 %v292, %v305
        %v311 = vadd.f32 %v293, %v307
        %s312 = sld [smem:[#allocation3 + $0x2a]]
        %v313 = vstv %s312
        %v314 = vmul.f32 %v313, %v213
        %v315 = vmul.f32 %v313, %v214
        %v316 = vmul.f32 %v313, %v215
        %vm320 = vcmask 1041408
        %v321 = vrot.slane %v314, 6
        %v322 = vrot.slane %v315, 6
        %v323 = vsel %vm320, %v321, %v322
        %v324 = vrot.slane %v316, 6
        %v325 = vsel %vm320, %v322, %v324
        %v328 = vadd.f32 %v310, %v323
        %v329 = vadd.f32 %v311, %v325
        %s330 = sld [smem:[#allocation3 + $0x1]]
        %v331 = vstv %s330
        %v332 = vmul.f32 %v331, %v213
        %v333 = vmul.f32 %v331, %v214
        %336 = vrot.lane.b32.xlu0 %v332, 127
        %v337 = vpop.permute.xlu0 %336
        %338 = vrot.lane.b32.xlu0 %v333, 127
        %v339 = vpop.permute.xlu0 %338
        %v342 = vadd.f32 %v328, %v337
        %v343 = vadd.f32 %v329, %v339
        %s344 = sld [smem:[#allocation3 + $0x8]]
        %v345 = vstv %s344
        %v346 = vmul.f32 %v345, %v213
        %v347 = vmul.f32 %v345, %v214
        %v348 = vmul.f32 %v345, %v215
        %v352 = vrot.slane %v346, 1
        %v353 = vrot.slane %v347, 1
        %v354 = vsel %vm230, %v352, %v353
        %v355 = vrot.slane %v348, 1
        %v356 = vsel %vm230, %v353, %v355
        %357 = vrot.lane.b32.xlu0 %v354, 127
        %v358 = vpop.permute.xlu0 %357
        %359 = vrot.lane.b32.xlu0 %v356, 127
        %v360 = vpop.permute.xlu0 %359
        %v363 = vadd.f32 %v342, %v358
        %v364 = vadd.f32 %v343, %v360
        %s365 = sld [smem:[#allocation3 + $0xf]]
        %v366 = vstv %s365
        %v367 = vmul.f32 %v366, %v213
        %v368 = vmul.f32 %v366, %v214
        %v369 = vmul.f32 %v366, %v215
        %v373 = vrot.slane %v367, 2
        %v374 = vrot.slane %v368, 2
        %v375 = vsel %vm248, %v373, %v374
        %v376 = vrot.slane %v369, 2
        %v377 = vsel %vm248, %v374, %v376
        %378 = vrot.lane.b32.xlu0 %v375, 127
        %v379 = vpop.permute.xlu0 %378
        %380 = vrot.lane.b32.xlu0 %v377, 127
        %v381 = vpop.permute.xlu0 %380
        %v384 = vadd.f32 %v363, %v379
        %v385 = vadd.f32 %v364, %v381
        %s386 = sld [smem:[#allocation3 + $0x16]]
        %v387 = vstv %s386
        %v388 = vmul.f32 %v387, %v213
        %v389 = vmul.f32 %v387, %v214
        %v390 = vmul.f32 %v387, %v215
        %v394 = vrot.slane %v388, 3
        %v395 = vrot.slane %v389, 3
        %v396 = vsel %vm266, %v394, %v395
        %v397 = vrot.slane %v390, 3
        %v398 = vsel %vm266, %v395, %v397
        %399 = vrot.lane.b32.xlu0 %v396, 127
        %v400 = vpop.permute.xlu0 %399
        %401 = vrot.lane.b32.xlu0 %v398, 127
        %v402 = vpop.permute.xlu0 %401
        %v405 = vadd.f32 %v384, %v400
        %v406 = vadd.f32 %v385, %v402
        %s407 = sld [smem:[#allocation3 + $0x1d]]
        %v408 = vstv %s407
        %v409 = vmul.f32 %v408, %v213
        %v410 = vmul.f32 %v408, %v214
        %v411 = vmul.f32 %v408, %v215
        %v415 = vrot.slane %v409, 4
        %v416 = vrot.slane %v410, 4
        %v417 = vsel %vm284, %v415, %v416
        %v418 = vrot.slane %v411, 4
        %v419 = vsel %vm284, %v416, %v418
        %420 = vrot.lane.b32.xlu0 %v417, 127
        %v421 = vpop.permute.xlu0 %420
        %422 = vrot.lane.b32.xlu0 %v419, 127
        %v423 = vpop.permute.xlu0 %422
        %v426 = vadd.f32 %v405, %v421
        %v427 = vadd.f32 %v406, %v423
        %s428 = sld [smem:[#allocation3 + $0x24]]
        %v429 = vstv %s428
        %v430 = vmul.f32 %v429, %v213
        %v431 = vmul.f32 %v429, %v214
        %v432 = vmul.f32 %v429, %v215
        %v436 = vrot.slane %v430, 5
        %v437 = vrot.slane %v431, 5
        %v438 = vsel %vm302, %v436, %v437
        %v439 = vrot.slane %v432, 5
        %v440 = vsel %vm302, %v437, %v439
        %441 = vrot.lane.b32.xlu0 %v438, 127
        %v442 = vpop.permute.xlu0 %441
        %443 = vrot.lane.b32.xlu0 %v440, 127
        %v444 = vpop.permute.xlu0 %443
        %v447 = vadd.f32 %v426, %v442
        %v448 = vadd.f32 %v427, %v444
        %s449 = sld [smem:[#allocation3 + $0x2b]]
        %v450 = vstv %s449
        %v451 = vmul.f32 %v450, %v213
        %v452 = vmul.f32 %v450, %v214
        %v453 = vmul.f32 %v450, %v215
        %v457 = vrot.slane %v451, 6
        %v458 = vrot.slane %v452, 6
        %v459 = vsel %vm320, %v457, %v458
        %v460 = vrot.slane %v453, 6
        %v461 = vsel %vm320, %v458, %v460
        %462 = vrot.lane.b32.xlu0 %v459, 127
        %v463 = vpop.permute.xlu0 %462
        %464 = vrot.lane.b32.xlu0 %v461, 127
        %v465 = vpop.permute.xlu0 %464
        %v468 = vadd.f32 %v447, %v463
        %v469 = vadd.f32 %v448, %v465
        %s470 = sld [smem:[#allocation3 + $0x2]]
        %v471 = vstv %s470
        %v472 = vmul.f32 %v471, %v213
        %v473 = vmul.f32 %v471, %v214
        %476 = vrot.lane.b32.xlu0 %v472, 126
        %v477 = vpop.permute.xlu0 %476
        %478 = vrot.lane.b32.xlu0 %v473, 126
        %v479 = vpop.permute.xlu0 %478
        %v482 = vadd.f32 %v468, %v477
        %v483 = vadd.f32 %v469, %v479
        %s484 = sld [smem:[#allocation3 + $0x9]]
        %v485 = vstv %s484
        %v486 = vmul.f32 %v485, %v213
        %v487 = vmul.f32 %v485, %v214
        %v488 = vmul.f32 %v485, %v215
        %v492 = vrot.slane %v486, 1
        %v493 = vrot.slane %v487, 1
        %v494 = vsel %vm230, %v492, %v493
        %v495 = vrot.slane %v488, 1
        %v496 = vsel %vm230, %v493, %v495
        %497 = vrot.lane.b32.xlu0 %v494, 126
        %v498 = vpop.permute.xlu0 %497
        %499 = vrot.lane.b32.xlu0 %v496, 126
        %v500 = vpop.permute.xlu0 %499
        %v503 = vadd.f32 %v482, %v498
        %v504 = vadd.f32 %v483, %v500
        %s505 = sld [smem:[#allocation3 + $0x10]]
        %v506 = vstv %s505
        %v507 = vmul.f32 %v506, %v213
        %v508 = vmul.f32 %v506, %v214
        %v509 = vmul.f32 %v506, %v215
        %v513 = vrot.slane %v507, 2
        %v514 = vrot.slane %v508, 2
        %v515 = vsel %vm248, %v513, %v514
        %v516 = vrot.slane %v509, 2
        %v517 = vsel %vm248, %v514, %v516
        %518 = vrot.lane.b32.xlu0 %v515, 126
        %v519 = vpop.permute.xlu0 %518
        %520 = vrot.lane.b32.xlu0 %v517, 126
        %v521 = vpop.permute.xlu0 %520
        %v524 = vadd.f32 %v503, %v519
        %v525 = vadd.f32 %v504, %v521
        %s526 = sld [smem:[#allocation3 + $0x17]]
        %v527 = vstv %s526
        %v528 = vmul.f32 %v527, %v213
        %v529 = vmul.f32 %v527, %v214
        %v530 = vmul.f32 %v527, %v215
        %v534 = vrot.slane %v528, 3
        %v535 = vrot.slane %v529, 3
        %v536 = vsel %vm266, %v534, %v535
        %v537 = vrot.slane %v530, 3
        %v538 = vsel %vm266, %v535, %v537
        %539 = vrot.lane.b32.xlu0 %v536, 126
        %v540 = vpop.permute.xlu0 %539
        %541 = vrot.lane.b32.xlu0 %v538, 126
        %v542 = vpop.permute.xlu0 %541
        %v545 = vadd.f32 %v524, %v540
        %v546 = vadd.f32 %v525, %v542
        %s547 = sld [smem:[#allocation3 + $0x1e]]
        %v548 = vstv %s547
        %v549 = vmul.f32 %v548, %v213
        %v550 = vmul.f32 %v548, %v214
        %v551 = vmul.f32 %v548, %v215
        %v555 = vrot.slane %v549, 4
        %v556 = vrot.slane %v550, 4
        %v557 = vsel %vm284, %v555, %v556
        %v558 = vrot.slane %v551, 4
        %v559 = vsel %vm284, %v556, %v558
        %560 = vrot.lane.b32.xlu0 %v557, 126
        %v561 = vpop.permute.xlu0 %560
        %562 = vrot.lane.b32.xlu0 %v559, 126
        %v563 = vpop.permute.xlu0 %562
        %v566 = vadd.f32 %v545, %v561
        %v567 = vadd.f32 %v546, %v563
        %s568 = sld [smem:[#allocation3 + $0x25]]
        %v569 = vstv %s568
        %v570 = vmul.f32 %v569, %v213
        %v571 = vmul.f32 %v569, %v214
        %v572 = vmul.f32 %v569, %v215
        %v576 = vrot.slane %v570, 5
        %v577 = vrot.slane %v571, 5
        %v578 = vsel %vm302, %v576, %v577
        %v579 = vrot.slane %v572, 5
        %v580 = vsel %vm302, %v577, %v579
        %581 = vrot.lane.b32.xlu0 %v578, 126
        %v582 = vpop.permute.xlu0 %581
        %583 = vrot.lane.b32.xlu0 %v580, 126
        %v584 = vpop.permute.xlu0 %583
        %v587 = vadd.f32 %v566, %v582
        %v588 = vadd.f32 %v567, %v584
        %s589 = sld [smem:[#allocation3 + $0x2c]]
        %v590 = vstv %s589
        %v591 = vmul.f32 %v590, %v213
        %v592 = vmul.f32 %v590, %v214
        %v593 = vmul.f32 %v590, %v215
        %v597 = vrot.slane %v591, 6
        %v598 = vrot.slane %v592, 6
        %v599 = vsel %vm320, %v597, %v598
        %v600 = vrot.slane %v593, 6
        %v601 = vsel %vm320, %v598, %v600
        %602 = vrot.lane.b32.xlu0 %v599, 126
        %v603 = vpop.permute.xlu0 %602
        %604 = vrot.lane.b32.xlu0 %v601, 126
        %v605 = vpop.permute.xlu0 %604
        %v608 = vadd.f32 %v587, %v603
        %v609 = vadd.f32 %v588, %v605
        %s610 = sld [smem:[#allocation3 + $0x3]]
        %v611 = vstv %s610
        %v612 = vmul.f32 %v611, %v213
        %v613 = vmul.f32 %v611, %v214
        %616 = vrot.lane.b32.xlu0 %v612, 125
        %v617 = vpop.permute.xlu0 %616
        %618 = vrot.lane.b32.xlu0 %v613, 125
        %v619 = vpop.permute.xlu0 %618
        %v622 = vadd.f32 %v608, %v617
        %v623 = vadd.f32 %v609, %v619
        %s624 = sld [smem:[#allocation3 + $0xa]]
        %v625 = vstv %s624
        %v626 = vmul.f32 %v625, %v213
        %v627 = vmul.f32 %v625, %v214
        %v628 = vmul.f32 %v625, %v215
        %v632 = vrot.slane %v626, 1
        %v633 = vrot.slane %v627, 1
        %v634 = vsel %vm230, %v632, %v633
        %v635 = vrot.slane %v628, 1
        %v636 = vsel %vm230, %v633, %v635
        %637 = vrot.lane.b32.xlu0 %v634, 125
        %v638 = vpop.permute.xlu0 %637
        %639 = vrot.lane.b32.xlu0 %v636, 125
        %v640 = vpop.permute.xlu0 %639
        %v643 = vadd.f32 %v622, %v638
        %v644 = vadd.f32 %v623, %v640
        %s645 = sld [smem:[#allocation3 + $0x11]]
        %v646 = vstv %s645
        %v647 = vmul.f32 %v646, %v213
        %v648 = vmul.f32 %v646, %v214
        %v649 = vmul.f32 %v646, %v215
        %v653 = vrot.slane %v647, 2
        %v654 = vrot.slane %v648, 2
        %v655 = vsel %vm248, %v653, %v654
        %v656 = vrot.slane %v649, 2
        %v657 = vsel %vm248, %v654, %v656
        %658 = vrot.lane.b32.xlu0 %v655, 125
        %v659 = vpop.permute.xlu0 %658
        %660 = vrot.lane.b32.xlu0 %v657, 125
        %v661 = vpop.permute.xlu0 %660
        %v664 = vadd.f32 %v643, %v659
        %v665 = vadd.f32 %v644, %v661
        %s666 = sld [smem:[#allocation3 + $0x18]]
        %v667 = vstv %s666
        %v668 = vmul.f32 %v667, %v213
        %v669 = vmul.f32 %v667, %v214
        %v670 = vmul.f32 %v667, %v215
        %v674 = vrot.slane %v668, 3
        %v675 = vrot.slane %v669, 3
        %v676 = vsel %vm266, %v674, %v675
        %v677 = vrot.slane %v670, 3
        %v678 = vsel %vm266, %v675, %v677
        %679 = vrot.lane.b32.xlu0 %v676, 125
        %v680 = vpop.permute.xlu0 %679
        %681 = vrot.lane.b32.xlu0 %v678, 125
        %v682 = vpop.permute.xlu0 %681
        %v685 = vadd.f32 %v664, %v680
        %v686 = vadd.f32 %v665, %v682
        %s687 = sld [smem:[#allocation3 + $0x1f]]
        %v688 = vstv %s687
        %v689 = vmul.f32 %v688, %v213
        %v690 = vmul.f32 %v688, %v214
        %v691 = vmul.f32 %v688, %v215
        %v695 = vrot.slane %v689, 4
        %v696 = vrot.slane %v690, 4
        %v697 = vsel %vm284, %v695, %v696
        %v698 = vrot.slane %v691, 4
        %v699 = vsel %vm284, %v696, %v698
        %700 = vrot.lane.b32.xlu0 %v697, 125
        %v701 = vpop.permute.xlu0 %700
        %702 = vrot.lane.b32.xlu0 %v699, 125
        %v703 = vpop.permute.xlu0 %702
        %v706 = vadd.f32 %v685, %v701
        %v707 = vadd.f32 %v686, %v703
        %s708 = sld [smem:[#allocation3 + $0x26]]
        %v709 = vstv %s708
        %v710 = vmul.f32 %v709, %v213
        %v711 = vmul.f32 %v709, %v214
        %v712 = vmul.f32 %v709, %v215
        %v716 = vrot.slane %v710, 5
        %v717 = vrot.slane %v711, 5
        %v718 = vsel %vm302, %v716, %v717
        %v719 = vrot.slane %v712, 5
        %v720 = vsel %vm302, %v717, %v719
        %721 = vrot.lane.b32.xlu0 %v718, 125
        %v722 = vpop.permute.xlu0 %721
        %723 = vrot.lane.b32.xlu0 %v720, 125
        %v724 = vpop.permute.xlu0 %723
        %v727 = vadd.f32 %v706, %v722
        %v728 = vadd.f32 %v707, %v724
        %s729 = sld [smem:[#allocation3 + $0x2d]]
        %v730 = vstv %s729
        %v731 = vmul.f32 %v730, %v213
        %v732 = vmul.f32 %v730, %v214
        %v733 = vmul.f32 %v730, %v215
        %v737 = vrot.slane %v731, 6
        %v738 = vrot.slane %v732, 6
        %v739 = vsel %vm320, %v737, %v738
        %v740 = vrot.slane %v733, 6
        %v741 = vsel %vm320, %v738, %v740
        %742 = vrot.lane.b32.xlu0 %v739, 125
        %v743 = vpop.permute.xlu0 %742
        %744 = vrot.lane.b32.xlu0 %v741, 125
        %v745 = vpop.permute.xlu0 %744
        %v748 = vadd.f32 %v727, %v743
        %v749 = vadd.f32 %v728, %v745
        %s750 = sld [smem:[#allocation3 + $0x4]]
        %v751 = vstv %s750
        %v752 = vmul.f32 %v751, %v213
        %v753 = vmul.f32 %v751, %v214
        %756 = vrot.lane.b32.xlu0 %v752, 124
        %v757 = vpop.permute.xlu0 %756
        %758 = vrot.lane.b32.xlu0 %v753, 124
        %v759 = vpop.permute.xlu0 %758
        %v762 = vadd.f32 %v748, %v757
        %v763 = vadd.f32 %v749, %v759
        %s764 = sld [smem:[#allocation3 + $0xb]]
        %v765 = vstv %s764
        %v766 = vmul.f32 %v765, %v213
        %v767 = vmul.f32 %v765, %v214
        %v768 = vmul.f32 %v765, %v215
        %v772 = vrot.slane %v766, 1
        %v773 = vrot.slane %v767, 1
        %v774 = vsel %vm230, %v772, %v773
        %v775 = vrot.slane %v768, 1
        %v776 = vsel %vm230, %v773, %v775
        %777 = vrot.lane.b32.xlu0 %v774, 124
        %v778 = vpop.permute.xlu0 %777
        %779 = vrot.lane.b32.xlu0 %v776, 124
        %v780 = vpop.permute.xlu0 %779
        %v783 = vadd.f32 %v762, %v778
        %v784 = vadd.f32 %v763, %v780
        %s785 = sld [smem:[#allocation3 + $0x12]]
        %v786 = vstv %s785
        %v787 = vmul.f32 %v786, %v213
        %v788 = vmul.f32 %v786, %v214
        %v789 = vmul.f32 %v786, %v215
        %v793 = vrot.slane %v787, 2
        %v794 = vrot.slane %v788, 2
        %v795 = vsel %vm248, %v793, %v794
        %v796 = vrot.slane %v789, 2
        %v797 = vsel %vm248, %v794, %v796
        %798 = vrot.lane.b32.xlu0 %v795, 124
        %v799 = vpop.permute.xlu0 %798
        %800 = vrot.lane.b32.xlu0 %v797, 124
        %v801 = vpop.permute.xlu0 %800
        %v804 = vadd.f32 %v783, %v799
        %v805 = vadd.f32 %v784, %v801
        %s806 = sld [smem:[#allocation3 + $0x19]]
        %v807 = vstv %s806
        %v808 = vmul.f32 %v807, %v213
        %v809 = vmul.f32 %v807, %v214
        %v810 = vmul.f32 %v807, %v215
        %v814 = vrot.slane %v808, 3
        %v815 = vrot.slane %v809, 3
        %v816 = vsel %vm266, %v814, %v815
        %v817 = vrot.slane %v810, 3
        %v818 = vsel %vm266, %v815, %v817
        %819 = vrot.lane.b32.xlu0 %v816, 124
        %v820 = vpop.permute.xlu0 %819
        %821 = vrot.lane.b32.xlu0 %v818, 124
        %v822 = vpop.permute.xlu0 %821
        %v825 = vadd.f32 %v804, %v820
        %v826 = vadd.f32 %v805, %v822
        %s827 = sld [smem:[#allocation3 + $0x20]]
        %v828 = vstv %s827
        %v829 = vmul.f32 %v828, %v213
        %v830 = vmul.f32 %v828, %v214
        %v831 = vmul.f32 %v828, %v215
        %v835 = vrot.slane %v829, 4
        %v836 = vrot.slane %v830, 4
        %v837 = vsel %vm284, %v835, %v836
        %v838 = vrot.slane %v831, 4
        %v839 = vsel %vm284, %v836, %v838
        %840 = vrot.lane.b32.xlu0 %v837, 124
        %v841 = vpop.permute.xlu0 %840
        %842 = vrot.lane.b32.xlu0 %v839, 124
        %v843 = vpop.permute.xlu0 %842
        %v846 = vadd.f32 %v825, %v841
        %v847 = vadd.f32 %v826, %v843
        %s848 = sld [smem:[#allocation3 + $0x27]]
        %v849 = vstv %s848
        %v850 = vmul.f32 %v849, %v213
        %v851 = vmul.f32 %v849, %v214
        %v852 = vmul.f32 %v849, %v215
        %v856 = vrot.slane %v850, 5
        %v857 = vrot.slane %v851, 5
        %v858 = vsel %vm302, %v856, %v857
        %v859 = vrot.slane %v852, 5
        %v860 = vsel %vm302, %v857, %v859
        %861 = vrot.lane.b32.xlu0 %v858, 124
        %v862 = vpop.permute.xlu0 %861
        %863 = vrot.lane.b32.xlu0 %v860, 124
        %v864 = vpop.permute.xlu0 %863
        %v867 = vadd.f32 %v846, %v862
        %v868 = vadd.f32 %v847, %v864
        %s869 = sld [smem:[#allocation3 + $0x2e]]
        %v870 = vstv %s869
        %v871 = vmul.f32 %v870, %v213
        %v872 = vmul.f32 %v870, %v214
        %v873 = vmul.f32 %v870, %v215
        %v877 = vrot.slane %v871, 6
        %v878 = vrot.slane %v872, 6
        %v879 = vsel %vm320, %v877, %v878
        %v880 = vrot.slane %v873, 6
        %v881 = vsel %vm320, %v878, %v880
        %882 = vrot.lane.b32.xlu0 %v879, 124
        %v883 = vpop.permute.xlu0 %882
        %884 = vrot.lane.b32.xlu0 %v881, 124
        %v885 = vpop.permute.xlu0 %884
        %v888 = vadd.f32 %v867, %v883
        %v889 = vadd.f32 %v868, %v885
        %s890 = sld [smem:[#allocation3 + $0x5]]
        %v891 = vstv %s890
        %v892 = vmul.f32 %v891, %v213
        %v893 = vmul.f32 %v891, %v214
        %896 = vrot.lane.b32.xlu0 %v892, 123
        %v897 = vpop.permute.xlu0 %896
        %898 = vrot.lane.b32.xlu0 %v893, 123
        %v899 = vpop.permute.xlu0 %898
        %v902 = vadd.f32 %v888, %v897
        %v903 = vadd.f32 %v889, %v899
        %s904 = sld [smem:[#allocation3 + $0xc]]
        %v905 = vstv %s904
        %v906 = vmul.f32 %v905, %v213
        %v907 = vmul.f32 %v905, %v214
        %v908 = vmul.f32 %v905, %v215
        %v912 = vrot.slane %v906, 1
        %v913 = vrot.slane %v907, 1
        %v914 = vsel %vm230, %v912, %v913
        %v915 = vrot.slane %v908, 1
        %v916 = vsel %vm230, %v913, %v915
        %917 = vrot.lane.b32.xlu0 %v914, 123
        %v918 = vpop.permute.xlu0 %917
        %919 = vrot.lane.b32.xlu0 %v916, 123
        %v920 = vpop.permute.xlu0 %919
        %v923 = vadd.f32 %v902, %v918
        %v924 = vadd.f32 %v903, %v920
        %s925 = sld [smem:[#allocation3 + $0x13]]
        %v926 = vstv %s925
        %v927 = vmul.f32 %v926, %v213
        %v928 = vmul.f32 %v926, %v214
        %v929 = vmul.f32 %v926, %v215
        %v933 = vrot.slane %v927, 2
        %v934 = vrot.slane %v928, 2
        %v935 = vsel %vm248, %v933, %v934
        %v936 = vrot.slane %v929, 2
        %v937 = vsel %vm248, %v934, %v936
        %938 = vrot.lane.b32.xlu0 %v935, 123
        %v939 = vpop.permute.xlu0 %938
        %940 = vrot.lane.b32.xlu0 %v937, 123
        %v941 = vpop.permute.xlu0 %940
        %v944 = vadd.f32 %v923, %v939
        %v945 = vadd.f32 %v924, %v941
        %s946 = sld [smem:[#allocation3 + $0x1a]]
        %v947 = vstv %s946
        %v948 = vmul.f32 %v947, %v213
        %v949 = vmul.f32 %v947, %v214
        %v950 = vmul.f32 %v947, %v215
        %v954 = vrot.slane %v948, 3
        %v955 = vrot.slane %v949, 3
        %v956 = vsel %vm266, %v954, %v955
        %v957 = vrot.slane %v950, 3
        %v958 = vsel %vm266, %v955, %v957
        %959 = vrot.lane.b32.xlu0 %v956, 123
        %v960 = vpop.permute.xlu0 %959
        %961 = vrot.lane.b32.xlu0 %v958, 123
        %v962 = vpop.permute.xlu0 %961
        %v965 = vadd.f32 %v944, %v960
        %v966 = vadd.f32 %v945, %v962
        %s967 = sld [smem:[#allocation3 + $0x21]]
        %v968 = vstv %s967
        %v969 = vmul.f32 %v968, %v213
        %v970 = vmul.f32 %v968, %v214
        %v971 = vmul.f32 %v968, %v215
        %v975 = vrot.slane %v969, 4
        %v976 = vrot.slane %v970, 4
        %v977 = vsel %vm284, %v975, %v976
        %v978 = vrot.slane %v971, 4
        %v979 = vsel %vm284, %v976, %v978
        %980 = vrot.lane.b32.xlu0 %v977, 123
        %v981 = vpop.permute.xlu0 %980
        %982 = vrot.lane.b32.xlu0 %v979, 123
        %v983 = vpop.permute.xlu0 %982
        %v986 = vadd.f32 %v965, %v981
        %v987 = vadd.f32 %v966, %v983
        %s988 = sld [smem:[#allocation3 + $0x28]]
        %v989 = vstv %s988
        %v990 = vmul.f32 %v989, %v213
        %v991 = vmul.f32 %v989, %v214
        %v992 = vmul.f32 %v989, %v215
        %v996 = vrot.slane %v990, 5
        %v997 = vrot.slane %v991, 5
        %v998 = vsel %vm302, %v996, %v997
        %v999 = vrot.slane %v992, 5
        %v1000 = vsel %vm302, %v997, %v999
        %1001 = vrot.lane.b32.xlu0 %v998, 123
        %v1002 = vpop.permute.xlu0 %1001
        %1003 = vrot.lane.b32.xlu0 %v1000, 123
        %v1004 = vpop.permute.xlu0 %1003
        %v1007 = vadd.f32 %v986, %v1002
        %v1008 = vadd.f32 %v987, %v1004
        %s1009 = sld [smem:[#allocation3 + $0x2f]]
        %v1010 = vstv %s1009
        %v1011 = vmul.f32 %v1010, %v213
        %v1012 = vmul.f32 %v1010, %v214
        %v1013 = vmul.f32 %v1010, %v215
        %v1017 = vrot.slane %v1011, 6
        %v1018 = vrot.slane %v1012, 6
        %v1019 = vsel %vm320, %v1017, %v1018
        %v1020 = vrot.slane %v1013, 6
        %v1021 = vsel %vm320, %v1018, %v1020
        %1022 = vrot.lane.b32.xlu0 %v1019, 123
        %v1023 = vpop.permute.xlu0 %1022
        %1024 = vrot.lane.b32.xlu0 %v1021, 123
        %v1025 = vpop.permute.xlu0 %1024
        %v1028 = vadd.f32 %v1007, %v1023
        %v1029 = vadd.f32 %v1008, %v1025
        %s1030 = sld [smem:[#allocation3 + $0x6]]
        %v1031 = vstv %s1030
        %v1032 = vmul.f32 %v1031, %v213
        %v1033 = vmul.f32 %v1031, %v214
        %1036 = vrot.lane.b32.xlu0 %v1032, 122
        %v1037 = vpop.permute.xlu0 %1036
        %1038 = vrot.lane.b32.xlu0 %v1033, 122
        %v1039 = vpop.permute.xlu0 %1038
        %v1042 = vadd.f32 %v1028, %v1037
        %v1043 = vadd.f32 %v1029, %v1039
        %s1044 = sld [smem:[#allocation3 + $0xd]]
        %v1045 = vstv %s1044
        %v1046 = vmul.f32 %v1045, %v213
        %v1047 = vmul.f32 %v1045, %v214
        %v1048 = vmul.f32 %v1045, %v215
        %v1052 = vrot.slane %v1046, 1
        %v1053 = vrot.slane %v1047, 1
        %v1054 = vsel %vm230, %v1052, %v1053
        %v1055 = vrot.slane %v1048, 1
        %v1056 = vsel %vm230, %v1053, %v1055
        %1057 = vrot.lane.b32.xlu0 %v1054, 122
        %v1058 = vpop.permute.xlu0 %1057
        %1059 = vrot.lane.b32.xlu0 %v1056, 122
        %v1060 = vpop.permute.xlu0 %1059
        %v1063 = vadd.f32 %v1042, %v1058
        %v1064 = vadd.f32 %v1043, %v1060
        %s1065 = sld [smem:[#allocation3 + $0x14]]
        %v1066 = vstv %s1065
        %v1067 = vmul.f32 %v1066, %v213
        %v1068 = vmul.f32 %v1066, %v214
        %v1069 = vmul.f32 %v1066, %v215
        %v1073 = vrot.slane %v1067, 2
        %v1074 = vrot.slane %v1068, 2
        %v1075 = vsel %vm248, %v1073, %v1074
        %v1076 = vrot.slane %v1069, 2
        %v1077 = vsel %vm248, %v1074, %v1076
        %1078 = vrot.lane.b32.xlu0 %v1075, 122
        %v1079 = vpop.permute.xlu0 %1078
        %1080 = vrot.lane.b32.xlu0 %v1077, 122
        %v1081 = vpop.permute.xlu0 %1080
        %v1084 = vadd.f32 %v1063, %v1079
        %v1085 = vadd.f32 %v1064, %v1081
        %s1086 = sld [smem:[#allocation3 + $0x1b]]
        %v1087 = vstv %s1086
        %v1088 = vmul.f32 %v1087, %v213
        %v1089 = vmul.f32 %v1087, %v214
        %v1090 = vmul.f32 %v1087, %v215
        %v1094 = vrot.slane %v1088, 3
        %v1095 = vrot.slane %v1089, 3
        %v1096 = vsel %vm266, %v1094, %v1095
        %v1097 = vrot.slane %v1090, 3
        %v1098 = vsel %vm266, %v1095, %v1097
        %1099 = vrot.lane.b32.xlu0 %v1096, 122
        %v1100 = vpop.permute.xlu0 %1099
        %1101 = vrot.lane.b32.xlu0 %v1098, 122
        %v1102 = vpop.permute.xlu0 %1101
        %v1105 = vadd.f32 %v1084, %v1100
        %v1106 = vadd.f32 %v1085, %v1102
        %s1107 = sld [smem:[#allocation3 + $0x22]]
        %v1108 = vstv %s1107
        %v1109 = vmul.f32 %v1108, %v213
        %v1110 = vmul.f32 %v1108, %v214
        %v1111 = vmul.f32 %v1108, %v215
        %v1115 = vrot.slane %v1109, 4
        %v1116 = vrot.slane %v1110, 4
        %v1117 = vsel %vm284, %v1115, %v1116
        %v1118 = vrot.slane %v1111, 4
        %v1119 = vsel %vm284, %v1116, %v1118
        %1120 = vrot.lane.b32.xlu0 %v1117, 122
        %v1121 = vpop.permute.xlu0 %1120
        %1122 = vrot.lane.b32.xlu0 %v1119, 122
        %v1123 = vpop.permute.xlu0 %1122
        %v1126 = vadd.f32 %v1105, %v1121
        %v1127 = vadd.f32 %v1106, %v1123
        %s1128 = sld [smem:[#allocation3 + $0x29]]
        %v1129 = vstv %s1128
        %v1130 = vmul.f32 %v1129, %v213
        %v1131 = vmul.f32 %v1129, %v214
        %v1132 = vmul.f32 %v1129, %v215
        %v1136 = vrot.slane %v1130, 5
        %v1137 = vrot.slane %v1131, 5
        %v1138 = vsel %vm302, %v1136, %v1137
        %v1139 = vrot.slane %v1132, 5
        %v1140 = vsel %vm302, %v1137, %v1139
        %1141 = vrot.lane.b32.xlu0 %v1138, 122
        %v1142 = vpop.permute.xlu0 %1141
        %1143 = vrot.lane.b32.xlu0 %v1140, 122
        %v1144 = vpop.permute.xlu0 %1143
        %v1147 = vadd.f32 %v1126, %v1142
        %v1148 = vadd.f32 %v1127, %v1144
        %s1149 = sld [smem:[#allocation3 + $0x30]]
        %v1150 = vstv %s1149
        %v1151 = vmul.f32 %v1150, %v213
        %v1152 = vmul.f32 %v1150, %v214
        %v1153 = vmul.f32 %v1150, %v215
        %v1157 = vrot.slane %v1151, 6
        %v1158 = vrot.slane %v1152, 6
        %v1159 = vsel %vm320, %v1157, %v1158
        %v1160 = vrot.slane %v1153, 6
        %v1161 = vsel %vm320, %v1158, %v1160
        %1162 = vrot.lane.b32.xlu0 %v1159, 122
        %v1163 = vpop.permute.xlu0 %1162
        %1164 = vrot.lane.b32.xlu0 %v1161, 122
        %v1165 = vpop.permute.xlu0 %1164
        %v1168 = vadd.f32 %v1147, %v1163
        %v1169 = vadd.f32 %v1148, %v1165
        %s1170 = sadd.s32 %s209, 24
        %s1171 = scalar_lea.vmem %s198, %s1170
        %v1172 = vld [vmem:[%s1171] sm:$0xff]
        %v1173 = vld [vmem:[%s1171 + $0x8] sm:$0xff]
        %v1174 = vld [vmem:[%s1171 + $0x10] sm:$0x3f]
        %s1175 = sld [smem:[#allocation3 + $0x31]]
        %v1176 = vstv %s1175
        %v1177 = vmul.f32 %v1176, %v1172
        %v1178 = vmul.f32 %v1176, %v1173
        %v1179 = vadd.f32 %v1168, %v1177
        %v1180 = vadd.f32 %v1169, %v1178
        %s1181 = sld [smem:[#allocation3 + $0x38]]
        %v1182 = vstv %s1181
        %v1183 = vmul.f32 %v1182, %v1172
        %v1184 = vmul.f32 %v1182, %v1173
        %v1185 = vmul.f32 %v1182, %v1174
        %v1189 = vrot.slane %v1183, 1
        %v1190 = vrot.slane %v1184, 1
        %v1191 = vsel %vm230, %v1189, %v1190
        %v1192 = vrot.slane %v1185, 1
        %v1193 = vsel %vm230, %v1190, %v1192
        %v1196 = vadd.f32 %v1179, %v1191
        %v1197 = vadd.f32 %v1180, %v1193
        %s1198 = sld [smem:[#allocation3 + $0x3f]]
        %v1199 = vstv %s1198
        %v1200 = vmul.f32 %v1199, %v1172
        %v1201 = vmul.f32 %v1199, %v1173
        %v1202 = vmul.f32 %v1199, %v1174
        %v1206 = vrot.slane %v1200, 2
        %v1207 = vrot.slane %v1201, 2
        %v1208 = vsel %vm248, %v1206, %v1207
        %v1209 = vrot.slane %v1202, 2
        %v1210 = vsel %vm248, %v1207, %v1209
        %v1213 = vadd.f32 %v1196, %v1208
        %v1214 = vadd.f32 %v1197, %v1210
        %s1215 = sld [smem:[#allocation3 + $0x46]]
        %v1216 = vstv %s1215
        %v1217 = vmul.f32 %v1216, %v1172
        %v1218 = vmul.f32 %v1216, %v1173
        %v1219 = vmul.f32 %v1216, %v1174
        %v1223 = vrot.slane %v1217, 3
        %v1224 = vrot.slane %v1218, 3
        %v1225 = vsel %vm266, %v1223, %v1224
        %v1226 = vrot.slane %v1219, 3
        %v1227 = vsel %vm266, %v1224, %v1226
        %v1230 = vadd.f32 %v1213, %v1225
        %v1231 = vadd.f32 %v1214, %v1227
        %s1232 = sld [smem:[#allocation3 + $0x4d]]
        %v1233 = vstv %s1232
        %v1234 = vmul.f32 %v1233, %v1172
        %v1235 = vmul.f32 %v1233, %v1173
        %v1236 = vmul.f32 %v1233, %v1174
        %v1240 = vrot.slane %v1234, 4
        %v1241 = vrot.slane %v1235, 4
        %v1242 = vsel %vm284, %v1240, %v1241
        %v1243 = vrot.slane %v1236, 4
        %v1244 = vsel %vm284, %v1241, %v1243
        %v1247 = vadd.f32 %v1230, %v1242
        %v1248 = vadd.f32 %v1231, %v1244
        %s1249 = sld [smem:[#allocation3 + $0x54]]
        %v1250 = vstv %s1249
        %v1251 = vmul.f32 %v1250, %v1172
        %v1252 = vmul.f32 %v1250, %v1173
        %v1253 = vmul.f32 %v1250, %v1174
        %v1257 = vrot.slane %v1251, 5
        %v1258 = vrot.slane %v1252, 5
        %v1259 = vsel %vm302, %v1257, %v1258
        %v1260 = vrot.slane %v1253, 5
        %v1261 = vsel %vm302, %v1258, %v1260
        %v1264 = vadd.f32 %v1247, %v1259
        %v1265 = vadd.f32 %v1248, %v1261
        %s1266 = sld [smem:[#allocation3 + $0x5b]]
        %v1267 = vstv %s1266
        %v1268 = vmul.f32 %v1267, %v1172
        %v1269 = vmul.f32 %v1267, %v1173
        %v1270 = vmul.f32 %v1267, %v1174
        %v1274 = vrot.slane %v1268, 6
        %v1275 = vrot.slane %v1269, 6
        %v1276 = vsel %vm320, %v1274, %v1275
        %v1277 = vrot.slane %v1270, 6
        %v1278 = vsel %vm320, %v1275, %v1277
        %v1281 = vadd.f32 %v1264, %v1276
        %v1282 = vadd.f32 %v1265, %v1278
        %s1283 = sld [smem:[#allocation3 + $0x32]]
        %v1284 = vstv %s1283
        %v1285 = vmul.f32 %v1284, %v1172
        %v1286 = vmul.f32 %v1284, %v1173
        %1289 = vrot.lane.b32.xlu0 %v1285, 127
        %v1290 = vpop.permute.xlu0 %1289
        %1291 = vrot.lane.b32.xlu0 %v1286, 127
        %v1292 = vpop.permute.xlu0 %1291
        %v1295 = vadd.f32 %v1281, %v1290
        %v1296 = vadd.f32 %v1282, %v1292
        %s1297 = sld [smem:[#allocation3 + $0x39]]
        %v1298 = vstv %s1297
        %v1299 = vmul.f32 %v1298, %v1172
        %v1300 = vmul.f32 %v1298, %v1173
        %v1301 = vmul.f32 %v1298, %v1174
        %v1305 = vrot.slane %v1299, 1
        %v1306 = vrot.slane %v1300, 1
        %v1307 = vsel %vm230, %v1305, %v1306
        %v1308 = vrot.slane %v1301, 1
        %v1309 = vsel %vm230, %v1306, %v1308
        %1310 = vrot.lane.b32.xlu0 %v1307, 127
        %v1311 = vpop.permute.xlu0 %1310
        %1312 = vrot.lane.b32.xlu0 %v1309, 127
        %v1313 = vpop.permute.xlu0 %1312
        %v1316 = vadd.f32 %v1295, %v1311
        %v1317 = vadd.f32 %v1296, %v1313
        %s1318 = sld [smem:[#allocation3 + $0x40]]
        %v1319 = vstv %s1318
        %v1320 = vmul.f32 %v1319, %v1172
        %v1321 = vmul.f32 %v1319, %v1173
        %v1322 = vmul.f32 %v1319, %v1174
        %v1326 = vrot.slane %v1320, 2
        %v1327 = vrot.slane %v1321, 2
        %v1328 = vsel %vm248, %v1326, %v1327
        %v1329 = vrot.slane %v1322, 2
        %v1330 = vsel %vm248, %v1327, %v1329
        %1331 = vrot.lane.b32.xlu0 %v1328, 127
        %v1332 = vpop.permute.xlu0 %1331
        %1333 = vrot.lane.b32.xlu0 %v1330, 127
        %v1334 = vpop.permute.xlu0 %1333
        %v1337 = vadd.f32 %v1316, %v1332
        %v1338 = vadd.f32 %v1317, %v1334
        %s1339 = sld [smem:[#allocation3 + $0x47]]
        %v1340 = vstv %s1339
        %v1341 = vmul.f32 %v1340, %v1172
        %v1342 = vmul.f32 %v1340, %v1173
        %v1343 = vmul.f32 %v1340, %v1174
        %v1347 = vrot.slane %v1341, 3
        %v1348 = vrot.slane %v1342, 3
        %v1349 = vsel %vm266, %v1347, %v1348
        %v1350 = vrot.slane %v1343, 3
        %v1351 = vsel %vm266, %v1348, %v1350
        %1352 = vrot.lane.b32.xlu0 %v1349, 127
        %v1353 = vpop.permute.xlu0 %1352
        %1354 = vrot.lane.b32.xlu0 %v1351, 127
        %v1355 = vpop.permute.xlu0 %1354
        %v1358 = vadd.f32 %v1337, %v1353
        %v1359 = vadd.f32 %v1338, %v1355
        %s1360 = sld [smem:[#allocation3 + $0x4e]]
        %v1361 = vstv %s1360
        %v1362 = vmul.f32 %v1361, %v1172
        %v1363 = vmul.f32 %v1361, %v1173
        %v1364 = vmul.f32 %v1361, %v1174
        %v1368 = vrot.slane %v1362, 4
        %v1369 = vrot.slane %v1363, 4
        %v1370 = vsel %vm284, %v1368, %v1369
        %v1371 = vrot.slane %v1364, 4
        %v1372 = vsel %vm284, %v1369, %v1371
        %1373 = vrot.lane.b32.xlu0 %v1370, 127
        %v1374 = vpop.permute.xlu0 %1373
        %1375 = vrot.lane.b32.xlu0 %v1372, 127
        %v1376 = vpop.permute.xlu0 %1375
        %v1379 = vadd.f32 %v1358, %v1374
        %v1380 = vadd.f32 %v1359, %v1376
        %s1381 = sld [smem:[#allocation3 + $0x55]]
        %v1382 = vstv %s1381
        %v1383 = vmul.f32 %v1382, %v1172
        %v1384 = vmul.f32 %v1382, %v1173
        %v1385 = vmul.f32 %v1382, %v1174
        %v1389 = vrot.slane %v1383, 5
        %v1390 = vrot.slane %v1384, 5
        %v1391 = vsel %vm302, %v1389, %v1390
        %v1392 = vrot.slane %v1385, 5
        %v1393 = vsel %vm302, %v1390, %v1392
        %1394 = vrot.lane.b32.xlu0 %v1391, 127
        %v1395 = vpop.permute.xlu0 %1394
        %1396 = vrot.lane.b32.xlu0 %v1393, 127
        %v1397 = vpop.permute.xlu0 %1396
        %v1400 = vadd.f32 %v1379, %v1395
        %v1401 = vadd.f32 %v1380, %v1397
        %s1402 = sld [smem:[#allocation3 + $0x5c]]
        %v1403 = vstv %s1402
        %v1404 = vmul.f32 %v1403, %v1172
        %v1405 = vmul.f32 %v1403, %v1173
        %v1406 = vmul.f32 %v1403, %v1174
        %v1410 = vrot.slane %v1404, 6
        %v1411 = vrot.slane %v1405, 6
        %v1412 = vsel %vm320, %v1410, %v1411
        %v1413 = vrot.slane %v1406, 6
        %v1414 = vsel %vm320, %v1411, %v1413
        %1415 = vrot.lane.b32.xlu0 %v1412, 127
        %v1416 = vpop.permute.xlu0 %1415
        %1417 = vrot.lane.b32.xlu0 %v1414, 127
        %v1418 = vpop.permute.xlu0 %1417
        %v1421 = vadd.f32 %v1400, %v1416
        %v1422 = vadd.f32 %v1401, %v1418
        %s1423 = sld [smem:[#allocation3 + $0x33]]
        %v1424 = vstv %s1423
        %v1425 = vmul.f32 %v1424, %v1172
        %v1426 = vmul.f32 %v1424, %v1173
        %1429 = vrot.lane.b32.xlu0 %v1425, 126
        %v1430 = vpop.permute.xlu0 %1429
        %1431 = vrot.lane.b32.xlu0 %v1426, 126
        %v1432 = vpop.permute.xlu0 %1431
        %v1435 = vadd.f32 %v1421, %v1430
        %v1436 = vadd.f32 %v1422, %v1432
        %s1437 = sld [smem:[#allocation3 + $0x3a]]
        %v1438 = vstv %s1437
        %v1439 = vmul.f32 %v1438, %v1172
        %v1440 = vmul.f32 %v1438, %v1173
        %v1441 = vmul.f32 %v1438, %v1174
        %v1445 = vrot.slane %v1439, 1
        %v1446 = vrot.slane %v1440, 1
        %v1447 = vsel %vm230, %v1445, %v1446
        %v1448 = vrot.slane %v1441, 1
        %v1449 = vsel %vm230, %v1446, %v1448
        %1450 = vrot.lane.b32.xlu0 %v1447, 126
        %v1451 = vpop.permute.xlu0 %1450
        %1452 = vrot.lane.b32.xlu0 %v1449, 126
        %v1453 = vpop.permute.xlu0 %1452
        %v1456 = vadd.f32 %v1435, %v1451
        %v1457 = vadd.f32 %v1436, %v1453
        %s1458 = sld [smem:[#allocation3 + $0x41]]
        %v1459 = vstv %s1458
        %v1460 = vmul.f32 %v1459, %v1172
        %v1461 = vmul.f32 %v1459, %v1173
        %v1462 = vmul.f32 %v1459, %v1174
        %v1466 = vrot.slane %v1460, 2
        %v1467 = vrot.slane %v1461, 2
        %v1468 = vsel %vm248, %v1466, %v1467
        %v1469 = vrot.slane %v1462, 2
        %v1470 = vsel %vm248, %v1467, %v1469
        %1471 = vrot.lane.b32.xlu0 %v1468, 126
        %v1472 = vpop.permute.xlu0 %1471
        %1473 = vrot.lane.b32.xlu0 %v1470, 126
        %v1474 = vpop.permute.xlu0 %1473
        %v1477 = vadd.f32 %v1456, %v1472
        %v1478 = vadd.f32 %v1457, %v1474
        %s1479 = sld [smem:[#allocation3 + $0x48]]
        %v1480 = vstv %s1479
        %v1481 = vmul.f32 %v1480, %v1172
        %v1482 = vmul.f32 %v1480, %v1173
        %v1483 = vmul.f32 %v1480, %v1174
        %v1487 = vrot.slane %v1481, 3
        %v1488 = vrot.slane %v1482, 3
        %v1489 = vsel %vm266, %v1487, %v1488
        %v1490 = vrot.slane %v1483, 3
        %v1491 = vsel %vm266, %v1488, %v1490
        %1492 = vrot.lane.b32.xlu0 %v1489, 126
        %v1493 = vpop.permute.xlu0 %1492
        %1494 = vrot.lane.b32.xlu0 %v1491, 126
        %v1495 = vpop.permute.xlu0 %1494
        %v1498 = vadd.f32 %v1477, %v1493
        %v1499 = vadd.f32 %v1478, %v1495
        %s1500 = sld [smem:[#allocation3 + $0x4f]]
        %v1501 = vstv %s1500
        %v1502 = vmul.f32 %v1501, %v1172
        %v1503 = vmul.f32 %v1501, %v1173
        %v1504 = vmul.f32 %v1501, %v1174
        %v1508 = vrot.slane %v1502, 4
        %v1509 = vrot.slane %v1503, 4
        %v1510 = vsel %vm284, %v1508, %v1509
        %v1511 = vrot.slane %v1504, 4
        %v1512 = vsel %vm284, %v1509, %v1511
        %1513 = vrot.lane.b32.xlu0 %v1510, 126
        %v1514 = vpop.permute.xlu0 %1513
        %1515 = vrot.lane.b32.xlu0 %v1512, 126
        %v1516 = vpop.permute.xlu0 %1515
        %v1519 = vadd.f32 %v1498, %v1514
        %v1520 = vadd.f32 %v1499, %v1516
        %s1521 = sld [smem:[#allocation3 + $0x56]]
        %v1522 = vstv %s1521
        %v1523 = vmul.f32 %v1522, %v1172
        %v1524 = vmul.f32 %v1522, %v1173
        %v1525 = vmul.f32 %v1522, %v1174
        %v1529 = vrot.slane %v1523, 5
        %v1530 = vrot.slane %v1524, 5
        %v1531 = vsel %vm302, %v1529, %v1530
        %v1532 = vrot.slane %v1525, 5
        %v1533 = vsel %vm302, %v1530, %v1532
        %1534 = vrot.lane.b32.xlu0 %v1531, 126
        %v1535 = vpop.permute.xlu0 %1534
        %1536 = vrot.lane.b32.xlu0 %v1533, 126
        %v1537 = vpop.permute.xlu0 %1536
        %v1540 = vadd.f32 %v1519, %v1535
        %v1541 = vadd.f32 %v1520, %v1537
        %s1542 = sld [smem:[#allocation3 + $0x5d]]
        %v1543 = vstv %s1542
        %v1544 = vmul.f32 %v1543, %v1172
        %v1545 = vmul.f32 %v1543, %v1173
        %v1546 = vmul.f32 %v1543, %v1174
        %v1550 = vrot.slane %v1544, 6
        %v1551 = vrot.slane %v1545, 6
        %v1552 = vsel %vm320, %v1550, %v1551
        %v1553 = vrot.slane %v1546, 6
        %v1554 = vsel %vm320, %v1551, %v1553
        %1555 = vrot.lane.b32.xlu0 %v1552, 126
        %v1556 = vpop.permute.xlu0 %1555
        %1557 = vrot.lane.b32.xlu0 %v1554, 126
        %v1558 = vpop.permute.xlu0 %1557
        %v1561 = vadd.f32 %v1540, %v1556
        %v1562 = vadd.f32 %v1541, %v1558
        %s1563 = sld [smem:[#allocation3 + $0x34]]
        %v1564 = vstv %s1563
        %v1565 = vmul.f32 %v1564, %v1172
        %v1566 = vmul.f32 %v1564, %v1173
        %1569 = vrot.lane.b32.xlu0 %v1565, 125
        %v1570 = vpop.permute.xlu0 %1569
        %1571 = vrot.lane.b32.xlu0 %v1566, 125
        %v1572 = vpop.permute.xlu0 %1571
        %v1575 = vadd.f32 %v1561, %v1570
        %v1576 = vadd.f32 %v1562, %v1572
        %s1577 = sld [smem:[#allocation3 + $0x3b]]
        %v1578 = vstv %s1577
        %v1579 = vmul.f32 %v1578, %v1172
        %v1580 = vmul.f32 %v1578, %v1173
        %v1581 = vmul.f32 %v1578, %v1174
        %v1585 = vrot.slane %v1579, 1
        %v1586 = vrot.slane %v1580, 1
        %v1587 = vsel %vm230, %v1585, %v1586
        %v1588 = vrot.slane %v1581, 1
        %v1589 = vsel %vm230, %v1586, %v1588
        %1590 = vrot.lane.b32.xlu0 %v1587, 125
        %v1591 = vpop.permute.xlu0 %1590
        %1592 = vrot.lane.b32.xlu0 %v1589, 125
        %v1593 = vpop.permute.xlu0 %1592
        %v1596 = vadd.f32 %v1575, %v1591
        %v1597 = vadd.f32 %v1576, %v1593
        %s1598 = sld [smem:[#allocation3 + $0x42]]
        %v1599 = vstv %s1598
        %v1600 = vmul.f32 %v1599, %v1172
        %v1601 = vmul.f32 %v1599, %v1173
        %v1602 = vmul.f32 %v1599, %v1174
        %v1606 = vrot.slane %v1600, 2
        %v1607 = vrot.slane %v1601, 2
        %v1608 = vsel %vm248, %v1606, %v1607
        %v1609 = vrot.slane %v1602, 2
        %v1610 = vsel %vm248, %v1607, %v1609
        %1611 = vrot.lane.b32.xlu0 %v1608, 125
        %v1612 = vpop.permute.xlu0 %1611
        %1613 = vrot.lane.b32.xlu0 %v1610, 125
        %v1614 = vpop.permute.xlu0 %1613
        %v1617 = vadd.f32 %v1596, %v1612
        %v1618 = vadd.f32 %v1597, %v1614
        %s1619 = sld [smem:[#allocation3 + $0x49]]
        %v1620 = vstv %s1619
        %v1621 = vmul.f32 %v1620, %v1172
        %v1622 = vmul.f32 %v1620, %v1173
        %v1623 = vmul.f32 %v1620, %v1174
        %v1627 = vrot.slane %v1621, 3
        %v1628 = vrot.slane %v1622, 3
        %v1629 = vsel %vm266, %v1627, %v1628
        %v1630 = vrot.slane %v1623, 3
        %v1631 = vsel %vm266, %v1628, %v1630
        %1632 = vrot.lane.b32.xlu0 %v1629, 125
        %v1633 = vpop.permute.xlu0 %1632
        %1634 = vrot.lane.b32.xlu0 %v1631, 125
        %v1635 = vpop.permute.xlu0 %1634
        %v1638 = vadd.f32 %v1617, %v1633
        %v1639 = vadd.f32 %v1618, %v1635
        %s1640 = sld [smem:[#allocation3 + $0x50]]
        %v1641 = vstv %s1640
        %v1642 = vmul.f32 %v1641, %v1172
        %v1643 = vmul.f32 %v1641, %v1173
        %v1644 = vmul.f32 %v1641, %v1174
        %v1648 = vrot.slane %v1642, 4
        %v1649 = vrot.slane %v1643, 4
        %v1650 = vsel %vm284, %v1648, %v1649
        %v1651 = vrot.slane %v1644, 4
        %v1652 = vsel %vm284, %v1649, %v1651
        %1653 = vrot.lane.b32.xlu0 %v1650, 125
        %v1654 = vpop.permute.xlu0 %1653
        %1655 = vrot.lane.b32.xlu0 %v1652, 125
        %v1656 = vpop.permute.xlu0 %1655
        %v1659 = vadd.f32 %v1638, %v1654
        %v1660 = vadd.f32 %v1639, %v1656
        %s1661 = sld [smem:[#allocation3 + $0x57]]
        %v1662 = vstv %s1661
        %v1663 = vmul.f32 %v1662, %v1172
        %v1664 = vmul.f32 %v1662, %v1173
        %v1665 = vmul.f32 %v1662, %v1174
        %v1669 = vrot.slane %v1663, 5
        %v1670 = vrot.slane %v1664, 5
        %v1671 = vsel %vm302, %v1669, %v1670
        %v1672 = vrot.slane %v1665, 5
        %v1673 = vsel %vm302, %v1670, %v1672
        %1674 = vrot.lane.b32.xlu0 %v1671, 125
        %v1675 = vpop.permute.xlu0 %1674
        %1676 = vrot.lane.b32.xlu0 %v1673, 125
        %v1677 = vpop.permute.xlu0 %1676
        %v1680 = vadd.f32 %v1659, %v1675
        %v1681 = vadd.f32 %v1660, %v1677
        %s1682 = sld [smem:[#allocation3 + $0x5e]]
        %v1683 = vstv %s1682
        %v1684 = vmul.f32 %v1683, %v1172
        %v1685 = vmul.f32 %v1683, %v1173
        %v1686 = vmul.f32 %v1683, %v1174
        %v1690 = vrot.slane %v1684, 6
        %v1691 = vrot.slane %v1685, 6
        %v1692 = vsel %vm320, %v1690, %v1691
        %v1693 = vrot.slane %v1686, 6
        %v1694 = vsel %vm320, %v1691, %v1693
        %1695 = vrot.lane.b32.xlu0 %v1692, 125
        %v1696 = vpop.permute.xlu0 %1695
        %1697 = vrot.lane.b32.xlu0 %v1694, 125
        %v1698 = vpop.permute.xlu0 %1697
        %v1701 = vadd.f32 %v1680, %v1696
        %v1702 = vadd.f32 %v1681, %v1698
        %s1703 = sld [smem:[#allocation3 + $0x35]]
        %v1704 = vstv %s1703
        %v1705 = vmul.f32 %v1704, %v1172
        %v1706 = vmul.f32 %v1704, %v1173
        %1709 = vrot.lane.b32.xlu0 %v1705, 124
        %v1710 = vpop.permute.xlu0 %1709
        %1711 = vrot.lane.b32.xlu0 %v1706, 124
        %v1712 = vpop.permute.xlu0 %1711
        %v1715 = vadd.f32 %v1701, %v1710
        %v1716 = vadd.f32 %v1702, %v1712
        %s1717 = sld [smem:[#allocation3 + $0x3c]]
        %v1718 = vstv %s1717
        %v1719 = vmul.f32 %v1718, %v1172
        %v1720 = vmul.f32 %v1718, %v1173
        %v1721 = vmul.f32 %v1718, %v1174
        %v1725 = vrot.slane %v1719, 1
        %v1726 = vrot.slane %v1720, 1
        %v1727 = vsel %vm230, %v1725, %v1726
        %v1728 = vrot.slane %v1721, 1
        %v1729 = vsel %vm230, %v1726, %v1728
        %1730 = vrot.lane.b32.xlu0 %v1727, 124
        %v1731 = vpop.permute.xlu0 %1730
        %1732 = vrot.lane.b32.xlu0 %v1729, 124
        %v1733 = vpop.permute.xlu0 %1732
        %v1736 = vadd.f32 %v1715, %v1731
        %v1737 = vadd.f32 %v1716, %v1733
        %s1738 = sld [smem:[#allocation3 + $0x43]]
        %v1739 = vstv %s1738
        %v1740 = vmul.f32 %v1739, %v1172
        %v1741 = vmul.f32 %v1739, %v1173
        %v1742 = vmul.f32 %v1739, %v1174
        %v1746 = vrot.slane %v1740, 2
        %v1747 = vrot.slane %v1741, 2
        %v1748 = vsel %vm248, %v1746, %v1747
        %v1749 = vrot.slane %v1742, 2
        %v1750 = vsel %vm248, %v1747, %v1749
        %1751 = vrot.lane.b32.xlu0 %v1748, 124
        %v1752 = vpop.permute.xlu0 %1751
        %1753 = vrot.lane.b32.xlu0 %v1750, 124
        %v1754 = vpop.permute.xlu0 %1753
        %v1757 = vadd.f32 %v1736, %v1752
        %v1758 = vadd.f32 %v1737, %v1754
        %s1759 = sld [smem:[#allocation3 + $0x4a]]
        %v1760 = vstv %s1759
        %v1761 = vmul.f32 %v1760, %v1172
        %v1762 = vmul.f32 %v1760, %v1173
        %v1763 = vmul.f32 %v1760, %v1174
        %v1767 = vrot.slane %v1761, 3
        %v1768 = vrot.slane %v1762, 3
        %v1769 = vsel %vm266, %v1767, %v1768
        %v1770 = vrot.slane %v1763, 3
        %v1771 = vsel %vm266, %v1768, %v1770
        %1772 = vrot.lane.b32.xlu0 %v1769, 124
        %v1773 = vpop.permute.xlu0 %1772
        %1774 = vrot.lane.b32.xlu0 %v1771, 124
        %v1775 = vpop.permute.xlu0 %1774
        %v1778 = vadd.f32 %v1757, %v1773
        %v1779 = vadd.f32 %v1758, %v1775
        %s1780 = sld [smem:[#allocation3 + $0x51]]
        %v1781 = vstv %s1780
        %v1782 = vmul.f32 %v1781, %v1172
        %v1783 = vmul.f32 %v1781, %v1173
        %v1784 = vmul.f32 %v1781, %v1174
        %v1788 = vrot.slane %v1782, 4
        %v1789 = vrot.slane %v1783, 4
        %v1790 = vsel %vm284, %v1788, %v1789
        %v1791 = vrot.slane %v1784, 4
        %v1792 = vsel %vm284, %v1789, %v1791
        %1793 = vrot.lane.b32.xlu0 %v1790, 124
        %v1794 = vpop.permute.xlu0 %1793
        %1795 = vrot.lane.b32.xlu0 %v1792, 124
        %v1796 = vpop.permute.xlu0 %1795
        %v1799 = vadd.f32 %v1778, %v1794
        %v1800 = vadd.f32 %v1779, %v1796
        %s1801 = sld [smem:[#allocation3 + $0x58]]
        %v1802 = vstv %s1801
        %v1803 = vmul.f32 %v1802, %v1172
        %v1804 = vmul.f32 %v1802, %v1173
        %v1805 = vmul.f32 %v1802, %v1174
        %v1809 = vrot.slane %v1803, 5
        %v1810 = vrot.slane %v1804, 5
        %v1811 = vsel %vm302, %v1809, %v1810
        %v1812 = vrot.slane %v1805, 5
        %v1813 = vsel %vm302, %v1810, %v1812
        %1814 = vrot.lane.b32.xlu0 %v1811, 124
        %v1815 = vpop.permute.xlu0 %1814
        %1816 = vrot.lane.b32.xlu0 %v1813, 124
        %v1817 = vpop.permute.xlu0 %1816
        %v1820 = vadd.f32 %v1799, %v1815
        %v1821 = vadd.f32 %v1800, %v1817
        %s1822 = sld [smem:[#allocation3 + $0x5f]]
        %v1823 = vstv %s1822
        %v1824 = vmul.f32 %v1823, %v1172
        %v1825 = vmul.f32 %v1823, %v1173
        %v1826 = vmul.f32 %v1823, %v1174
        %v1830 = vrot.slane %v1824, 6
        %v1831 = vrot.slane %v1825, 6
        %v1832 = vsel %vm320, %v1830, %v1831
        %v1833 = vrot.slane %v1826, 6
        %v1834 = vsel %vm320, %v1831, %v1833
        %1835 = vrot.lane.b32.xlu0 %v1832, 124
        %v1836 = vpop.permute.xlu0 %1835
        %1837 = vrot.lane.b32.xlu0 %v1834, 124
        %v1838 = vpop.permute.xlu0 %1837
        %v1841 = vadd.f32 %v1820, %v1836
        %v1842 = vadd.f32 %v1821, %v1838
        %s1843 = sld [smem:[#allocation3 + $0x36]]
        %v1844 = vstv %s1843
        %v1845 = vmul.f32 %v1844, %v1172
        %v1846 = vmul.f32 %v1844, %v1173
        %1849 = vrot.lane.b32.xlu0 %v1845, 123
        %v1850 = vpop.permute.xlu0 %1849
        %1851 = vrot.lane.b32.xlu0 %v1846, 123
        %v1852 = vpop.permute.xlu0 %1851
        %v1855 = vadd.f32 %v1841, %v1850
        %v1856 = vadd.f32 %v1842, %v1852
        %s1857 = sld [smem:[#allocation3 + $0x3d]]
        %v1858 = vstv %s1857
        %v1859 = vmul.f32 %v1858, %v1172
        %v1860 = vmul.f32 %v1858, %v1173
        %v1861 = vmul.f32 %v1858, %v1174
        %v1865 = vrot.slane %v1859, 1
        %v1866 = vrot.slane %v1860, 1
        %v1867 = vsel %vm230, %v1865, %v1866
        %v1868 = vrot.slane %v1861, 1
        %v1869 = vsel %vm230, %v1866, %v1868
        %1870 = vrot.lane.b32.xlu0 %v1867, 123
        %v1871 = vpop.permute.xlu0 %1870
        %1872 = vrot.lane.b32.xlu0 %v1869, 123
        %v1873 = vpop.permute.xlu0 %1872
        %v1876 = vadd.f32 %v1855, %v1871
        %v1877 = vadd.f32 %v1856, %v1873
        %s1878 = sld [smem:[#allocation3 + $0x44]]
        %v1879 = vstv %s1878
        %v1880 = vmul.f32 %v1879, %v1172
        %v1881 = vmul.f32 %v1879, %v1173
        %v1882 = vmul.f32 %v1879, %v1174
        %v1886 = vrot.slane %v1880, 2
        %v1887 = vrot.slane %v1881, 2
        %v1888 = vsel %vm248, %v1886, %v1887
        %v1889 = vrot.slane %v1882, 2
        %v1890 = vsel %vm248, %v1887, %v1889
        %1891 = vrot.lane.b32.xlu0 %v1888, 123
        %v1892 = vpop.permute.xlu0 %1891
        %1893 = vrot.lane.b32.xlu0 %v1890, 123
        %v1894 = vpop.permute.xlu0 %1893
        %v1897 = vadd.f32 %v1876, %v1892
        %v1898 = vadd.f32 %v1877, %v1894
        %s1899 = sld [smem:[#allocation3 + $0x4b]]
        %v1900 = vstv %s1899
        %v1901 = vmul.f32 %v1900, %v1172
        %v1902 = vmul.f32 %v1900, %v1173
        %v1903 = vmul.f32 %v1900, %v1174
        %v1907 = vrot.slane %v1901, 3
        %v1908 = vrot.slane %v1902, 3
        %v1909 = vsel %vm266, %v1907, %v1908
        %v1910 = vrot.slane %v1903, 3
        %v1911 = vsel %vm266, %v1908, %v1910
        %1912 = vrot.lane.b32.xlu0 %v1909, 123
        %v1913 = vpop.permute.xlu0 %1912
        %1914 = vrot.lane.b32.xlu0 %v1911, 123
        %v1915 = vpop.permute.xlu0 %1914
        %v1918 = vadd.f32 %v1897, %v1913
        %v1919 = vadd.f32 %v1898, %v1915
        %s1920 = sld [smem:[#allocation3 + $0x52]]
        %v1921 = vstv %s1920
        %v1922 = vmul.f32 %v1921, %v1172
        %v1923 = vmul.f32 %v1921, %v1173
        %v1924 = vmul.f32 %v1921, %v1174
        %v1928 = vrot.slane %v1922, 4
        %v1929 = vrot.slane %v1923, 4
        %v1930 = vsel %vm284, %v1928, %v1929
        %v1931 = vrot.slane %v1924, 4
        %v1932 = vsel %vm284, %v1929, %v1931
        %1933 = vrot.lane.b32.xlu0 %v1930, 123
        %v1934 = vpop.permute.xlu0 %1933
        %1935 = vrot.lane.b32.xlu0 %v1932, 123
        %v1936 = vpop.permute.xlu0 %1935
        %v1939 = vadd.f32 %v1918, %v1934
        %v1940 = vadd.f32 %v1919, %v1936
        %s1941 = sld [smem:[#allocation3 + $0x59]]
        %v1942 = vstv %s1941
        %v1943 = vmul.f32 %v1942, %v1172
        %v1944 = vmul.f32 %v1942, %v1173
        %v1945 = vmul.f32 %v1942, %v1174
        %v1949 = vrot.slane %v1943, 5
        %v1950 = vrot.slane %v1944, 5
        %v1951 = vsel %vm302, %v1949, %v1950
        %v1952 = vrot.slane %v1945, 5
        %v1953 = vsel %vm302, %v1950, %v1952
        %1954 = vrot.lane.b32.xlu0 %v1951, 123
        %v1955 = vpop.permute.xlu0 %1954
        %1956 = vrot.lane.b32.xlu0 %v1953, 123
        %v1957 = vpop.permute.xlu0 %1956
        %v1960 = vadd.f32 %v1939, %v1955
        %v1961 = vadd.f32 %v1940, %v1957
        %s1962 = sld [smem:[#allocation3 + $0x60]]
        %v1963 = vstv %s1962
        %v1964 = vmul.f32 %v1963, %v1172
        %v1965 = vmul.f32 %v1963, %v1173
        %v1966 = vmul.f32 %v1963, %v1174
        %v1970 = vrot.slane %v1964, 6
        %v1971 = vrot.slane %v1965, 6
        %v1972 = vsel %vm320, %v1970, %v1971
        %v1973 = vrot.slane %v1966, 6
        %v1974 = vsel %vm320, %v1971, %v1973
        %1975 = vrot.lane.b32.xlu0 %v1972, 123
        %v1976 = vpop.permute.xlu0 %1975
        %1977 = vrot.lane.b32.xlu0 %v1974, 123
        %v1978 = vpop.permute.xlu0 %1977
        %v1981 = vadd.f32 %v1960, %v1976
        %v1982 = vadd.f32 %v1961, %v1978
        %s1983 = sld [smem:[#allocation3 + $0x37]]
        %v1984 = vstv %s1983
        %v1985 = vmul.f32 %v1984, %v1172
        %v1986 = vmul.f32 %v1984, %v1173
        %1989 = vrot.lane.b32.xlu0 %v1985, 122
        %v1990 = vpop.permute.xlu0 %1989
        %1991 = vrot.lane.b32.xlu0 %v1986, 122
        %v1992 = vpop.permute.xlu0 %1991
        %v1995 = vadd.f32 %v1981, %v1990
        %v1996 = vadd.f32 %v1982, %v1992
        %s1997 = sld [smem:[#allocation3 + $0x3e]]
        %v1998 = vstv %s1997
        %v1999 = vmul.f32 %v1998, %v1172
        %v2000 = vmul.f32 %v1998, %v1173
        %v2001 = vmul.f32 %v1998, %v1174
        %v2005 = vrot.slane %v1999, 1
        %v2006 = vrot.slane %v2000, 1
        %v2007 = vsel %vm230, %v2005, %v2006
        %v2008 = vrot.slane %v2001, 1
        %v2009 = vsel %vm230, %v2006, %v2008
        %2010 = vrot.lane.b32.xlu0 %v2007, 122
        %v2011 = vpop.permute.xlu0 %2010
        %2012 = vrot.lane.b32.xlu0 %v2009, 122
        %v2013 = vpop.permute.xlu0 %2012
        %v2016 = vadd.f32 %v1995, %v2011
        %v2017 = vadd.f32 %v1996, %v2013
        %s2018 = sld [smem:[#allocation3 + $0x45]]
        %v2019 = vstv %s2018
        %v2020 = vmul.f32 %v2019, %v1172
        %v2021 = vmul.f32 %v2019, %v1173
        %v2022 = vmul.f32 %v2019, %v1174
        %v2026 = vrot.slane %v2020, 2
        %v2027 = vrot.slane %v2021, 2
        %v2028 = vsel %vm248, %v2026, %v2027
        %v2029 = vrot.slane %v2022, 2
        %v2030 = vsel %vm248, %v2027, %v2029
        %2031 = vrot.lane.b32.xlu0 %v2028, 122
        %v2032 = vpop.permute.xlu0 %2031
        %2033 = vrot.lane.b32.xlu0 %v2030, 122
        %v2034 = vpop.permute.xlu0 %2033
        %v2037 = vadd.f32 %v2016, %v2032
        %v2038 = vadd.f32 %v2017, %v2034
        %s2039 = sld [smem:[#allocation3 + $0x4c]]
        %v2040 = vstv %s2039
        %v2041 = vmul.f32 %v2040, %v1172
        %v2042 = vmul.f32 %v2040, %v1173
        %v2043 = vmul.f32 %v2040, %v1174
        %v2047 = vrot.slane %v2041, 3
        %v2048 = vrot.slane %v2042, 3
        %v2049 = vsel %vm266, %v2047, %v2048
        %v2050 = vrot.slane %v2043, 3
        %v2051 = vsel %vm266, %v2048, %v2050
        %2052 = vrot.lane.b32.xlu0 %v2049, 122
        %v2053 = vpop.permute.xlu0 %2052
        %2054 = vrot.lane.b32.xlu0 %v2051, 122
        %v2055 = vpop.permute.xlu0 %2054
        %v2058 = vadd.f32 %v2037, %v2053
        %v2059 = vadd.f32 %v2038, %v2055
        %s2060 = sld [smem:[#allocation3 + $0x53]]
        %v2061 = vstv %s2060
        %v2062 = vmul.f32 %v2061, %v1172
        %v2063 = vmul.f32 %v2061, %v1173
        %v2064 = vmul.f32 %v2061, %v1174
        %v2068 = vrot.slane %v2062, 4
        %v2069 = vrot.slane %v2063, 4
        %v2070 = vsel %vm284, %v2068, %v2069
        %v2071 = vrot.slane %v2064, 4
        %v2072 = vsel %vm284, %v2069, %v2071
        %2073 = vrot.lane.b32.xlu0 %v2070, 122
        %v2074 = vpop.permute.xlu0 %2073
        %2075 = vrot.lane.b32.xlu0 %v2072, 122
        %v2076 = vpop.permute.xlu0 %2075
        %v2079 = vadd.f32 %v2058, %v2074
        %v2080 = vadd.f32 %v2059, %v2076
        %s2081 = sld [smem:[#allocation3 + $0x5a]]
        %v2082 = vstv %s2081
        %v2083 = vmul.f32 %v2082, %v1172
        %v2084 = vmul.f32 %v2082, %v1173
        %v2085 = vmul.f32 %v2082, %v1174
        %v2089 = vrot.slane %v2083, 5
        %v2090 = vrot.slane %v2084, 5
        %v2091 = vsel %vm302, %v2089, %v2090
        %v2092 = vrot.slane %v2085, 5
        %v2093 = vsel %vm302, %v2090, %v2092
        %2094 = vrot.lane.b32.xlu0 %v2091, 122
        %v2095 = vpop.permute.xlu0 %2094
        %2096 = vrot.lane.b32.xlu0 %v2093, 122
        %v2097 = vpop.permute.xlu0 %2096
        %v2100 = vadd.f32 %v2079, %v2095
        %v2101 = vadd.f32 %v2080, %v2097
        %s2102 = sld [smem:[#allocation3 + $0x61]]
        %v2103 = vstv %s2102
        %v2104 = vmul.f32 %v2103, %v1172
        %v2105 = vmul.f32 %v2103, %v1173
        %v2106 = vmul.f32 %v2103, %v1174
        %v2110 = vrot.slane %v2104, 6
        %v2111 = vrot.slane %v2105, 6
        %v2112 = vsel %vm320, %v2110, %v2111
        %v2113 = vrot.slane %v2106, 6
        %v2114 = vsel %vm320, %v2111, %v2113
        %2115 = vrot.lane.b32.xlu0 %v2112, 122
        %v2116 = vpop.permute.xlu0 %2115
        %2117 = vrot.lane.b32.xlu0 %v2114, 122
        %v2118 = vpop.permute.xlu0 %2117
        %v2121 = vadd.f32 %v2100, %v2116
        %v2122 = vadd.f32 %v2101, %v2118
        %v2123 = vxor.u32 %v2121, 2147483648
        %v2124 = vxor.u32 %v2122, 2147483648
        %v2125 = vmul.f32 %v2123, 1.442695
        %v2126 = vpow.pop %v2125
        %v2127 = vmul.f32 %v2124, 1.442695
        %v2128 = vpow.pop %v2127
        %v2129 = vadd.f32 %v2126, 1.0
        %v2130 = vadd.f32 %v2128, 1.0
        %v2131 = vrcp.pop %v2129
        %v2132 = vmul.f32 1.0, %v2131
        %v2133 = vrcp.pop %v2130
        %v2134 = vmul.f32 1.0, %v2133
        %vm2135 = vcmask 130048
        %2136 = vst.msk [vmem:[%s207] sm:$0xff] %vm2135, %v2132
        %2137 = vst.msk [vmem:[%s207 + $0x8] sm:$0xff] %vm2135, %v2134
        %s2138 = smul.u32 2, %s21
        %p2139 = scmp.lt.s32.totalorder %s20, 1
        %s2140 = scalar_select %p2139, %s20, 1
        %p2141 = scmp.lt.s32.totalorder %s2138, 1
        %s2142 = scalar_select %p2141, %s2138, 1
        %s2143 = smul.addr %s2140, 2
        %s2144 = sadd.s32 %s2142, %s2143
        %s2145 = smul.addr %s2144, 8
        %s2146 = scalar_lea.vmem %s3, %s2145
        // Predicated region
        $region37: #{spatial_gate.4} parent=31 // pred_check
          %p2147 = pneg %p116
        $region38: #{spatial_gate.4} parent=31 // pred_check_branch
          %2149 = sbr.rel (%p2147) target = $region40
        $region39: #{spatial_gate.4} parent=31 // pred_region
          %s2150 = smul.u32 2, %s21
        $region40: #{spatial_gate.4} parent=31 // pred_fallthru
          _
      $region32: #{spatial_gate.4} parent=5 // pred_fallthru
        _
      %p2151 = scmp.le.s32.totalorder 2, %s11
      // Predicated region
      $region41: #{spatial_gate.4} parent=5 // pred_check
        %p2152 = pneg %p2151
      $region42: #{spatial_gate.4} parent=5 // pred_check_branch
        %2154 = sbr.rel (%p2152) target = $region44
      $region43: #{spatial_gate.4} parent=5 // pred_region
        %s2155 = ssub.s32 %s11, 2
        // Predicated region
        $region45: #{spatial_gate.4} parent=43 // pred_check
          %p2156 = pneg %p122
        $region46: #{spatial_gate.4} parent=43 // pred_check_branch
          %2158 = sbr.rel (%p2156) target = $region48
        $region47: #{spatial_gate.4} parent=43 // pred_region
          %s2159 = smul.u32 2, %s23
          %p2160 = scmp.lt.s32.totalorder %s22, 1
          %s2161 = scalar_select %p2160, %s22, 1
          %p2162 = scmp.lt.s32.totalorder %s2159, 1
          %s2163 = scalar_select %p2162, %s2159, 1
          %s2164 = smul.addr %s2161, 2
          %s2165 = sadd.s32 %s2163, %s2164
          %s2166 = smul.addr %s2165, 8
          %s2167 = scalar_lea.vmem %s3, %s2166
        $region48: #{spatial_gate.4} parent=43 // pred_fallthru
          _
      $region44: #{spatial_gate.4} parent=5 // pred_fallthru
        _
    $region6: #{spatial_gate.4} parent=1 // loop_footer
      %s15 = sadd.s32 1, %s11
    $region7: #{spatial_gate.4} parent=1 // loop_footer_branch
      %10 = sbr.rel target = $region3
    $region8: #{spatial_gate.4} parent=1 // loop_exit
      _
    %2168 = vsyncpa [#allocation4], 1
    %s2169 = scalar_lea.sflag [#allocation4], 1
    %2170 = vsyncpa %s2169, 1

</llo_original>
